<compile_context>
chip_gen: v7x
topology: tpu7x:2x2x1
jax: 0.10.0
libtpu: 0.0.40
codegen_flags: <defaults>
</compile_context>

<pallas_src>
import functools

import jax
import jax.numpy as jnp
import numpy as np
from jax.experimental import pallas as pl
from jax.experimental.pallas import tpu as pltpu

EPS = 1e-5  # torch.nn.InstanceNorm2d default eps

# dot_general dimension numbers for A @ B.T (contract on last dim of both).
_NT_DIMS = (((1,), (1,)), ((), ()))


def _instance_norm_relu(y, axis, n):
    """InstanceNorm2d(affine=False) + ReLU; single-pass biased statistics."""
    inv_n = 1.0 / n
    s = jnp.sum(y, axis=axis, keepdims=True)
    ss = jnp.sum(y * y, axis=axis, keepdims=True)
    mean = s * inv_n
    var = jnp.maximum(ss * inv_n - mean * mean, 0.0)
    y = (y - mean) * jax.lax.rsqrt(var + EPS)
    return jnp.maximum(y, 0.0)


def _im2col_3x3(xpad, H, W):
    """(H+2, W+2, C) padded slab -> (H*W, 9*C) im2col operand (lane concat)."""
    C = xpad.shape[-1]
    taps = []
    for dy in range(3):
        for dx in range(3):
            taps.append(xpad[dy:dy + H, dx:dx + W, :].reshape(H * W, C))
    return jnp.concatenate(taps, axis=-1)


def upblock_kernel(*refs, H, W, has_skip):
    if has_skip:
        xpad_ref, w1_ref, w2_ref, ws_ref, bs_ref, out_ref, y1pad_ref = refs
    else:
        xpad_ref, w1_ref, w2_ref, out_ref, y1pad_ref = refs
        ws_ref = bs_ref = None

    xpad = xpad_ref[0]                          # (H+2, W+2, Cin), input dtype
    Cin = xpad.shape[-1]
    Cout = w1_ref.shape[-1]
    HW = H * W

    # ---- conv1: single K=9*Cin matmul (bias cancelled by the norm) ----------
    col1 = _im2col_3x3(xpad, H, W)                                  # (HW, 9Cin)
    y1 = jnp.dot(col1, w1_ref[...], preferred_element_type=jnp.float32)
    y1 = _instance_norm_relu(y1, axis=0, n=HW)                      # (HW, Cout)

    # ---- restage y1 as a zero-padded slab so conv2 taps are plain slices ----
    # Only the 1-wide border is zeroed; done every step so the scratch is
    # always fully defined on every core (megacore-safe, no persistence trick).
    y1pad_ref[0:1, :, :] = jnp.zeros((1, W + 2, Cout), jnp.float32)
    y1pad_ref[H + 1:H + 2, :, :] = jnp.zeros((1, W + 2, Cout), jnp.float32)
    y1pad_ref[1:H + 1, 0:1, :] = jnp.zeros((H, 1, Cout), jnp.float32)
    y1pad_ref[1:H + 1, W + 1:W + 2, :] = jnp.zeros((H, 1, Cout), jnp.float32)
    y1pad_ref[1:H + 1, 1:W + 1, :] = y1.reshape(H, W, Cout)

    # ---- conv2: single matmul, transposed-B form -> channels-first output ---
    col2 = _im2col_3x3(y1pad_ref[...], H, W)                        # (HW, 9Cout)
    y2 = jax.lax.dot_general(w2_ref[...], col2, _NT_DIMS,
                             preferred_element_type=jnp.float32)    # (Cout, HW)
    y2 = _instance_norm_relu(y2, axis=1, n=HW)

    # ---- skip path (1x1 conv) in the same channels-first form ---------------
    x_center = xpad[1:H + 1, 1:W + 1, :].reshape(HW, Cin)
    if has_skip:
        res = jax.lax.dot_general(ws_ref[...], x_center, _NT_DIMS,
                                  preferred_element_type=jnp.float32)
        res = res + bs_ref[...].astype(jnp.float32)                 # (Cout, 1)
    else:
        res = x_center.astype(jnp.float32).T                        # Cin == Cout

    # Lane-dense store: (Cout, H*W) puts H*W on the lane axis (256 lanes) and
    # is already NCHW-contiguous in HBM.
    out_ref[0] = (y2 + res).astype(out_ref.dtype)


def upblock_forward(x_nchw, w1, b1, w2, b2, ws=None, bs=None):
    """x_nchw: (N, Cin, H, W); weights in PyTorch OIHW layout.

    b1/b2 are accepted for parity with the PyTorch module but are not used:
    a conv bias followed by InstanceNorm2d(affine=False) cancels exactly.
    """
    del b1, b2
    N, Cin, H, W = x_nchw.shape
    Cout = w1.shape[0]
    has_skip = ws is not None
    dtype = x_nchw.dtype

    # NCHW -> NHWC, zero-pad spatially by 1 (conv halo handled in the wrapper).
    x_nhwc = jnp.transpose(x_nchw, (0, 2, 3, 1))
    xpad = jnp.pad(x_nhwc, ((0, 0), (1, 1), (1, 1), (0, 0)))

    # conv1 weights: OIHW -> (9*Cin, Cout)  (standard A@B matmul)
    w1_r = jnp.transpose(w1, (2, 3, 1, 0)).reshape(9 * Cin, Cout)
    # conv2 weights: OIHW -> (Cout, 9*Cout) (A@B.T matmul, channels-first out)
    w2_cf = jnp.transpose(w2, (0, 2, 3, 1)).reshape(Cout, 9 * Cout)

    operands = [xpad, w1_r, w2_cf]
    in_specs = [
        pl.BlockSpec((1, H + 2, W + 2, Cin), lambda n: (n, 0, 0, 0)),
        pl.BlockSpec((9 * Cin, Cout), lambda n: (0, 0)),
        pl.BlockSpec((Cout, 9 * Cout), lambda n: (0, 0)),
    ]
    if has_skip:
        ws_cf = ws[:, :, 0, 0]                       # (Cout, Cin)
        bs_cf = bs.reshape(Cout, 1)
        operands += [ws_cf, bs_cf]
        in_specs += [
            pl.BlockSpec((Cout, Cin), lambda n: (0, 0)),
            pl.BlockSpec((Cout, 1), lambda n: (0, 0)),
        ]

    kernel = functools.partial(upblock_kernel, H=H, W=W, has_skip=has_skip)

    # VMEM budget: double-buffered input/output blocks + weights + scratch,
    # plus headroom; capped below the smallest (v7x) per-core VMEM.
    itemsize = jnp.dtype(dtype).itemsize
    in_blk = (H + 2) * (W + 2) * Cin * itemsize
    out_blk = Cout * H * W * itemsize
    w_bytes = (9 * Cin * Cout + 9 * Cout * Cout + Cin * Cout + Cout) * 4
    scratch_bytes = (H + 2) * (W + 2) * Cout * 4
    est = 2 * (in_blk + out_blk) + w_bytes + scratch_bytes
    vmem_limit = int(min(64 << 20, max(est + (4 << 20), 16 << 20)))

    out_cf = pl.pallas_call(
        kernel,
        out_shape=jax.ShapeDtypeStruct((N, Cout, H * W), dtype),
        grid=(N,),
        in_specs=in_specs,
        out_specs=pl.BlockSpec((1, Cout, H * W), lambda n: (n, 0, 0)),
        scratch_shapes=[pltpu.VMEM((H + 2, W + 2, Cout), jnp.float32)],
        compiler_params=pltpu.CompilerParams(
            dimension_semantics=("parallel",),
            vmem_limit_bytes=vmem_limit),
    )(*operands)

    # Output is already channels-first; just split the spatial axis (free).
    return out_cf.reshape(N, Cout, H, W)


# ---------------------------- pure-JAX reference ------------------------------
def upblock_ref(x, w1, b1, w2, b2, ws, bs):
    def conv(x, w, b, pad):
        y = jax.lax.conv_general_dilated(
            x, w, (1, 1), pad, dimension_numbers=("NCHW", "OIHW", "NCHW"))
        return y + b[None, :, None, None]

    def inr(y):
        mean = y.mean(axis=(2, 3), keepdims=True)
        var = ((y - mean) ** 2).mean(axis=(2, 3), keepdims=True)
        return jnp.maximum((y - mean) * jax.lax.rsqrt(var + EPS), 0.0)

    res = conv(x, ws, bs, "VALID") if ws is not None else x
    y = inr(conv(x, w1, b1, ((1, 1), (1, 1))))
    y = inr(conv(y, w2, b2, ((1, 1), (1, 1))))
    return y + res


if __name__ == "__main__":
    N, Cin, Cout, H, W = 2, 4, 8, 16, 16

    key = jax.random.PRNGKey(0)
    kx, k1, k2, k3, k4, k5, k6 = jax.random.split(key, 7)
    x = jax.random.normal(kx, (N, Cin, H, W), jnp.float32)

    w1 = jax.random.normal(k1, (Cout, Cin, 3, 3), jnp.float32) * 0.1
    b1 = jax.random.normal(k2, (Cout,), jnp.float32) * 0.1
    w2 = jax.random.normal(k3, (Cout, Cout, 3, 3), jnp.float32) * 0.1
    b2 = jax.random.normal(k4, (Cout,), jnp.float32) * 0.1
    ws = jax.random.normal(k5, (Cout, Cin, 1, 1), jnp.float32) * 0.1  # skip 1x1
    bs = jax.random.normal(k6, (Cout,), jnp.float32) * 0.1

    out = upblock_forward(x, w1, b1, w2, b2, ws, bs)
    out = jax.block_until_ready(out)

    ref = upblock_ref(x, w1, b1, w2, b2, ws, bs)
    np.testing.assert_allclose(np.asarray(out), np.asarray(ref),
                               rtol=1e-4, atol=1e-4)
    print("KERNEL_OK")
</pallas_src>

<mosaic_0001>
module attributes {stable_mosaic.version = 11 : i64} {
  func.func @upblock_kernel(%arg0: i32, %arg1: memref<1x18x18x4xf32, #tpu.memory_space<vmem>>, %arg2: memref<36x8xf32, #tpu.memory_space<vmem>>, %arg3: memref<8x72xf32, #tpu.memory_space<vmem>>, %arg4: memref<8x4xf32, #tpu.memory_space<vmem>>, %arg5: memref<8x1xf32, #tpu.memory_space<vmem>>, %arg6: memref<1x8x256xf32, #tpu.memory_space<vmem>>, %arg7: memref<18x18x8xf32, #tpu.memory_space<vmem>>) attributes {dimension_semantics = [#tpu.dimension_semantics<parallel>], iteration_bounds = array<i64: 2>, scalar_prefetch = 0 : i64, scratch_operands = 1 : i64, tpu.core_type = #tpu.core_type<tc>, window_params = [{transform_indices = @transform_0, window_bounds = array<i64: 1, 18, 18, 4>}, {pipeline_mode = #tpu.pipeline_mode<synchronous>, transform_indices = @transform_1, window_bounds = array<i64: 36, 8>}, {pipeline_mode = #tpu.pipeline_mode<synchronous>, transform_indices = @transform_2, window_bounds = array<i64: 8, 72>}, {pipeline_mode = #tpu.pipeline_mode<synchronous>, transform_indices = @transform_3, window_bounds = array<i64: 8, 4>}, {pipeline_mode = #tpu.pipeline_mode<synchronous>, transform_indices = @transform_4, window_bounds = array<i64: 8, 1>}, {transform_indices = @transform_5, window_bounds = array<i64: 1, 8, 256>}]} {
    %c0 = arith.constant 0 : index
    %c0_0 = arith.constant 0 : index
    %c0_1 = arith.constant 0 : index
    %c0_2 = arith.constant 0 : index
    %0 = vector.load %arg1[%c0, %c0_0, %c0_1, %c0_2] : memref<1x18x18x4xf32, #tpu.memory_space<vmem>>, vector<1x18x18x4xf32>
    %1 = vector.shape_cast %0 : vector<1x18x18x4xf32> to vector<18x18x4xf32>
    %2 = vector.extract_strided_slice %1 {offsets = [0, 0, 0], sizes = [16, 16, 4], strides = [1, 1, 1]} : vector<18x18x4xf32> to vector<16x16x4xf32>
    %3 = vector.shape_cast %2 : vector<16x16x4xf32> to vector<256x4xf32>
    %4 = vector.extract_strided_slice %1 {offsets = [0, 1, 0], sizes = [16, 16, 4], strides = [1, 1, 1]} : vector<18x18x4xf32> to vector<16x16x4xf32>
    %5 = vector.shape_cast %4 : vector<16x16x4xf32> to vector<256x4xf32>
    %6 = vector.extract_strided_slice %1 {offsets = [0, 2, 0], sizes = [16, 16, 4], strides = [1, 1, 1]} : vector<18x18x4xf32> to vector<16x16x4xf32>
    %7 = vector.shape_cast %6 : vector<16x16x4xf32> to vector<256x4xf32>
    %8 = vector.extract_strided_slice %1 {offsets = [1, 0, 0], sizes = [16, 16, 4], strides = [1, 1, 1]} : vector<18x18x4xf32> to vector<16x16x4xf32>
    %9 = vector.shape_cast %8 : vector<16x16x4xf32> to vector<256x4xf32>
    %10 = vector.extract_strided_slice %1 {offsets = [1, 1, 0], sizes = [16, 16, 4], strides = [1, 1, 1]} : vector<18x18x4xf32> to vector<16x16x4xf32>
    %11 = vector.shape_cast %10 : vector<16x16x4xf32> to vector<256x4xf32>
    %12 = vector.extract_strided_slice %1 {offsets = [1, 2, 0], sizes = [16, 16, 4], strides = [1, 1, 1]} : vector<18x18x4xf32> to vector<16x16x4xf32>
    %13 = vector.shape_cast %12 : vector<16x16x4xf32> to vector<256x4xf32>
    %14 = vector.extract_strided_slice %1 {offsets = [2, 0, 0], sizes = [16, 16, 4], strides = [1, 1, 1]} : vector<18x18x4xf32> to vector<16x16x4xf32>
    %15 = vector.shape_cast %14 : vector<16x16x4xf32> to vector<256x4xf32>
    %16 = vector.extract_strided_slice %1 {offsets = [2, 1, 0], sizes = [16, 16, 4], strides = [1, 1, 1]} : vector<18x18x4xf32> to vector<16x16x4xf32>
    %17 = vector.shape_cast %16 : vector<16x16x4xf32> to vector<256x4xf32>
    %18 = vector.extract_strided_slice %1 {offsets = [2, 2, 0], sizes = [16, 16, 4], strides = [1, 1, 1]} : vector<18x18x4xf32> to vector<16x16x4xf32>
    %19 = vector.shape_cast %18 : vector<16x16x4xf32> to vector<256x4xf32>
    %20 = tpu.concatenate %3, %5, %7, %9, %11, %13, %15, %17, %19 in 1 : vector<256x4xf32>, vector<256x4xf32>, vector<256x4xf32>, vector<256x4xf32>, vector<256x4xf32>, vector<256x4xf32>, vector<256x4xf32>, vector<256x4xf32>, vector<256x4xf32> -> vector<256x36xf32>
    %c0_3 = arith.constant 0 : index
    %c0_4 = arith.constant 0 : index
    %21 = vector.load %arg2[%c0_3, %c0_4] : memref<36x8xf32, #tpu.memory_space<vmem>>, vector<36x8xf32>
    %cst = arith.constant dense<0.000000e+00> : vector<256x8xf32>
    %22 = tpu.matmul %20, %21, %cst {dimension_numbers = #tpu.dot_dimension_numbers<[1], [0], [0], [1], [0, 0, 1, 1], [], []>} : vector<256x36xf32>, vector<36x8xf32>, vector<256x8xf32> -> vector<256x8xf32>
    %cst_5 = arith.constant dense<0.000000e+00> : vector<8xf32>
    %23 = vector.multi_reduction <add>, %22, %cst_5 [0] : vector<256x8xf32> to vector<8xf32>
    %24 = vector.shape_cast %23 : vector<8xf32> to vector<1x8xf32>
    %25 = arith.mulf %22, %22 : vector<256x8xf32>
    %cst_6 = arith.constant dense<0.000000e+00> : vector<8xf32>
    %26 = vector.multi_reduction <add>, %25, %cst_6 [0] : vector<256x8xf32> to vector<8xf32>
    %27 = vector.shape_cast %26 : vector<8xf32> to vector<1x8xf32>
    %cst_7 = arith.constant 3.906250e-03 : f32
    %28 = vector.broadcast %cst_7 : f32 to vector<1x8xf32>
    %29 = arith.mulf %24, %28 : vector<1x8xf32>
    %cst_8 = arith.constant 3.906250e-03 : f32
    %30 = vector.broadcast %cst_8 : f32 to vector<1x8xf32>
    %31 = arith.mulf %27, %30 : vector<1x8xf32>
    %32 = arith.mulf %29, %29 : vector<1x8xf32>
    %33 = arith.subf %31, %32 : vector<1x8xf32>
    %cst_9 = arith.constant 0.000000e+00 : f32
    %34 = vector.broadcast %cst_9 : f32 to vector<1x8xf32>
    %35 = arith.maximumf %33, %34 : vector<1x8xf32>
    %36 = vector.broadcast %29 : vector<1x8xf32> to vector<256x8xf32>
    %37 = arith.subf %22, %36 : vector<256x8xf32>
    %cst_10 = arith.constant 9.99999974E-6 : f32
    %38 = vector.broadcast %cst_10 : f32 to vector<1x8xf32>
    %39 = arith.addf %35, %38 : vector<1x8xf32>
    %40 = math.rsqrt %39 : vector<1x8xf32>
    %41 = vector.broadcast %40 : vector<1x8xf32> to vector<256x8xf32>
    %42 = arith.mulf %37, %41 : vector<256x8xf32>
    %cst_11 = arith.constant 0.000000e+00 : f32
    %43 = vector.broadcast %cst_11 : f32 to vector<256x8xf32>
    %44 = arith.maximumf %42, %43 : vector<256x8xf32>
    %cst_12 = arith.constant 0.000000e+00 : f32
    %45 = vector.broadcast %cst_12 : f32 to vector<1x18x8xf32>
    %c0_13 = arith.constant 0 : index
    %c0_14 = arith.constant 0 : index
    %c0_15 = arith.constant 0 : index
    %46 = vector.load %arg7[%c0_13, %c0_14, %c0_15] : memref<18x18x8xf32, #tpu.memory_space<vmem>>, vector<1x18x8xf32>
    tpu.vector_store %arg7[%c0_13, %c0_14, %c0_15], %45 {strides = array<i32>} : memref<18x18x8xf32, #tpu.memory_space<vmem>>, vector<1x18x8xf32>,
    %cst_16 = arith.constant 0.000000e+00 : f32
    %47 = vector.broadcast %cst_16 : f32 to vector<1x18x8xf32>
    %c17 = arith.constant 17 : index
    %c0_17 = arith.constant 0 : index
    %c0_18 = arith.constant 0 : index
    %48 = vector.load %arg7[%c17, %c0_17, %c0_18] : memref<18x18x8xf32, #tpu.memory_space<vmem>>, vector<1x18x8xf32>
    tpu.vector_store %arg7[%c17, %c0_17, %c0_18], %47 {strides = array<i32>} : memref<18x18x8xf32, #tpu.memory_space<vmem>>, vector<1x18x8xf32>,
    %cst_19 = arith.constant 0.000000e+00 : f32
    %49 = vector.broadcast %cst_19 : f32 to vector<16x1x8xf32>
    %c1 = arith.constant 1 : index
    %c0_20 = arith.constant 0 : index
    %c0_21 = arith.constant 0 : index
    %50 = vector.load %arg7[%c1, %c0_20, %c0_21] : memref<18x18x8xf32, #tpu.memory_space<vmem>>, vector<16x1x8xf32>
    tpu.vector_store %arg7[%c1, %c0_20, %c0_21], %49 {strides = array<i32>} : memref<18x18x8xf32, #tpu.memory_space<vmem>>, vector<16x1x8xf32>,
    %cst_22 = arith.constant 0.000000e+00 : f32
    %51 = vector.broadcast %cst_22 : f32 to vector<16x1x8xf32>
    %c1_23 = arith.constant 1 : index
    %c17_24 = arith.constant 17 : index
    %c0_25 = arith.constant 0 : index
    %52 = vector.load %arg7[%c1_23, %c17_24, %c0_25] : memref<18x18x8xf32, #tpu.memory_space<vmem>>, vector<16x1x8xf32>
    tpu.vector_store %arg7[%c1_23, %c17_24, %c0_25], %51 {strides = array<i32>} : memref<18x18x8xf32, #tpu.memory_space<vmem>>, vector<16x1x8xf32>,
    %53 = vector.shape_cast %44 : vector<256x8xf32> to vector<16x16x8xf32>
    %c1_26 = arith.constant 1 : index
    %c1_27 = arith.constant 1 : index
    %c0_28 = arith.constant 0 : index
    %54 = vector.load %arg7[%c1_26, %c1_27, %c0_28] : memref<18x18x8xf32, #tpu.memory_space<vmem>>, vector<16x16x8xf32>
    tpu.vector_store %arg7[%c1_26, %c1_27, %c0_28], %53 {strides = array<i32>} : memref<18x18x8xf32, #tpu.memory_space<vmem>>, vector<16x16x8xf32>,
    %c0_29 = arith.constant 0 : index
    %c0_30 = arith.constant 0 : index
    %c0_31 = arith.constant 0 : index
    %55 = vector.load %arg7[%c0_29, %c0_30, %c0_31] : memref<18x18x8xf32, #tpu.memory_space<vmem>>, vector<18x18x8xf32>
    %56 = vector.extract_strided_slice %55 {offsets = [0, 0, 0], sizes = [16, 16, 8], strides = [1, 1, 1]} : vector<18x18x8xf32> to vector<16x16x8xf32>
    %57 = vector.shape_cast %56 : vector<16x16x8xf32> to vector<256x8xf32>
    %58 = vector.extract_strided_slice %55 {offsets = [0, 1, 0], sizes = [16, 16, 8], strides = [1, 1, 1]} : vector<18x18x8xf32> to vector<16x16x8xf32>
    %59 = vector.shape_cast %58 : vector<16x16x8xf32> to vector<256x8xf32>
    %60 = vector.extract_strided_slice %55 {offsets = [0, 2, 0], sizes = [16, 16, 8], strides = [1, 1, 1]} : vector<18x18x8xf32> to vector<16x16x8xf32>
    %61 = vector.shape_cast %60 : vector<16x16x8xf32> to vector<256x8xf32>
    %62 = vector.extract_strided_slice %55 {offsets = [1, 0, 0], sizes = [16, 16, 8], strides = [1, 1, 1]} : vector<18x18x8xf32> to vector<16x16x8xf32>
    %63 = vector.shape_cast %62 : vector<16x16x8xf32> to vector<256x8xf32>
    %64 = vector.extract_strided_slice %55 {offsets = [1, 1, 0], sizes = [16, 16, 8], strides = [1, 1, 1]} : vector<18x18x8xf32> to vector<16x16x8xf32>
    %65 = vector.shape_cast %64 : vector<16x16x8xf32> to vector<256x8xf32>
    %66 = vector.extract_strided_slice %55 {offsets = [1, 2, 0], sizes = [16, 16, 8], strides = [1, 1, 1]} : vector<18x18x8xf32> to vector<16x16x8xf32>
    %67 = vector.shape_cast %66 : vector<16x16x8xf32> to vector<256x8xf32>
    %68 = vector.extract_strided_slice %55 {offsets = [2, 0, 0], sizes = [16, 16, 8], strides = [1, 1, 1]} : vector<18x18x8xf32> to vector<16x16x8xf32>
    %69 = vector.shape_cast %68 : vector<16x16x8xf32> to vector<256x8xf32>
    %70 = vector.extract_strided_slice %55 {offsets = [2, 1, 0], sizes = [16, 16, 8], strides = [1, 1, 1]} : vector<18x18x8xf32> to vector<16x16x8xf32>
    %71 = vector.shape_cast %70 : vector<16x16x8xf32> to vector<256x8xf32>
    %72 = vector.extract_strided_slice %55 {offsets = [2, 2, 0], sizes = [16, 16, 8], strides = [1, 1, 1]} : vector<18x18x8xf32> to vector<16x16x8xf32>
    %73 = vector.shape_cast %72 : vector<16x16x8xf32> to vector<256x8xf32>
    %74 = tpu.concatenate %57, %59, %61, %63, %65, %67, %69, %71, %73 in 1 : vector<256x8xf32>, vector<256x8xf32>, vector<256x8xf32>, vector<256x8xf32>, vector<256x8xf32>, vector<256x8xf32>, vector<256x8xf32>, vector<256x8xf32>, vector<256x8xf32> -> vector<256x72xf32>
    %c0_32 = arith.constant 0 : index
    %c0_33 = arith.constant 0 : index
    %75 = vector.load %arg3[%c0_32, %c0_33] : memref<8x72xf32, #tpu.memory_space<vmem>>, vector<8x72xf32>
    %cst_34 = arith.constant dense<0.000000e+00> : vector<8x256xf32>
    %76 = tpu.matmul %75, %74, %cst_34 {dimension_numbers = #tpu.dot_dimension_numbers<[1], [1], [0], [0], [0, 0, 1, 0], [], []>} : vector<8x72xf32>, vector<256x72xf32>, vector<8x256xf32> -> vector<8x256xf32>
    %cst_35 = arith.constant dense<0.000000e+00> : vector<8xf32>
    %77 = vector.multi_reduction <add>, %76, %cst_35 [1] : vector<8x256xf32> to vector<8xf32>
    %78 = vector.shape_cast %77 : vector<8xf32> to vector<8x1xf32>
    %79 = arith.mulf %76, %76 : vector<8x256xf32>
    %cst_36 = arith.constant dense<0.000000e+00> : vector<8xf32>
    %80 = vector.multi_reduction <add>, %79, %cst_36 [1] : vector<8x256xf32> to vector<8xf32>
    %81 = vector.shape_cast %80 : vector<8xf32> to vector<8x1xf32>
    %cst_37 = arith.constant 3.906250e-03 : f32
    %82 = vector.broadcast %cst_37 : f32 to vector<8x1xf32>
    %83 = arith.mulf %78, %82 : vector<8x1xf32>
    %cst_38 = arith.constant 3.906250e-03 : f32
    %84 = vector.broadcast %cst_38 : f32 to vector<8x1xf32>
    %85 = arith.mulf %81, %84 : vector<8x1xf32>
    %86 = arith.mulf %83, %83 : vector<8x1xf32>
    %87 = arith.subf %85, %86 : vector<8x1xf32>
    %cst_39 = arith.constant 0.000000e+00 : f32
    %88 = vector.broadcast %cst_39 : f32 to vector<8x1xf32>
    %89 = arith.maximumf %87, %88 : vector<8x1xf32>
    %90 = vector.broadcast %83 : vector<8x1xf32> to vector<8x256xf32>
    %91 = arith.subf %76, %90 : vector<8x256xf32>
    %cst_40 = arith.constant 9.99999974E-6 : f32
    %92 = vector.broadcast %cst_40 : f32 to vector<8x1xf32>
    %93 = arith.addf %89, %92 : vector<8x1xf32>
    %94 = math.rsqrt %93 : vector<8x1xf32>
    %95 = vector.broadcast %94 : vector<8x1xf32> to vector<8x256xf32>
    %96 = arith.mulf %91, %95 : vector<8x256xf32>
    %cst_41 = arith.constant 0.000000e+00 : f32
    %97 = vector.broadcast %cst_41 : f32 to vector<8x256xf32>
    %98 = arith.maximumf %96, %97 : vector<8x256xf32>
    %99 = vector.extract_strided_slice %1 {offsets = [1, 1, 0], sizes = [16, 16, 4], strides = [1, 1, 1]} : vector<18x18x4xf32> to vector<16x16x4xf32>
    %100 = vector.shape_cast %99 : vector<16x16x4xf32> to vector<256x4xf32>
    %c0_42 = arith.constant 0 : index
    %c0_43 = arith.constant 0 : index
    %101 = vector.load %arg4[%c0_42, %c0_43] : memref<8x4xf32, #tpu.memory_space<vmem>>, vector<8x4xf32>
    %cst_44 = arith.constant dense<0.000000e+00> : vector<8x256xf32>
    %102 = tpu.matmul %101, %100, %cst_44 {dimension_numbers = #tpu.dot_dimension_numbers<[1], [1], [0], [0], [0, 0, 1, 0], [], []>} : vector<8x4xf32>, vector<256x4xf32>, vector<8x256xf32> -> vector<8x256xf32>
    %c0_45 = arith.constant 0 : index
    %c0_46 = arith.constant 0 : index
    %103 = vector.load %arg5[%c0_45, %c0_46] : memref<8x1xf32, #tpu.memory_space<vmem>>, vector<8x1xf32>
    %104 = vector.broadcast %103 : vector<8x1xf32> to vector<8x256xf32>
    %105 = arith.addf %102, %104 : vector<8x256xf32>
    %106 = arith.addf %98, %105 : vector<8x256xf32>
    %c0_47 = arith.constant 0 : index
    %c0_48 = arith.constant 0 : index
    %c0_49 = arith.constant 0 : index
    %107 = vector.load %arg6[%c0_47, %c0_48, %c0_49] : memref<1x8x256xf32, #tpu.memory_space<vmem>>, vector<1x8x256xf32>
    %108 = vector.shape_cast %107 : vector<1x8x256xf32> to vector<8x256xf32>
    %109 = vector.shape_cast %106 : vector<8x256xf32> to vector<1x8x256xf32>
    tpu.vector_store %arg6[%c0_47, %c0_48, %c0_49], %109 {strides = array<i32>} : memref<1x8x256xf32, #tpu.memory_space<vmem>>, vector<1x8x256xf32>,
    return
  }
  func.func @transform_0(%arg0: i32) -> (i32, i32, i32, i32) {
    %c0_i32 = arith.constant 0 : i32
    %c0_i32_0 = arith.constant 0 : i32
    %c0_i32_1 = arith.constant 0 : i32
    %c0_i32_2 = arith.constant 0 : i32
    return %arg0, %c0_i32, %c0_i32_0, %c0_i32_1 : i32, i32, i32, i32
  }
  func.func @transform_1(%arg0: i32) -> (i32, i32) {
    %c0_i32 = arith.constant 0 : i32
    %c0_i32_0 = arith.constant 0 : i32
    %c0_i32_1 = arith.constant 0 : i32
    return %c0_i32, %c0_i32_0 : i32, i32
  }
  func.func @transform_2(%arg0: i32) -> (i32, i32) {
    %c0_i32 = arith.constant 0 : i32
    %c0_i32_0 = arith.constant 0 : i32
    %c0_i32_1 = arith.constant 0 : i32
    return %c0_i32, %c0_i32_0 : i32, i32
  }
  func.func @transform_3(%arg0: i32) -> (i32, i32) {
    %c0_i32 = arith.constant 0 : i32
    %c0_i32_0 = arith.constant 0 : i32
    %c0_i32_1 = arith.constant 0 : i32
    return %c0_i32, %c0_i32_0 : i32, i32
  }
  func.func @transform_4(%arg0: i32) -> (i32, i32) {
    %c0_i32 = arith.constant 0 : i32
    %c0_i32_0 = arith.constant 0 : i32
    %c0_i32_1 = arith.constant 0 : i32
    return %c0_i32, %c0_i32_0 : i32, i32
  }
  func.func @transform_5(%arg0: i32) -> (i32, i32, i32) {
    %c0_i32 = arith.constant 0 : i32
    %c0_i32_0 = arith.constant 0 : i32
    %c0_i32_1 = arith.constant 0 : i32
    return %arg0, %c0_i32, %c0_i32_0 : i32, i32, i32
  }
}

</mosaic_0001>

<llo_original>
// kernel: tpu_custom_call.1
$region0: #{tpu_custom_call.1}
  #allocation0 [shape = 'u32[]', space=smem, size = 0x4, offset = 0x4, fixed_abs, tag = 'smem constant byte address 0x4 - core index']
  #allocation1 [shape = 'u32[144,128]{1,0:T(1,128)}', space=vmem, size = 0x12000, scoped, tag = 'internal scratch']
  #allocation2 [shape = 'f32[18,18,8]{2,1,0:T(8,128)}', space=vmem, size = 0x36000, scoped, tag = 'scratch operand']
  %s0 = inlined_call_operand.vmem [shape: f32[2,18,18,4], index: 0, kind: input, shape index: {}]
  %s1 = inlined_call_operand.vmem [shape: f32[36,8], index: 1, kind: input, shape index: {}]
  %s2 = inlined_call_operand.vmem [shape: f32[8,72], index: 2, kind: input, shape index: {}]
  %s3 = inlined_call_operand.vmem [shape: f32[8,4], index: 3, kind: input, shape index: {}]
  %s4 = inlined_call_operand.vmem [shape: f32[8,1], index: 4, kind: input, shape index: {}]
  %s5 = inlined_call_operand.hbm [shape: f32[2,8,256], index: 5, kind: output, shape index: {}]
  %s6 = sld [smem:[#allocation0]]
  $region53: #{tpu_custom_call.1} parent=0
    _
  %s8 = ssub.s32 1, %s6
  %s9 = scalar_select 0, %s8, %s6
  $region1: #{tpu_custom_call.1} parent=0
    #allocation3 [shape = 'u8[16384]{0}', space=vmem, size = 0x4000, scoped, tag = 'output window, operand 0']
    #allocation4 [shape = 's32[2]{0}', space=sflag, size = 0x8, scoped, tag = 'scoped memory for tpu_custom_call.1']
    %10 = vsyncpa [#allocation4], 0
    %s11 = scalar_lea.sflag [#allocation4], 1
    %12 = vsyncpa %s11, 0
    loop: start=0, step=1, limit=4
    $region2: #{tpu_custom_call.1} parent=1 // loop_pre_header
      _
    $region3: #{tpu_custom_call.1} parent=1 // loop_header
      %s14 = sphi 0, %s18
      %p15 = scmp.ge.s32.totalorder %s14, 4
      %s24 = sphi 0, %s26
      %s27 = sphi 0, %s24
      %s28 = sphi 0, %s27
      %s44 = sphi 0, %s28
      %s48 = sphi 0, %s48
      %s50 = sphi 0, %s48
      %s51 = sphi 0, %s50
      %s65 = sphi 0, %s51
      %s69 = sphi 0, %s69
      %s71 = sphi 0, %s69
      %s72 = sphi 0, %s71
      %s86 = sphi 0, %s72
      %s90 = sphi 0, %s90
      %s92 = sphi 0, %s90
      %s93 = sphi 0, %s92
      %s107 = sphi 0, %s93
      %s111 = sphi 0, %s111
      %s113 = sphi 0, %s111
      %s114 = sphi 0, %s113
      %s128 = sphi 0, %s114
      %s134 = sphi 0, %s136
      %s137 = sphi 0, %s134
      %s138 = sphi 0, %s137
      %s154 = sphi 0, %s138
    $region4: #{tpu_custom_call.1} parent=1 // loop_header_branch
      %17 = sbr.rel (%p15) target = $region8
    $region5: #{tpu_custom_call.1} parent=1 // loop_body
      %s19 = ssub.s32 %s14, 1
      %s20 = ssub.s32 %s14, 2
      %s21 = sadd.s32 %s14, 1
      %s22 = ssub.s32 %s14, %s21
      %p23 = scmp.eq.s32.totalorder %s22, 0
      %s25 = sadd.s32 %s24, 1
      %s26 = scalar_select %p23, %s24, %s25
      %p29 = pneg %p23
      %p30 = scmp.eq.s32.totalorder %s14, 1
      %p31 = por %p29, %p30
      %p32 = scmp.ne.s32.totalorder %s24, %s27
      %p33 = scmp.eq.s32.totalorder %s14, 0
      %p34 = por %p32, %p33
      %p35 = scmp.ne.s32.totalorder %s24, %s27
      %p36 = scmp.eq.s32.totalorder %s19, 1
      %p37 = por %p35, %p36
      %p38 = scmp.ne.s32.totalorder %s27, %s28
      %p39 = scmp.eq.s32.totalorder %s19, 0
      %p40 = por %p38, %p39
      %p41 = scmp.ne.s32.totalorder %s27, %s28
      %p42 = scmp.eq.s32.totalorder %s20, 1
      %p43 = por %p41, %p42
      %p45 = scmp.ne.s32.totalorder %s28, %s44
      %p46 = scmp.eq.s32.totalorder %s20, 0
      %p47 = por %p45, %p46
      %s49 = sadd.s32 %s48, 1
      %p52 = scmp.eq.s32.totalorder %s14, 1
      %p53 = scmp.ne.s32.totalorder %s48, %s50
      %p54 = scmp.eq.s32.totalorder %s14, 0
      %p55 = por %p53, %p54
      %p56 = scmp.ne.s32.totalorder %s48, %s50
      %p57 = scmp.eq.s32.totalorder %s19, 1
      %p58 = por %p56, %p57
      %p59 = scmp.ne.s32.totalorder %s50, %s51
      %p60 = scmp.eq.s32.totalorder %s19, 0
      %p61 = por %p59, %p60
      %p62 = scmp.ne.s32.totalorder %s50, %s51
      %p63 = scmp.eq.s32.totalorder %s20, 1
      %p64 = por %p62, %p63
      %p66 = scmp.ne.s32.totalorder %s51, %s65
      %p67 = scmp.eq.s32.totalorder %s20, 0
      %p68 = por %p66, %p67
      %s70 = sadd.s32 %s69, 1
      %p73 = scmp.eq.s32.totalorder %s14, 1
      %p74 = scmp.ne.s32.totalorder %s69, %s71
      %p75 = scmp.eq.s32.totalorder %s14, 0
      %p76 = por %p74, %p75
      %p77 = scmp.ne.s32.totalorder %s69, %s71
      %p78 = scmp.eq.s32.totalorder %s19, 1
      %p79 = por %p77, %p78
      %p80 = scmp.ne.s32.totalorder %s71, %s72
      %p81 = scmp.eq.s32.totalorder %s19, 0
      %p82 = por %p80, %p81
      %p83 = scmp.ne.s32.totalorder %s71, %s72
      %p84 = scmp.eq.s32.totalorder %s20, 1
      %p85 = por %p83, %p84
      %p87 = scmp.ne.s32.totalorder %s72, %s86
      %p88 = scmp.eq.s32.totalorder %s20, 0
      %p89 = por %p87, %p88
      %s91 = sadd.s32 %s90, 1
      %p94 = scmp.eq.s32.totalorder %s14, 1
      %p95 = scmp.ne.s32.totalorder %s90, %s92
      %p96 = scmp.eq.s32.totalorder %s14, 0
      %p97 = por %p95, %p96
      %p98 = scmp.ne.s32.totalorder %s90, %s92
      %p99 = scmp.eq.s32.totalorder %s19, 1
      %p100 = por %p98, %p99
      %p101 = scmp.ne.s32.totalorder %s92, %s93
      %p102 = scmp.eq.s32.totalorder %s19, 0
      %p103 = por %p101, %p102
      %p104 = scmp.ne.s32.totalorder %s92, %s93
      %p105 = scmp.eq.s32.totalorder %s20, 1
      %p106 = por %p104, %p105
      %p108 = scmp.ne.s32.totalorder %s93, %s107
      %p109 = scmp.eq.s32.totalorder %s20, 0
      %p110 = por %p108, %p109
      %s112 = sadd.s32 %s111, 1
      %p115 = scmp.eq.s32.totalorder %s14, 1
      %p116 = scmp.ne.s32.totalorder %s111, %s113
      %p117 = scmp.eq.s32.totalorder %s14, 0
      %p118 = por %p116, %p117
      %p119 = scmp.ne.s32.totalorder %s111, %s113
      %p120 = scmp.eq.s32.totalorder %s19, 1
      %p121 = por %p119, %p120
      %p122 = scmp.ne.s32.totalorder %s113, %s114
      %p123 = scmp.eq.s32.totalorder %s19, 0
      %p124 = por %p122, %p123
      %p125 = scmp.ne.s32.totalorder %s113, %s114
      %p126 = scmp.eq.s32.totalorder %s20, 1
      %p127 = por %p125, %p126
      %p129 = scmp.ne.s32.totalorder %s114, %s128
      %p130 = scmp.eq.s32.totalorder %s20, 0
      %p131 = por %p129, %p130
      %s132 = ssub.s32 %s14, %s21
      %p133 = scmp.eq.s32.totalorder %s132, 0
      %s135 = sadd.s32 %s134, 1
      %s136 = scalar_select %p133, %s134, %s135
      %p139 = pneg %p133
      %p140 = scmp.eq.s32.totalorder %s14, 1
      %p141 = por %p139, %p140
      %p142 = scmp.ne.s32.totalorder %s134, %s137
      %p143 = scmp.eq.s32.totalorder %s14, 0
      %p144 = por %p142, %p143
      %p145 = scmp.ne.s32.totalorder %s134, %s137
      %p146 = scmp.eq.s32.totalorder %s19, 1
      %p147 = por %p145, %p146
      %p148 = scmp.ne.s32.totalorder %s137, %s138
      %p149 = scmp.eq.s32.totalorder %s19, 0
      %p150 = por %p148, %p149
      %p151 = scmp.ne.s32.totalorder %s137, %s138
      %p152 = scmp.eq.s32.totalorder %s20, 1
      %p153 = por %p151, %p152
      %p155 = scmp.ne.s32.totalorder %s138, %s154
      %p156 = scmp.eq.s32.totalorder %s20, 0
      %p157 = por %p155, %p156
      %p158 = scmp.le.s32.totalorder 1, %s14
      %p159 = scmp.lt.s32.totalorder %s14, 3
      %p160 = pnand %p158, %p159
      %p161 = pneg %p160
      // Predicated region
      $region9: #{tpu_custom_call.1} parent=5 // pred_check
        _
      $region10: #{tpu_custom_call.1} parent=5 // pred_check_branch
        %163 = sbr.rel (%p160) target = $region12
      $region11: #{tpu_custom_call.1} parent=5 // pred_region
        %s164 = ssub.s32 %s14, 1
        // Predicated region
        $region13: #{tpu_custom_call.1} parent=11 // pred_check
          %p165 = pneg %p61
        $region14: #{tpu_custom_call.1} parent=11 // pred_check_branch
          %167 = sbr.rel (%p165) target = $region16
        $region15: #{tpu_custom_call.1} parent=11 // pred_region
          _
        $region16: #{tpu_custom_call.1} parent=11 // pred_fallthru
          _
        // Predicated region
        $region17: #{tpu_custom_call.1} parent=11 // pred_check
          %p168 = pneg %p82
        $region18: #{tpu_custom_call.1} parent=11 // pred_check_branch
          %170 = sbr.rel (%p168) target = $region20
        $region19: #{tpu_custom_call.1} parent=11 // pred_region
          _
        $region20: #{tpu_custom_call.1} parent=11 // pred_fallthru
          _
        // Predicated region
        $region21: #{tpu_custom_call.1} parent=11 // pred_check
          %p171 = pneg %p103
        $region22: #{tpu_custom_call.1} parent=11 // pred_check_branch
          %173 = sbr.rel (%p171) target = $region24
        $region23: #{tpu_custom_call.1} parent=11 // pred_region
          _
        $region24: #{tpu_custom_call.1} parent=11 // pred_fallthru
          _
        // Predicated region
        $region25: #{tpu_custom_call.1} parent=11 // pred_check
          %p174 = pneg %p124
        $region26: #{tpu_custom_call.1} parent=11 // pred_check_branch
          %176 = sbr.rel (%p174) target = $region28
        $region27: #{tpu_custom_call.1} parent=11 // pred_region
          _
        $region28: #{tpu_custom_call.1} parent=11 // pred_fallthru
          _
      $region12: #{tpu_custom_call.1} parent=5 // pred_fallthru
        _
      %p177 = scmp.lt.s32.totalorder %s14, 2
      // Predicated region
      $region29: #{tpu_custom_call.1} parent=5 // pred_check
        %p178 = pneg %p177
      $region30: #{tpu_custom_call.1} parent=5 // pred_check_branch
        %180 = sbr.rel (%p178) target = $region32
      $region31: #{tpu_custom_call.1} parent=5 // pred_region
        // Predicated region
        $region33: #{tpu_custom_call.1} parent=31 // pred_check
          %p181 = pneg %p34
        $region34: #{tpu_custom_call.1} parent=31 // pred_check_branch
          %183 = sbr.rel (%p181) target = $region36
        $region35: #{tpu_custom_call.1} parent=31 // pred_region
          %p184 = scmp.lt.s32.totalorder %s14, 1
          %s185 = scalar_select %p184, %s14, 1
          %s186 = smul.addr %s185, 54
          %s187 = smul.addr %s186, 8
          %s188 = scalar_lea.vmem %s0, %s187
        $region36: #{tpu_custom_call.1} parent=31 // pred_fallthru
          _
      $region32: #{tpu_custom_call.1} parent=5 // pred_fallthru
        _
      %p189 = scmp.le.s32.totalorder 1, %s14
      %p190 = scmp.lt.s32.totalorder %s14, 3
      %p191 = pnand %p189, %p190
      %p192 = pneg %p191
      // Predicated region
      $region37: #{tpu_custom_call.1} parent=5 // pred_check
        _
      $region38: #{tpu_custom_call.1} parent=5 // pred_check_branch
        %194 = sbr.rel (%p191) target = $region40
      $region39: #{tpu_custom_call.1} parent=5 // pred_region
        %s195 = ssub.s32 %s14, 1
        %p196 = scmp.lt.s32.totalorder %s19, 1
        %s197 = scalar_select %p196, %s19, 1
        %s198 = smul.addr %s197, 54
        %s199 = smul.addr %s198, 8
        %s200 = scalar_lea.vmem %s0, %s199
        %p201 = pneg %p40
        %p202 = pneg %p37
        %p203 = pneg %p61
        %p204 = pneg %p58
        %p205 = pneg %p82
        %p206 = pneg %p79
        %p207 = pneg %p103
        %p208 = pneg %p100
        %p209 = pneg %p124
        %p210 = pneg %p121
        %p211 = pneg %p150
        %p212 = pneg %p147
        %s213 = sand.u32 %s137, 1
        %s214 = scalar_lea.sflag [#allocation4], %s213
        %s215 = sand.u32 %s137, 1
        %s216 = smul.addr %s215, 16
        %s217 = scalar_lea.vmem [#allocation3], %s216
        %p218 = scmp.lt.s32.totalorder %s19, 1
        %s219 = scalar_select %p218, %s19, 1
        %s220 = smul.addr %s219, 54
        %s221 = smul.addr %s220, 8
        %s222 = scalar_lea.vmem %s0, %s221
        %v223 = vld [vmem:[%s222] sm:$0xff]
        %v224 = vld [vmem:[%s222 + $0x8] sm:$0xff]
        %v225 = vld [vmem:[%s222 + $0x10] sm:$0x3]
        %v226 = vld [vmem:[%s222 + $0x18] sm:$0xff]
        %v227 = vld [vmem:[%s222 + $0x20] sm:$0xff]
        %v228 = vld [vmem:[%s222 + $0x28] sm:$0x3]
        %v229 = vld [vmem:[%s222 + $0x30] sm:$0xff]
        %v230 = vld [vmem:[%s222 + $0x38] sm:$0xff]
        %v231 = vld [vmem:[%s222 + $0x40] sm:$0x3]
        %v232 = vld [vmem:[%s222 + $0x48] sm:$0xff]
        %v233 = vld [vmem:[%s222 + $0x50] sm:$0xff]
        %v234 = vld [vmem:[%s222 + $0x58] sm:$0x3]
        %v235 = vld [vmem:[%s222 + $0x60] sm:$0xff]
        %v236 = vld [vmem:[%s222 + $0x68] sm:$0xff]
        %v237 = vld [vmem:[%s222 + $0x70] sm:$0x3]
        %v238 = vld [vmem:[%s222 + $0x78] sm:$0xff]
        %v239 = vld [vmem:[%s222 + $0x80] sm:$0xff]
        %v240 = vld [vmem:[%s222 + $0x88] sm:$0x3]
        %v241 = vld [vmem:[%s222 + $0x90] sm:$0xff]
        %v242 = vld [vmem:[%s222 + $0x98] sm:$0xff]
        %v243 = vld [vmem:[%s222 + $0xa0] sm:$0x3]
        %v244 = vld [vmem:[%s222 + $0xa8] sm:$0xff]
        %v245 = vld [vmem:[%s222 + $0xb0] sm:$0xff]
        %v246 = vld [vmem:[%s222 + $0xb8] sm:$0x3]
        %v247 = vld [vmem:[%s222 + $0xc0] sm:$0xff]
        %v248 = vld [vmem:[%s222 + $0xc8] sm:$0xff]
        %v249 = vld [vmem:[%s222 + $0xd0] sm:$0x3]
        %v250 = vld [vmem:[%s222 + $0xd8] sm:$0xff]
        %v251 = vld [vmem:[%s222 + $0xe0] sm:$0xff]
        %v252 = vld [vmem:[%s222 + $0xe8] sm:$0x3]
        %v253 = vld [vmem:[%s222 + $0xf0] sm:$0xff]
        %v254 = vld [vmem:[%s222 + $0xf8] sm:$0xff]
        %v255 = vld [vmem:[%s222 + $0x100] sm:$0x3]
        %v256 = vld [vmem:[%s222 + $0x108] sm:$0xff]
        %v257 = vld [vmem:[%s222 + $0x110] sm:$0xff]
        %v258 = vld [vmem:[%s222 + $0x118] sm:$0x3]
        %v259 = vld [vmem:[%s222 + $0x120] sm:$0xff]
        %v260 = vld [vmem:[%s222 + $0x128] sm:$0xff]
        %v261 = vld [vmem:[%s222 + $0x130] sm:$0x3]
        %v262 = vld [vmem:[%s222 + $0x138] sm:$0xff]
        %v263 = vld [vmem:[%s222 + $0x140] sm:$0xff]
        %v264 = vld [vmem:[%s222 + $0x148] sm:$0x3]
        %v265 = vld [vmem:[%s222 + $0x150] sm:$0xff]
        %v266 = vld [vmem:[%s222 + $0x158] sm:$0xff]
        %v267 = vld [vmem:[%s222 + $0x160] sm:$0x3]
        %v268 = vld [vmem:[%s222 + $0x168] sm:$0xff]
        %v269 = vld [vmem:[%s222 + $0x170] sm:$0xff]
        %v270 = vld [vmem:[%s222 + $0x178] sm:$0x3]
        %v271 = vld [vmem:[%s222 + $0x180] sm:$0xff]
        %v272 = vld [vmem:[%s222 + $0x188] sm:$0xff]
        %v273 = vld [vmem:[%s222 + $0x190] sm:$0x3]
        %v274 = vld [vmem:[%s222 + $0x198] sm:$0xff]
        %v275 = vld [vmem:[%s222 + $0x1a0] sm:$0xff]
        %v276 = vld [vmem:[%s222 + $0x1a8] sm:$0x3]
        %vm325 = vcmask 1046528
        %v326 = vrot.slane %v223, 1
        %v327 = vrot.slane %v224, 1
        %v328 = vsel %vm325, %v326, %v327
        %v329 = vrot.slane %v225, 1
        %v330 = vsel %vm325, %v327, %v329
        %v331 = vrot.slane %v226, 1
        %v332 = vrot.slane %v227, 1
        %v333 = vsel %vm325, %v331, %v332
        %v334 = vrot.slane %v228, 1
        %v335 = vsel %vm325, %v332, %v334
        %v336 = vrot.slane %v229, 1
        %v337 = vrot.slane %v230, 1
        %v338 = vsel %vm325, %v336, %v337
        %v339 = vrot.slane %v231, 1
        %v340 = vsel %vm325, %v337, %v339
        %v341 = vrot.slane %v232, 1
        %v342 = vrot.slane %v233, 1
        %v343 = vsel %vm325, %v341, %v342
        %v344 = vrot.slane %v234, 1
        %v345 = vsel %vm325, %v342, %v344
        %v346 = vrot.slane %v235, 1
        %v347 = vrot.slane %v236, 1
        %v348 = vsel %vm325, %v346, %v347
        %v349 = vrot.slane %v237, 1
        %v350 = vsel %vm325, %v347, %v349
        %v351 = vrot.slane %v238, 1
        %v352 = vrot.slane %v239, 1
        %v353 = vsel %vm325, %v351, %v352
        %v354 = vrot.slane %v240, 1
        %v355 = vsel %vm325, %v352, %v354
        %v356 = vrot.slane %v241, 1
        %v357 = vrot.slane %v242, 1
        %v358 = vsel %vm325, %v356, %v357
        %v359 = vrot.slane %v243, 1
        %v360 = vsel %vm325, %v357, %v359
        %v361 = vrot.slane %v244, 1
        %v362 = vrot.slane %v245, 1
        %v363 = vsel %vm325, %v361, %v362
        %v364 = vrot.slane %v246, 1
        %v365 = vsel %vm325, %v362, %v364
        %v366 = vrot.slane %v247, 1
        %v367 = vrot.slane %v248, 1
        %v368 = vsel %vm325, %v366, %v367
        %v369 = vrot.slane %v249, 1
        %v370 = vsel %vm325, %v367, %v369
        %v371 = vrot.slane %v250, 1
        %v372 = vrot.slane %v251, 1
        %v373 = vsel %vm325, %v371, %v372
        %v374 = vrot.slane %v252, 1
        %v375 = vsel %vm325, %v372, %v374
        %v376 = vrot.slane %v253, 1
        %v377 = vrot.slane %v254, 1
        %v378 = vsel %vm325, %v376, %v377
        %v379 = vrot.slane %v255, 1
        %v380 = vsel %vm325, %v377, %v379
        %v381 = vrot.slane %v256, 1
        %v382 = vrot.slane %v257, 1
        %v383 = vsel %vm325, %v381, %v382
        %v384 = vrot.slane %v258, 1
        %v385 = vsel %vm325, %v382, %v384
        %v386 = vrot.slane %v259, 1
        %v387 = vrot.slane %v260, 1
        %v388 = vsel %vm325, %v386, %v387
        %v389 = vrot.slane %v261, 1
        %v390 = vsel %vm325, %v387, %v389
        %v391 = vrot.slane %v262, 1
        %v392 = vrot.slane %v263, 1
        %v393 = vsel %vm325, %v391, %v392
        %v394 = vrot.slane %v264, 1
        %v395 = vsel %vm325, %v392, %v394
        %v396 = vrot.slane %v265, 1
        %v397 = vrot.slane %v266, 1
        %v398 = vsel %vm325, %v396, %v397
        %v399 = vrot.slane %v267, 1
        %v400 = vsel %vm325, %v397, %v399
        %v401 = vrot.slane %v268, 1
        %v402 = vrot.slane %v269, 1
        %v403 = vsel %vm325, %v401, %v402
        %v404 = vrot.slane %v270, 1
        %v405 = vsel %vm325, %v402, %v404
        %vm406 = vcmask 1045504
        %v407 = vrot.slane %v223, 2
        %v408 = vrot.slane %v224, 2
        %v409 = vsel %vm406, %v407, %v408
        %v410 = vrot.slane %v225, 2
        %v411 = vsel %vm406, %v408, %v410
        %v412 = vrot.slane %v226, 2
        %v413 = vrot.slane %v227, 2
        %v414 = vsel %vm406, %v412, %v413
        %v415 = vrot.slane %v228, 2
        %v416 = vsel %vm406, %v413, %v415
        %v417 = vrot.slane %v229, 2
        %v418 = vrot.slane %v230, 2
        %v419 = vsel %vm406, %v417, %v418
        %v420 = vrot.slane %v231, 2
        %v421 = vsel %vm406, %v418, %v420
        %v422 = vrot.slane %v232, 2
        %v423 = vrot.slane %v233, 2
        %v424 = vsel %vm406, %v422, %v423
        %v425 = vrot.slane %v234, 2
        %v426 = vsel %vm406, %v423, %v425
        %v427 = vrot.slane %v235, 2
        %v428 = vrot.slane %v236, 2
        %v429 = vsel %vm406, %v427, %v428
        %v430 = vrot.slane %v237, 2
        %v431 = vsel %vm406, %v428, %v430
        %v432 = vrot.slane %v238, 2
        %v433 = vrot.slane %v239, 2
        %v434 = vsel %vm406, %v432, %v433
        %v435 = vrot.slane %v240, 2
        %v436 = vsel %vm406, %v433, %v435
        %v437 = vrot.slane %v241, 2
        %v438 = vrot.slane %v242, 2
        %v439 = vsel %vm406, %v437, %v438
        %v440 = vrot.slane %v243, 2
        %v441 = vsel %vm406, %v438, %v440
        %v442 = vrot.slane %v244, 2
        %v443 = vrot.slane %v245, 2
        %v444 = vsel %vm406, %v442, %v443
        %v445 = vrot.slane %v246, 2
        %v446 = vsel %vm406, %v443, %v445
        %v447 = vrot.slane %v247, 2
        %v448 = vrot.slane %v248, 2
        %v449 = vsel %vm406, %v447, %v448
        %v450 = vrot.slane %v249, 2
        %v451 = vsel %vm406, %v448, %v450
        %v452 = vrot.slane %v250, 2
        %v453 = vrot.slane %v251, 2
        %v454 = vsel %vm406, %v452, %v453
        %v455 = vrot.slane %v252, 2
        %v456 = vsel %vm406, %v453, %v455
        %v457 = vrot.slane %v253, 2
        %v458 = vrot.slane %v254, 2
        %v459 = vsel %vm406, %v457, %v458
        %v460 = vrot.slane %v255, 2
        %v461 = vsel %vm406, %v458, %v460
        %v462 = vrot.slane %v256, 2
        %v463 = vrot.slane %v257, 2
        %v464 = vsel %vm406, %v462, %v463
        %v465 = vrot.slane %v258, 2
        %v466 = vsel %vm406, %v463, %v465
        %v467 = vrot.slane %v259, 2
        %v468 = vrot.slane %v260, 2
        %v469 = vsel %vm406, %v467, %v468
        %v470 = vrot.slane %v261, 2
        %v471 = vsel %vm406, %v468, %v470
        %v472 = vrot.slane %v262, 2
        %v473 = vrot.slane %v263, 2
        %v474 = vsel %vm406, %v472, %v473
        %v475 = vrot.slane %v264, 2
        %v476 = vsel %vm406, %v473, %v475
        %v477 = vrot.slane %v265, 2
        %v478 = vrot.slane %v266, 2
        %v479 = vsel %vm406, %v477, %v478
        %v480 = vrot.slane %v267, 2
        %v481 = vsel %vm406, %v478, %v480
        %v482 = vrot.slane %v268, 2
        %v483 = vrot.slane %v269, 2
        %v484 = vsel %vm406, %v482, %v483
        %v485 = vrot.slane %v270, 2
        %v486 = vsel %vm406, %v483, %v485
        %v490 = vrot.slane %v271, 1
        %v491 = vrot.slane %v272, 1
        %v492 = vsel %vm325, %v490, %v491
        %v493 = vrot.slane %v273, 1
        %v494 = vsel %vm325, %v491, %v493
        %v495 = vrot.slane %v271, 2
        %v496 = vrot.slane %v272, 2
        %v497 = vsel %vm406, %v495, %v496
        %v498 = vrot.slane %v273, 2
        %v499 = vsel %vm406, %v496, %v498
        %v503 = vrot.slane %v274, 1
        %v504 = vrot.slane %v275, 1
        %v505 = vsel %vm325, %v503, %v504
        %v506 = vrot.slane %v276, 1
        %v507 = vsel %vm325, %v504, %v506
        %v508 = vrot.slane %v274, 2
        %v509 = vrot.slane %v275, 2
        %v510 = vsel %vm406, %v508, %v509
        %v511 = vrot.slane %v276, 2
        %v512 = vsel %vm406, %v509, %v511
        %513 = vrot.lane.b32.xlu0 %v328, 4
        %v514 = vpop.permute.xlu0 %513
        %515 = vrot.lane.b32.xlu0 %v330, 4
        %v516 = vpop.permute.xlu0 %515
        %517 = vrot.lane.b32.xlu0 %v333, 4
        %v518 = vpop.permute.xlu0 %517
        %519 = vrot.lane.b32.xlu0 %v335, 4
        %v520 = vpop.permute.xlu0 %519
        %521 = vrot.lane.b32.xlu0 %v338, 4
        %v522 = vpop.permute.xlu0 %521
        %523 = vrot.lane.b32.xlu0 %v340, 4
        %v524 = vpop.permute.xlu0 %523
        %525 = vrot.lane.b32.xlu0 %v343, 4
        %v526 = vpop.permute.xlu0 %525
        %527 = vrot.lane.b32.xlu0 %v345, 4
        %v528 = vpop.permute.xlu0 %527
        %529 = vrot.lane.b32.xlu0 %v348, 4
        %v530 = vpop.permute.xlu0 %529
        %531 = vrot.lane.b32.xlu0 %v350, 4
        %v532 = vpop.permute.xlu0 %531
        %533 = vrot.lane.b32.xlu0 %v353, 4
        %v534 = vpop.permute.xlu0 %533
        %535 = vrot.lane.b32.xlu0 %v355, 4
        %v536 = vpop.permute.xlu0 %535
        %537 = vrot.lane.b32.xlu0 %v358, 4
        %v538 = vpop.permute.xlu0 %537
        %539 = vrot.lane.b32.xlu0 %v360, 4
        %v540 = vpop.permute.xlu0 %539
        %541 = vrot.lane.b32.xlu0 %v363, 4
        %v542 = vpop.permute.xlu0 %541
        %543 = vrot.lane.b32.xlu0 %v365, 4
        %v544 = vpop.permute.xlu0 %543
        %545 = vrot.lane.b32.xlu0 %v368, 4
        %v546 = vpop.permute.xlu0 %545
        %547 = vrot.lane.b32.xlu0 %v370, 4
        %v548 = vpop.permute.xlu0 %547
        %549 = vrot.lane.b32.xlu0 %v373, 4
        %v550 = vpop.permute.xlu0 %549
        %551 = vrot.lane.b32.xlu0 %v375, 4
        %v552 = vpop.permute.xlu0 %551
        %553 = vrot.lane.b32.xlu0 %v378, 4
        %v554 = vpop.permute.xlu0 %553
        %555 = vrot.lane.b32.xlu0 %v380, 4
        %v556 = vpop.permute.xlu0 %555
        %557 = vrot.lane.b32.xlu0 %v383, 4
        %v558 = vpop.permute.xlu0 %557
        %559 = vrot.lane.b32.xlu0 %v385, 4
        %v560 = vpop.permute.xlu0 %559
        %561 = vrot.lane.b32.xlu0 %v388, 4
        %v562 = vpop.permute.xlu0 %561
        %563 = vrot.lane.b32.xlu0 %v390, 4
        %v564 = vpop.permute.xlu0 %563
        %565 = vrot.lane.b32.xlu0 %v393, 4
        %v566 = vpop.permute.xlu0 %565
        %567 = vrot.lane.b32.xlu0 %v395, 4
        %v568 = vpop.permute.xlu0 %567
        %569 = vrot.lane.b32.xlu0 %v398, 4
        %v570 = vpop.permute.xlu0 %569
        %571 = vrot.lane.b32.xlu0 %v400, 4
        %v572 = vpop.permute.xlu0 %571
        %573 = vrot.lane.b32.xlu0 %v403, 4
        %v574 = vpop.permute.xlu0 %573
        %575 = vrot.lane.b32.xlu0 %v405, 4
        %v576 = vpop.permute.xlu0 %575
        %609 = vrot.lane.b32.xlu0 %v409, 8
        %v610 = vpop.permute.xlu0 %609
        %611 = vrot.lane.b32.xlu0 %v411, 8
        %v612 = vpop.permute.xlu0 %611
        %613 = vrot.lane.b32.xlu0 %v414, 8
        %v614 = vpop.permute.xlu0 %613
        %615 = vrot.lane.b32.xlu0 %v416, 8
        %v616 = vpop.permute.xlu0 %615
        %617 = vrot.lane.b32.xlu0 %v419, 8
        %v618 = vpop.permute.xlu0 %617
        %619 = vrot.lane.b32.xlu0 %v421, 8
        %v620 = vpop.permute.xlu0 %619
        %621 = vrot.lane.b32.xlu0 %v424, 8
        %v622 = vpop.permute.xlu0 %621
        %623 = vrot.lane.b32.xlu0 %v426, 8
        %v624 = vpop.permute.xlu0 %623
        %625 = vrot.lane.b32.xlu0 %v429, 8
        %v626 = vpop.permute.xlu0 %625
        %627 = vrot.lane.b32.xlu0 %v431, 8
        %v628 = vpop.permute.xlu0 %627
        %629 = vrot.lane.b32.xlu0 %v434, 8
        %v630 = vpop.permute.xlu0 %629
        %631 = vrot.lane.b32.xlu0 %v436, 8
        %v632 = vpop.permute.xlu0 %631
        %633 = vrot.lane.b32.xlu0 %v439, 8
        %v634 = vpop.permute.xlu0 %633
        %635 = vrot.lane.b32.xlu0 %v441, 8
        %v636 = vpop.permute.xlu0 %635
        %637 = vrot.lane.b32.xlu0 %v444, 8
        %v638 = vpop.permute.xlu0 %637
        %639 = vrot.lane.b32.xlu0 %v446, 8
        %v640 = vpop.permute.xlu0 %639
        %641 = vrot.lane.b32.xlu0 %v449, 8
        %v642 = vpop.permute.xlu0 %641
        %643 = vrot.lane.b32.xlu0 %v451, 8
        %v644 = vpop.permute.xlu0 %643
        %645 = vrot.lane.b32.xlu0 %v454, 8
        %v646 = vpop.permute.xlu0 %645
        %647 = vrot.lane.b32.xlu0 %v456, 8
        %v648 = vpop.permute.xlu0 %647
        %649 = vrot.lane.b32.xlu0 %v459, 8
        %v650 = vpop.permute.xlu0 %649
        %651 = vrot.lane.b32.xlu0 %v461, 8
        %v652 = vpop.permute.xlu0 %651
        %653 = vrot.lane.b32.xlu0 %v464, 8
        %v654 = vpop.permute.xlu0 %653
        %655 = vrot.lane.b32.xlu0 %v466, 8
        %v656 = vpop.permute.xlu0 %655
        %657 = vrot.lane.b32.xlu0 %v469, 8
        %v658 = vpop.permute.xlu0 %657
        %659 = vrot.lane.b32.xlu0 %v471, 8
        %v660 = vpop.permute.xlu0 %659
        %661 = vrot.lane.b32.xlu0 %v474, 8
        %v662 = vpop.permute.xlu0 %661
        %663 = vrot.lane.b32.xlu0 %v476, 8
        %v664 = vpop.permute.xlu0 %663
        %665 = vrot.lane.b32.xlu0 %v479, 8
        %v666 = vpop.permute.xlu0 %665
        %667 = vrot.lane.b32.xlu0 %v481, 8
        %v668 = vpop.permute.xlu0 %667
        %669 = vrot.lane.b32.xlu0 %v484, 8
        %v670 = vpop.permute.xlu0 %669
        %671 = vrot.lane.b32.xlu0 %v486, 8
        %v672 = vpop.permute.xlu0 %671
        %705 = vrot.lane.b32.xlu0 %v226, 12
        %v706 = vpop.permute.xlu0 %705
        %707 = vrot.lane.b32.xlu0 %v227, 12
        %v708 = vpop.permute.xlu0 %707
        %709 = vrot.lane.b32.xlu0 %v229, 12
        %v710 = vpop.permute.xlu0 %709
        %711 = vrot.lane.b32.xlu0 %v230, 12
        %v712 = vpop.permute.xlu0 %711
        %713 = vrot.lane.b32.xlu0 %v232, 12
        %v714 = vpop.permute.xlu0 %713
        %715 = vrot.lane.b32.xlu0 %v233, 12
        %v716 = vpop.permute.xlu0 %715
        %717 = vrot.lane.b32.xlu0 %v235, 12
        %v718 = vpop.permute.xlu0 %717
        %719 = vrot.lane.b32.xlu0 %v236, 12
        %v720 = vpop.permute.xlu0 %719
        %721 = vrot.lane.b32.xlu0 %v238, 12
        %v722 = vpop.permute.xlu0 %721
        %723 = vrot.lane.b32.xlu0 %v239, 12
        %v724 = vpop.permute.xlu0 %723
        %725 = vrot.lane.b32.xlu0 %v241, 12
        %v726 = vpop.permute.xlu0 %725
        %727 = vrot.lane.b32.xlu0 %v242, 12
        %v728 = vpop.permute.xlu0 %727
        %729 = vrot.lane.b32.xlu0 %v244, 12
        %v730 = vpop.permute.xlu0 %729
        %731 = vrot.lane.b32.xlu0 %v245, 12
        %v732 = vpop.permute.xlu0 %731
        %733 = vrot.lane.b32.xlu0 %v247, 12
        %v734 = vpop.permute.xlu0 %733
        %735 = vrot.lane.b32.xlu0 %v248, 12
        %v736 = vpop.permute.xlu0 %735
        %737 = vrot.lane.b32.xlu0 %v250, 12
        %v738 = vpop.permute.xlu0 %737
        %739 = vrot.lane.b32.xlu0 %v251, 12
        %v740 = vpop.permute.xlu0 %739
        %741 = vrot.lane.b32.xlu0 %v253, 12
        %v742 = vpop.permute.xlu0 %741
        %743 = vrot.lane.b32.xlu0 %v254, 12
        %v744 = vpop.permute.xlu0 %743
        %745 = vrot.lane.b32.xlu0 %v256, 12
        %v746 = vpop.permute.xlu0 %745
        %747 = vrot.lane.b32.xlu0 %v257, 12
        %v748 = vpop.permute.xlu0 %747
        %749 = vrot.lane.b32.xlu0 %v259, 12
        %v750 = vpop.permute.xlu0 %749
        %751 = vrot.lane.b32.xlu0 %v260, 12
        %v752 = vpop.permute.xlu0 %751
        %753 = vrot.lane.b32.xlu0 %v262, 12
        %v754 = vpop.permute.xlu0 %753
        %755 = vrot.lane.b32.xlu0 %v263, 12
        %v756 = vpop.permute.xlu0 %755
        %757 = vrot.lane.b32.xlu0 %v265, 12
        %v758 = vpop.permute.xlu0 %757
        %759 = vrot.lane.b32.xlu0 %v266, 12
        %v760 = vpop.permute.xlu0 %759
        %761 = vrot.lane.b32.xlu0 %v268, 12
        %v762 = vpop.permute.xlu0 %761
        %763 = vrot.lane.b32.xlu0 %v269, 12
        %v764 = vpop.permute.xlu0 %763
        %765 = vrot.lane.b32.xlu0 %v271, 12
        %v766 = vpop.permute.xlu0 %765
        %767 = vrot.lane.b32.xlu0 %v272, 12
        %v768 = vpop.permute.xlu0 %767
        %801 = vrot.lane.b32.xlu0 %v333, 16
        %v802 = vpop.permute.xlu0 %801
        %803 = vrot.lane.b32.xlu0 %v335, 16
        %v804 = vpop.permute.xlu0 %803
        %805 = vrot.lane.b32.xlu0 %v338, 16
        %v806 = vpop.permute.xlu0 %805
        %807 = vrot.lane.b32.xlu0 %v340, 16
        %v808 = vpop.permute.xlu0 %807
        %809 = vrot.lane.b32.xlu0 %v343, 16
        %v810 = vpop.permute.xlu0 %809
        %811 = vrot.lane.b32.xlu0 %v345, 16
        %v812 = vpop.permute.xlu0 %811
        %813 = vrot.lane.b32.xlu0 %v348, 16
        %v814 = vpop.permute.xlu0 %813
        %815 = vrot.lane.b32.xlu0 %v350, 16
        %v816 = vpop.permute.xlu0 %815
        %817 = vrot.lane.b32.xlu0 %v353, 16
        %v818 = vpop.permute.xlu0 %817
        %819 = vrot.lane.b32.xlu0 %v355, 16
        %v820 = vpop.permute.xlu0 %819
        %821 = vrot.lane.b32.xlu0 %v358, 16
        %v822 = vpop.permute.xlu0 %821
        %823 = vrot.lane.b32.xlu0 %v360, 16
        %v824 = vpop.permute.xlu0 %823
        %825 = vrot.lane.b32.xlu0 %v363, 16
        %v826 = vpop.permute.xlu0 %825
        %827 = vrot.lane.b32.xlu0 %v365, 16
        %v828 = vpop.permute.xlu0 %827
        %829 = vrot.lane.b32.xlu0 %v368, 16
        %v830 = vpop.permute.xlu0 %829
        %831 = vrot.lane.b32.xlu0 %v370, 16
        %v832 = vpop.permute.xlu0 %831
        %833 = vrot.lane.b32.xlu0 %v373, 16
        %v834 = vpop.permute.xlu0 %833
        %835 = vrot.lane.b32.xlu0 %v375, 16
        %v836 = vpop.permute.xlu0 %835
        %837 = vrot.lane.b32.xlu0 %v378, 16
        %v838 = vpop.permute.xlu0 %837
        %839 = vrot.lane.b32.xlu0 %v380, 16
        %v840 = vpop.permute.xlu0 %839
        %841 = vrot.lane.b32.xlu0 %v383, 16
        %v842 = vpop.permute.xlu0 %841
        %843 = vrot.lane.b32.xlu0 %v385, 16
        %v844 = vpop.permute.xlu0 %843
        %845 = vrot.lane.b32.xlu0 %v388, 16
        %v846 = vpop.permute.xlu0 %845
        %847 = vrot.lane.b32.xlu0 %v390, 16
        %v848 = vpop.permute.xlu0 %847
        %849 = vrot.lane.b32.xlu0 %v393, 16
        %v850 = vpop.permute.xlu0 %849
        %851 = vrot.lane.b32.xlu0 %v395, 16
        %v852 = vpop.permute.xlu0 %851
        %853 = vrot.lane.b32.xlu0 %v398, 16
        %v854 = vpop.permute.xlu0 %853
        %855 = vrot.lane.b32.xlu0 %v400, 16
        %v856 = vpop.permute.xlu0 %855
        %857 = vrot.lane.b32.xlu0 %v403, 16
        %v858 = vpop.permute.xlu0 %857
        %859 = vrot.lane.b32.xlu0 %v405, 16
        %v860 = vpop.permute.xlu0 %859
        %861 = vrot.lane.b32.xlu0 %v492, 16
        %v862 = vpop.permute.xlu0 %861
        %863 = vrot.lane.b32.xlu0 %v494, 16
        %v864 = vpop.permute.xlu0 %863
        %897 = vrot.lane.b32.xlu0 %v414, 20
        %v898 = vpop.permute.xlu0 %897
        %899 = vrot.lane.b32.xlu0 %v416, 20
        %v900 = vpop.permute.xlu0 %899
        %901 = vrot.lane.b32.xlu0 %v419, 20
        %v902 = vpop.permute.xlu0 %901
        %903 = vrot.lane.b32.xlu0 %v421, 20
        %v904 = vpop.permute.xlu0 %903
        %905 = vrot.lane.b32.xlu0 %v424, 20
        %v906 = vpop.permute.xlu0 %905
        %907 = vrot.lane.b32.xlu0 %v426, 20
        %v908 = vpop.permute.xlu0 %907
        %909 = vrot.lane.b32.xlu0 %v429, 20
        %v910 = vpop.permute.xlu0 %909
        %911 = vrot.lane.b32.xlu0 %v431, 20
        %v912 = vpop.permute.xlu0 %911
        %913 = vrot.lane.b32.xlu0 %v434, 20
        %v914 = vpop.permute.xlu0 %913
        %915 = vrot.lane.b32.xlu0 %v436, 20
        %v916 = vpop.permute.xlu0 %915
        %917 = vrot.lane.b32.xlu0 %v439, 20
        %v918 = vpop.permute.xlu0 %917
        %919 = vrot.lane.b32.xlu0 %v441, 20
        %v920 = vpop.permute.xlu0 %919
        %921 = vrot.lane.b32.xlu0 %v444, 20
        %v922 = vpop.permute.xlu0 %921
        %923 = vrot.lane.b32.xlu0 %v446, 20
        %v924 = vpop.permute.xlu0 %923
        %925 = vrot.lane.b32.xlu0 %v449, 20
        %v926 = vpop.permute.xlu0 %925
        %927 = vrot.lane.b32.xlu0 %v451, 20
        %v928 = vpop.permute.xlu0 %927
        %929 = vrot.lane.b32.xlu0 %v454, 20
        %v930 = vpop.permute.xlu0 %929
        %931 = vrot.lane.b32.xlu0 %v456, 20
        %v932 = vpop.permute.xlu0 %931
        %933 = vrot.lane.b32.xlu0 %v459, 20
        %v934 = vpop.permute.xlu0 %933
        %935 = vrot.lane.b32.xlu0 %v461, 20
        %v936 = vpop.permute.xlu0 %935
        %937 = vrot.lane.b32.xlu0 %v464, 20
        %v938 = vpop.permute.xlu0 %937
        %939 = vrot.lane.b32.xlu0 %v466, 20
        %v940 = vpop.permute.xlu0 %939
        %941 = vrot.lane.b32.xlu0 %v469, 20
        %v942 = vpop.permute.xlu0 %941
        %943 = vrot.lane.b32.xlu0 %v471, 20
        %v944 = vpop.permute.xlu0 %943
        %945 = vrot.lane.b32.xlu0 %v474, 20
        %v946 = vpop.permute.xlu0 %945
        %947 = vrot.lane.b32.xlu0 %v476, 20
        %v948 = vpop.permute.xlu0 %947
        %949 = vrot.lane.b32.xlu0 %v479, 20
        %v950 = vpop.permute.xlu0 %949
        %951 = vrot.lane.b32.xlu0 %v481, 20
        %v952 = vpop.permute.xlu0 %951
        %953 = vrot.lane.b32.xlu0 %v484, 20
        %v954 = vpop.permute.xlu0 %953
        %955 = vrot.lane.b32.xlu0 %v486, 20
        %v956 = vpop.permute.xlu0 %955
        %957 = vrot.lane.b32.xlu0 %v497, 20
        %v958 = vpop.permute.xlu0 %957
        %959 = vrot.lane.b32.xlu0 %v499, 20
        %v960 = vpop.permute.xlu0 %959
        %993 = vrot.lane.b32.xlu0 %v229, 24
        %v994 = vpop.permute.xlu0 %993
        %995 = vrot.lane.b32.xlu0 %v230, 24
        %v996 = vpop.permute.xlu0 %995
        %997 = vrot.lane.b32.xlu0 %v232, 24
        %v998 = vpop.permute.xlu0 %997
        %999 = vrot.lane.b32.xlu0 %v233, 24
        %v1000 = vpop.permute.xlu0 %999
        %1001 = vrot.lane.b32.xlu0 %v235, 24
        %v1002 = vpop.permute.xlu0 %1001
        %1003 = vrot.lane.b32.xlu0 %v236, 24
        %v1004 = vpop.permute.xlu0 %1003
        %1005 = vrot.lane.b32.xlu0 %v238, 24
        %v1006 = vpop.permute.xlu0 %1005
        %1007 = vrot.lane.b32.xlu0 %v239, 24
        %v1008 = vpop.permute.xlu0 %1007
        %1009 = vrot.lane.b32.xlu0 %v241, 24
        %v1010 = vpop.permute.xlu0 %1009
        %1011 = vrot.lane.b32.xlu0 %v242, 24
        %v1012 = vpop.permute.xlu0 %1011
        %1013 = vrot.lane.b32.xlu0 %v244, 24
        %v1014 = vpop.permute.xlu0 %1013
        %1015 = vrot.lane.b32.xlu0 %v245, 24
        %v1016 = vpop.permute.xlu0 %1015
        %1017 = vrot.lane.b32.xlu0 %v247, 24
        %v1018 = vpop.permute.xlu0 %1017
        %1019 = vrot.lane.b32.xlu0 %v248, 24
        %v1020 = vpop.permute.xlu0 %1019
        %1021 = vrot.lane.b32.xlu0 %v250, 24
        %v1022 = vpop.permute.xlu0 %1021
        %1023 = vrot.lane.b32.xlu0 %v251, 24
        %v1024 = vpop.permute.xlu0 %1023
        %1025 = vrot.lane.b32.xlu0 %v253, 24
        %v1026 = vpop.permute.xlu0 %1025
        %1027 = vrot.lane.b32.xlu0 %v254, 24
        %v1028 = vpop.permute.xlu0 %1027
        %1029 = vrot.lane.b32.xlu0 %v256, 24
        %v1030 = vpop.permute.xlu0 %1029
        %1031 = vrot.lane.b32.xlu0 %v257, 24
        %v1032 = vpop.permute.xlu0 %1031
        %1033 = vrot.lane.b32.xlu0 %v259, 24
        %v1034 = vpop.permute.xlu0 %1033
        %1035 = vrot.lane.b32.xlu0 %v260, 24
        %v1036 = vpop.permute.xlu0 %1035
        %1037 = vrot.lane.b32.xlu0 %v262, 24
        %v1038 = vpop.permute.xlu0 %1037
        %1039 = vrot.lane.b32.xlu0 %v263, 24
        %v1040 = vpop.permute.xlu0 %1039
        %1041 = vrot.lane.b32.xlu0 %v265, 24
        %v1042 = vpop.permute.xlu0 %1041
        %1043 = vrot.lane.b32.xlu0 %v266, 24
        %v1044 = vpop.permute.xlu0 %1043
        %1045 = vrot.lane.b32.xlu0 %v268, 24
        %v1046 = vpop.permute.xlu0 %1045
        %1047 = vrot.lane.b32.xlu0 %v269, 24
        %v1048 = vpop.permute.xlu0 %1047
        %1049 = vrot.lane.b32.xlu0 %v271, 24
        %v1050 = vpop.permute.xlu0 %1049
        %1051 = vrot.lane.b32.xlu0 %v272, 24
        %v1052 = vpop.permute.xlu0 %1051
        %1053 = vrot.lane.b32.xlu0 %v274, 24
        %v1054 = vpop.permute.xlu0 %1053
        %1055 = vrot.lane.b32.xlu0 %v275, 24
        %v1056 = vpop.permute.xlu0 %1055
        %1089 = vrot.lane.b32.xlu0 %v338, 28
        %v1090 = vpop.permute.xlu0 %1089
        %1091 = vrot.lane.b32.xlu0 %v340, 28
        %v1092 = vpop.permute.xlu0 %1091
        %1093 = vrot.lane.b32.xlu0 %v343, 28
        %v1094 = vpop.permute.xlu0 %1093
        %1095 = vrot.lane.b32.xlu0 %v345, 28
        %v1096 = vpop.permute.xlu0 %1095
        %1097 = vrot.lane.b32.xlu0 %v348, 28
        %v1098 = vpop.permute.xlu0 %1097
        %1099 = vrot.lane.b32.xlu0 %v350, 28
        %v1100 = vpop.permute.xlu0 %1099
        %1101 = vrot.lane.b32.xlu0 %v353, 28
        %v1102 = vpop.permute.xlu0 %1101
        %1103 = vrot.lane.b32.xlu0 %v355, 28
        %v1104 = vpop.permute.xlu0 %1103
        %1105 = vrot.lane.b32.xlu0 %v358, 28
        %v1106 = vpop.permute.xlu0 %1105
        %1107 = vrot.lane.b32.xlu0 %v360, 28
        %v1108 = vpop.permute.xlu0 %1107
        %1109 = vrot.lane.b32.xlu0 %v363, 28
        %v1110 = vpop.permute.xlu0 %1109
        %1111 = vrot.lane.b32.xlu0 %v365, 28
        %v1112 = vpop.permute.xlu0 %1111
        %1113 = vrot.lane.b32.xlu0 %v368, 28
        %v1114 = vpop.permute.xlu0 %1113
        %1115 = vrot.lane.b32.xlu0 %v370, 28
        %v1116 = vpop.permute.xlu0 %1115
        %1117 = vrot.lane.b32.xlu0 %v373, 28
        %v1118 = vpop.permute.xlu0 %1117
        %1119 = vrot.lane.b32.xlu0 %v375, 28
        %v1120 = vpop.permute.xlu0 %1119
        %1121 = vrot.lane.b32.xlu0 %v378, 28
        %v1122 = vpop.permute.xlu0 %1121
        %1123 = vrot.lane.b32.xlu0 %v380, 28
        %v1124 = vpop.permute.xlu0 %1123
        %1125 = vrot.lane.b32.xlu0 %v383, 28
        %v1126 = vpop.permute.xlu0 %1125
        %1127 = vrot.lane.b32.xlu0 %v385, 28
        %v1128 = vpop.permute.xlu0 %1127
        %1129 = vrot.lane.b32.xlu0 %v388, 28
        %v1130 = vpop.permute.xlu0 %1129
        %1131 = vrot.lane.b32.xlu0 %v390, 28
        %v1132 = vpop.permute.xlu0 %1131
        %1133 = vrot.lane.b32.xlu0 %v393, 28
        %v1134 = vpop.permute.xlu0 %1133
        %1135 = vrot.lane.b32.xlu0 %v395, 28
        %v1136 = vpop.permute.xlu0 %1135
        %1137 = vrot.lane.b32.xlu0 %v398, 28
        %v1138 = vpop.permute.xlu0 %1137
        %1139 = vrot.lane.b32.xlu0 %v400, 28
        %v1140 = vpop.permute.xlu0 %1139
        %1141 = vrot.lane.b32.xlu0 %v403, 28
        %v1142 = vpop.permute.xlu0 %1141
        %1143 = vrot.lane.b32.xlu0 %v405, 28
        %v1144 = vpop.permute.xlu0 %1143
        %1145 = vrot.lane.b32.xlu0 %v492, 28
        %v1146 = vpop.permute.xlu0 %1145
        %1147 = vrot.lane.b32.xlu0 %v494, 28
        %v1148 = vpop.permute.xlu0 %1147
        %1149 = vrot.lane.b32.xlu0 %v505, 28
        %v1150 = vpop.permute.xlu0 %1149
        %1151 = vrot.lane.b32.xlu0 %v507, 28
        %v1152 = vpop.permute.xlu0 %1151
        %1185 = vrot.lane.b32.xlu0 %v419, 32
        %v1186 = vpop.permute.xlu0 %1185
        %1187 = vrot.lane.b32.xlu0 %v421, 32
        %v1188 = vpop.permute.xlu0 %1187
        %1189 = vrot.lane.b32.xlu0 %v424, 32
        %v1190 = vpop.permute.xlu0 %1189
        %1191 = vrot.lane.b32.xlu0 %v426, 32
        %v1192 = vpop.permute.xlu0 %1191
        %1193 = vrot.lane.b32.xlu0 %v429, 32
        %v1194 = vpop.permute.xlu0 %1193
        %1195 = vrot.lane.b32.xlu0 %v431, 32
        %v1196 = vpop.permute.xlu0 %1195
        %1197 = vrot.lane.b32.xlu0 %v434, 32
        %v1198 = vpop.permute.xlu0 %1197
        %1199 = vrot.lane.b32.xlu0 %v436, 32
        %v1200 = vpop.permute.xlu0 %1199
        %1201 = vrot.lane.b32.xlu0 %v439, 32
        %v1202 = vpop.permute.xlu0 %1201
        %1203 = vrot.lane.b32.xlu0 %v441, 32
        %v1204 = vpop.permute.xlu0 %1203
        %1205 = vrot.lane.b32.xlu0 %v444, 32
        %v1206 = vpop.permute.xlu0 %1205
        %1207 = vrot.lane.b32.xlu0 %v446, 32
        %v1208 = vpop.permute.xlu0 %1207
        %1209 = vrot.lane.b32.xlu0 %v449, 32
        %v1210 = vpop.permute.xlu0 %1209
        %1211 = vrot.lane.b32.xlu0 %v451, 32
        %v1212 = vpop.permute.xlu0 %1211
        %1213 = vrot.lane.b32.xlu0 %v454, 32
        %v1214 = vpop.permute.xlu0 %1213
        %1215 = vrot.lane.b32.xlu0 %v456, 32
        %v1216 = vpop.permute.xlu0 %1215
        %1217 = vrot.lane.b32.xlu0 %v459, 32
        %v1218 = vpop.permute.xlu0 %1217
        %1219 = vrot.lane.b32.xlu0 %v461, 32
        %v1220 = vpop.permute.xlu0 %1219
        %1221 = vrot.lane.b32.xlu0 %v464, 32
        %v1222 = vpop.permute.xlu0 %1221
        %1223 = vrot.lane.b32.xlu0 %v466, 32
        %v1224 = vpop.permute.xlu0 %1223
        %1225 = vrot.lane.b32.xlu0 %v469, 32
        %v1226 = vpop.permute.xlu0 %1225
        %1227 = vrot.lane.b32.xlu0 %v471, 32
        %v1228 = vpop.permute.xlu0 %1227
        %1229 = vrot.lane.b32.xlu0 %v474, 32
        %v1230 = vpop.permute.xlu0 %1229
        %1231 = vrot.lane.b32.xlu0 %v476, 32
        %v1232 = vpop.permute.xlu0 %1231
        %1233 = vrot.lane.b32.xlu0 %v479, 32
        %v1234 = vpop.permute.xlu0 %1233
        %1235 = vrot.lane.b32.xlu0 %v481, 32
        %v1236 = vpop.permute.xlu0 %1235
        %1237 = vrot.lane.b32.xlu0 %v484, 32
        %v1238 = vpop.permute.xlu0 %1237
        %1239 = vrot.lane.b32.xlu0 %v486, 32
        %v1240 = vpop.permute.xlu0 %1239
        %1241 = vrot.lane.b32.xlu0 %v497, 32
        %v1242 = vpop.permute.xlu0 %1241
        %1243 = vrot.lane.b32.xlu0 %v499, 32
        %v1244 = vpop.permute.xlu0 %1243
        %1245 = vrot.lane.b32.xlu0 %v510, 32
        %v1246 = vpop.permute.xlu0 %1245
        %1247 = vrot.lane.b32.xlu0 %v512, 32
        %v1248 = vpop.permute.xlu0 %1247
        %vm1281 = vcmask 31744
        %v1282 = vsel %vm1281, %v223, %v514
        %v1283 = vsel %vm1281, %v224, %v516
        %v1284 = vsel %vm1281, %v226, %v518
        %v1285 = vsel %vm1281, %v227, %v520
        %v1286 = vsel %vm1281, %v229, %v522
        %v1287 = vsel %vm1281, %v230, %v524
        %v1288 = vsel %vm1281, %v232, %v526
        %v1289 = vsel %vm1281, %v233, %v528
        %v1290 = vsel %vm1281, %v235, %v530
        %v1291 = vsel %vm1281, %v236, %v532
        %v1292 = vsel %vm1281, %v238, %v534
        %v1293 = vsel %vm1281, %v239, %v536
        %v1294 = vsel %vm1281, %v241, %v538
        %v1295 = vsel %vm1281, %v242, %v540
        %v1296 = vsel %vm1281, %v244, %v542
        %v1297 = vsel %vm1281, %v245, %v544
        %v1298 = vsel %vm1281, %v247, %v546
        %v1299 = vsel %vm1281, %v248, %v548
        %v1300 = vsel %vm1281, %v250, %v550
        %v1301 = vsel %vm1281, %v251, %v552
        %v1302 = vsel %vm1281, %v253, %v554
        %v1303 = vsel %vm1281, %v254, %v556
        %v1304 = vsel %vm1281, %v256, %v558
        %v1305 = vsel %vm1281, %v257, %v560
        %v1306 = vsel %vm1281, %v259, %v562
        %v1307 = vsel %vm1281, %v260, %v564
        %v1308 = vsel %vm1281, %v262, %v566
        %v1309 = vsel %vm1281, %v263, %v568
        %v1310 = vsel %vm1281, %v265, %v570
        %v1311 = vsel %vm1281, %v266, %v572
        %v1312 = vsel %vm1281, %v268, %v574
        %v1313 = vsel %vm1281, %v269, %v576
        %vm1314 = vcmask 64512
        %v1315 = vsel %vm1314, %v1282, %v610
        %v1316 = vsel %vm1314, %v1283, %v612
        %v1317 = vsel %vm1314, %v1284, %v614
        %v1318 = vsel %vm1314, %v1285, %v616
        %v1319 = vsel %vm1314, %v1286, %v618
        %v1320 = vsel %vm1314, %v1287, %v620
        %v1321 = vsel %vm1314, %v1288, %v622
        %v1322 = vsel %vm1314, %v1289, %v624
        %v1323 = vsel %vm1314, %v1290, %v626
        %v1324 = vsel %vm1314, %v1291, %v628
        %v1325 = vsel %vm1314, %v1292, %v630
        %v1326 = vsel %vm1314, %v1293, %v632
        %v1327 = vsel %vm1314, %v1294, %v634
        %v1328 = vsel %vm1314, %v1295, %v636
        %v1329 = vsel %vm1314, %v1296, %v638
        %v1330 = vsel %vm1314, %v1297, %v640
        %v1331 = vsel %vm1314, %v1298, %v642
        %v1332 = vsel %vm1314, %v1299, %v644
        %v1333 = vsel %vm1314, %v1300, %v646
        %v1334 = vsel %vm1314, %v1301, %v648
        %v1335 = vsel %vm1314, %v1302, %v650
        %v1336 = vsel %vm1314, %v1303, %v652
        %v1337 = vsel %vm1314, %v1304, %v654
        %v1338 = vsel %vm1314, %v1305, %v656
        %v1339 = vsel %vm1314, %v1306, %v658
        %v1340 = vsel %vm1314, %v1307, %v660
        %v1341 = vsel %vm1314, %v1308, %v662
        %v1342 = vsel %vm1314, %v1309, %v664
        %v1343 = vsel %vm1314, %v1310, %v666
        %v1344 = vsel %vm1314, %v1311, %v668
        %v1345 = vsel %vm1314, %v1312, %v670
        %v1346 = vsel %vm1314, %v1313, %v672
        %vm1347 = vcmask 97280
        %v1348 = vsel %vm1347, %v1315, %v706
        %v1349 = vsel %vm1347, %v1316, %v708
        %v1350 = vsel %vm1347, %v1317, %v710
        %v1351 = vsel %vm1347, %v1318, %v712
        %v1352 = vsel %vm1347, %v1319, %v714
        %v1353 = vsel %vm1347, %v1320, %v716
        %v1354 = vsel %vm1347, %v1321, %v718
        %v1355 = vsel %vm1347, %v1322, %v720
        %v1356 = vsel %vm1347, %v1323, %v722
        %v1357 = vsel %vm1347, %v1324, %v724
        %v1358 = vsel %vm1347, %v1325, %v726
        %v1359 = vsel %vm1347, %v1326, %v728
        %v1360 = vsel %vm1347, %v1327, %v730
        %v1361 = vsel %vm1347, %v1328, %v732
        %v1362 = vsel %vm1347, %v1329, %v734
        %v1363 = vsel %vm1347, %v1330, %v736
        %v1364 = vsel %vm1347, %v1331, %v738
        %v1365 = vsel %vm1347, %v1332, %v740
        %v1366 = vsel %vm1347, %v1333, %v742
        %v1367 = vsel %vm1347, %v1334, %v744
        %v1368 = vsel %vm1347, %v1335, %v746
        %v1369 = vsel %vm1347, %v1336, %v748
        %v1370 = vsel %vm1347, %v1337, %v750
        %v1371 = vsel %vm1347, %v1338, %v752
        %v1372 = vsel %vm1347, %v1339, %v754
        %v1373 = vsel %vm1347, %v1340, %v756
        %v1374 = vsel %vm1347, %v1341, %v758
        %v1375 = vsel %vm1347, %v1342, %v760
        %v1376 = vsel %vm1347, %v1343, %v762
        %v1377 = vsel %vm1347, %v1344, %v764
        %v1378 = vsel %vm1347, %v1345, %v766
        %v1379 = vsel %vm1347, %v1346, %v768
        %vm1380 = vcmask 130048
        %v1381 = vsel %vm1380, %v1348, %v802
        %v1382 = vsel %vm1380, %v1349, %v804
        %v1383 = vsel %vm1380, %v1350, %v806
        %v1384 = vsel %vm1380, %v1351, %v808
        %v1385 = vsel %vm1380, %v1352, %v810
        %v1386 = vsel %vm1380, %v1353, %v812
        %v1387 = vsel %vm1380, %v1354, %v814
        %v1388 = vsel %vm1380, %v1355, %v816
        %v1389 = vsel %vm1380, %v1356, %v818
        %v1390 = vsel %vm1380, %v1357, %v820
        %v1391 = vsel %vm1380, %v1358, %v822
        %v1392 = vsel %vm1380, %v1359, %v824
        %v1393 = vsel %vm1380, %v1360, %v826
        %v1394 = vsel %vm1380, %v1361, %v828
        %v1395 = vsel %vm1380, %v1362, %v830
        %v1396 = vsel %vm1380, %v1363, %v832
        %v1397 = vsel %vm1380, %v1364, %v834
        %v1398 = vsel %vm1380, %v1365, %v836
        %v1399 = vsel %vm1380, %v1366, %v838
        %v1400 = vsel %vm1380, %v1367, %v840
        %v1401 = vsel %vm1380, %v1368, %v842
        %v1402 = vsel %vm1380, %v1369, %v844
        %v1403 = vsel %vm1380, %v1370, %v846
        %v1404 = vsel %vm1380, %v1371, %v848
        %v1405 = vsel %vm1380, %v1372, %v850
        %v1406 = vsel %vm1380, %v1373, %v852
        %v1407 = vsel %vm1380, %v1374, %v854
        %v1408 = vsel %vm1380, %v1375, %v856
        %v1409 = vsel %vm1380, %v1376, %v858
        %v1410 = vsel %vm1380, %v1377, %v860
        %v1411 = vsel %vm1380, %v1378, %v862
        %v1412 = vsel %vm1380, %v1379, %v864
        %vm1413 = vcmask 162816
        %v1414 = vsel %vm1413, %v1381, %v898
        %v1415 = vsel %vm1413, %v1382, %v900
        %v1416 = vsel %vm1413, %v1383, %v902
        %v1417 = vsel %vm1413, %v1384, %v904
        %v1418 = vsel %vm1413, %v1385, %v906
        %v1419 = vsel %vm1413, %v1386, %v908
        %v1420 = vsel %vm1413, %v1387, %v910
        %v1421 = vsel %vm1413, %v1388, %v912
        %v1422 = vsel %vm1413, %v1389, %v914
        %v1423 = vsel %vm1413, %v1390, %v916
        %v1424 = vsel %vm1413, %v1391, %v918
        %v1425 = vsel %vm1413, %v1392, %v920
        %v1426 = vsel %vm1413, %v1393, %v922
        %v1427 = vsel %vm1413, %v1394, %v924
        %v1428 = vsel %vm1413, %v1395, %v926
        %v1429 = vsel %vm1413, %v1396, %v928
        %v1430 = vsel %vm1413, %v1397, %v930
        %v1431 = vsel %vm1413, %v1398, %v932
        %v1432 = vsel %vm1413, %v1399, %v934
        %v1433 = vsel %vm1413, %v1400, %v936
        %v1434 = vsel %vm1413, %v1401, %v938
        %v1435 = vsel %vm1413, %v1402, %v940
        %v1436 = vsel %vm1413, %v1403, %v942
        %v1437 = vsel %vm1413, %v1404, %v944
        %v1438 = vsel %vm1413, %v1405, %v946
        %v1439 = vsel %vm1413, %v1406, %v948
        %v1440 = vsel %vm1413, %v1407, %v950
        %v1441 = vsel %vm1413, %v1408, %v952
        %v1442 = vsel %vm1413, %v1409, %v954
        %v1443 = vsel %vm1413, %v1410, %v956
        %v1444 = vsel %vm1413, %v1411, %v958
        %v1445 = vsel %vm1413, %v1412, %v960
        %vm1446 = vcmask 195584
        %v1447 = vsel %vm1446, %v1414, %v994
        %v1448 = vsel %vm1446, %v1415, %v996
        %v1449 = vsel %vm1446, %v1416, %v998
        %v1450 = vsel %vm1446, %v1417, %v1000
        %v1451 = vsel %vm1446, %v1418, %v1002
        %v1452 = vsel %vm1446, %v1419, %v1004
        %v1453 = vsel %vm1446, %v1420, %v1006
        %v1454 = vsel %vm1446, %v1421, %v1008
        %v1455 = vsel %vm1446, %v1422, %v1010
        %v1456 = vsel %vm1446, %v1423, %v1012
        %v1457 = vsel %vm1446, %v1424, %v1014
        %v1458 = vsel %vm1446, %v1425, %v1016
        %v1459 = vsel %vm1446, %v1426, %v1018
        %v1460 = vsel %vm1446, %v1427, %v1020
        %v1461 = vsel %vm1446, %v1428, %v1022
        %v1462 = vsel %vm1446, %v1429, %v1024
        %v1463 = vsel %vm1446, %v1430, %v1026
        %v1464 = vsel %vm1446, %v1431, %v1028
        %v1465 = vsel %vm1446, %v1432, %v1030
        %v1466 = vsel %vm1446, %v1433, %v1032
        %v1467 = vsel %vm1446, %v1434, %v1034
        %v1468 = vsel %vm1446, %v1435, %v1036
        %v1469 = vsel %vm1446, %v1436, %v1038
        %v1470 = vsel %vm1446, %v1437, %v1040
        %v1471 = vsel %vm1446, %v1438, %v1042
        %v1472 = vsel %vm1446, %v1439, %v1044
        %v1473 = vsel %vm1446, %v1440, %v1046
        %v1474 = vsel %vm1446, %v1441, %v1048
        %v1475 = vsel %vm1446, %v1442, %v1050
        %v1476 = vsel %vm1446, %v1443, %v1052
        %v1477 = vsel %vm1446, %v1444, %v1054
        %v1478 = vsel %vm1446, %v1445, %v1056
        %vm1479 = vcmask 228352
        %v1480 = vsel %vm1479, %v1447, %v1090
        %v1481 = vsel %vm1479, %v1448, %v1092
        %v1482 = vsel %vm1479, %v1449, %v1094
        %v1483 = vsel %vm1479, %v1450, %v1096
        %v1484 = vsel %vm1479, %v1451, %v1098
        %v1485 = vsel %vm1479, %v1452, %v1100
        %v1486 = vsel %vm1479, %v1453, %v1102
        %v1487 = vsel %vm1479, %v1454, %v1104
        %v1488 = vsel %vm1479, %v1455, %v1106
        %v1489 = vsel %vm1479, %v1456, %v1108
        %v1490 = vsel %vm1479, %v1457, %v1110
        %v1491 = vsel %vm1479, %v1458, %v1112
        %v1492 = vsel %vm1479, %v1459, %v1114
        %v1493 = vsel %vm1479, %v1460, %v1116
        %v1494 = vsel %vm1479, %v1461, %v1118
        %v1495 = vsel %vm1479, %v1462, %v1120
        %v1496 = vsel %vm1479, %v1463, %v1122
        %v1497 = vsel %vm1479, %v1464, %v1124
        %v1498 = vsel %vm1479, %v1465, %v1126
        %v1499 = vsel %vm1479, %v1466, %v1128
        %v1500 = vsel %vm1479, %v1467, %v1130
        %v1501 = vsel %vm1479, %v1468, %v1132
        %v1502 = vsel %vm1479, %v1469, %v1134
        %v1503 = vsel %vm1479, %v1470, %v1136
        %v1504 = vsel %vm1479, %v1471, %v1138
        %v1505 = vsel %vm1479, %v1472, %v1140
        %v1506 = vsel %vm1479, %v1473, %v1142
        %v1507 = vsel %vm1479, %v1474, %v1144
        %v1508 = vsel %vm1479, %v1475, %v1146
        %v1509 = vsel %vm1479, %v1476, %v1148
        %v1510 = vsel %vm1479, %v1477, %v1150
        %v1511 = vsel %vm1479, %v1478, %v1152
        %vm1512 = vcmask 261120
        %v1513 = vsel %vm1512, %v1480, %v1186
        %v1514 = vsel %vm1512, %v1481, %v1188
        %v1515 = vsel %vm1512, %v1482, %v1190
        %v1516 = vsel %vm1512, %v1483, %v1192
        %v1517 = vsel %vm1512, %v1484, %v1194
        %v1518 = vsel %vm1512, %v1485, %v1196
        %v1519 = vsel %vm1512, %v1486, %v1198
        %v1520 = vsel %vm1512, %v1487, %v1200
        %v1521 = vsel %vm1512, %v1488, %v1202
        %v1522 = vsel %vm1512, %v1489, %v1204
        %v1523 = vsel %vm1512, %v1490, %v1206
        %v1524 = vsel %vm1512, %v1491, %v1208
        %v1525 = vsel %vm1512, %v1492, %v1210
        %v1526 = vsel %vm1512, %v1493, %v1212
        %v1527 = vsel %vm1512, %v1494, %v1214
        %v1528 = vsel %vm1512, %v1495, %v1216
        %v1529 = vsel %vm1512, %v1496, %v1218
        %v1530 = vsel %vm1512, %v1497, %v1220
        %v1531 = vsel %vm1512, %v1498, %v1222
        %v1532 = vsel %vm1512, %v1499, %v1224
        %v1533 = vsel %vm1512, %v1500, %v1226
        %v1534 = vsel %vm1512, %v1501, %v1228
        %v1535 = vsel %vm1512, %v1502, %v1230
        %v1536 = vsel %vm1512, %v1503, %v1232
        %v1537 = vsel %vm1512, %v1504, %v1234
        %v1538 = vsel %vm1512, %v1505, %v1236
        %v1539 = vsel %vm1512, %v1506, %v1238
        %v1540 = vsel %vm1512, %v1507, %v1240
        %v1541 = vsel %vm1512, %v1508, %v1242
        %v1542 = vsel %vm1512, %v1509, %v1244
        %v1543 = vsel %vm1512, %v1510, %v1246
        %v1544 = vsel %vm1512, %v1511, %v1248
        %v1545 = vld [vmem:[%s1] sm:$0xff]
        %v1546 = vld [vmem:[%s1 + $0x8] sm:$0xff]
        %v1547 = vld [vmem:[%s1 + $0x10] sm:$0xff]
        %v1548 = vld [vmem:[%s1 + $0x18] sm:$0xff]
        %v1549 = vld [vmem:[%s1 + $0x20] sm:$0xf]
        %vm1550 = vcmask 293888
        %v1552 = vsel %vm1550, %v1513, 0
        %v1555 = vsel %vm1550, %v1514, 0
        %v1558 = vsel %vm1550, %v1515, 0
        %v1561 = vsel %vm1550, %v1516, 0
        %v1564 = vsel %vm1550, %v1517, 0
        %v1567 = vsel %vm1550, %v1518, 0
        %v1570 = vsel %vm1550, %v1519, 0
        %v1573 = vsel %vm1550, %v1520, 0
        %v1576 = vsel %vm1550, %v1521, 0
        %v1579 = vsel %vm1550, %v1522, 0
        %v1582 = vsel %vm1550, %v1523, 0
        %v1585 = vsel %vm1550, %v1524, 0
        %v1588 = vsel %vm1550, %v1525, 0
        %v1591 = vsel %vm1550, %v1526, 0
        %v1594 = vsel %vm1550, %v1527, 0
        %v1597 = vsel %vm1550, %v1528, 0
        %v1600 = vsel %vm1550, %v1529, 0
        %v1603 = vsel %vm1550, %v1530, 0
        %v1606 = vsel %vm1550, %v1531, 0
        %v1609 = vsel %vm1550, %v1532, 0
        %v1612 = vsel %vm1550, %v1533, 0
        %v1615 = vsel %vm1550, %v1534, 0
        %v1618 = vsel %vm1550, %v1535, 0
        %v1621 = vsel %vm1550, %v1536, 0
        %v1624 = vsel %vm1550, %v1537, 0
        %v1627 = vsel %vm1550, %v1538, 0
        %v1630 = vsel %vm1550, %v1539, 0
        %v1633 = vsel %vm1550, %v1540, 0
        %v1636 = vsel %vm1550, %v1541, 0
        %v1639 = vsel %vm1550, %v1542, 0
        %v1642 = vsel %vm1550, %v1543, 0
        %v1645 = vsel %vm1550, %v1544, 0
        %vm1647 = vcmask 1043456
        %v1649 = vsel %vm1647, %v1549, 0
        %1651 = vmatprep.subr.mxu0 0.0
        %1652 = vmatpush1.msra.mxu0 %v1545
        %1653 = vmatprep.subr.mxu0 0.0
        %1654 = vmatpush1.msra.mxu0 %v1546
        %1655 = vmatprep.subr.mxu0 0.0
        %1656 = vmatpush1.msra.mxu0 %v1547
        %1657 = vmatprep.subr.mxu0 0.0
        %1658 = vmatpush1.msra.mxu0 %v1548
        %1659 = vmatprep.subr.mxu0 0.0
        %1660 = vmatpush1.msra.mxu0 %v1649
        %1661 = vmatprep.subr.mxu0 0.0
        %1662 = vmatpush1.msra.mxu0 0.0
        %1663 = vmatprep.subr.mxu0 0.0
        %1664 = vmatpush1.msra.mxu0 0.0
        %1665 = vmatprep.subr.mxu0 0.0
        %1666 = vmatpush1.msra.mxu0 0.0
        %1667 = vmatprep.subr.mxu0 0.0
        %1668 = vmatpush1.msra.mxu0 0.0
        %1669 = vmatprep.subr.mxu0 0.0
        %1670 = vmatpush1.msra.mxu0 0.0
        %1671 = vmatprep.subr.mxu0 0.0
        %1672 = vmatpush1.msra.mxu0 0.0
        %1673 = vmatprep.subr.mxu0 0.0
        %1674 = vmatpush1.msra.mxu0 0.0
        %1675 = vmatprep.subr.mxu0 0.0
        %1676 = vmatpush1.msra.mxu0 0.0
        %1677 = vmatprep.subr.mxu0 0.0
        %1678 = vmatpush1.msra.mxu0 0.0
        %1679 = vmatprep.subr.mxu0 0.0
        %1680 = vmatpush1.msra.mxu0 0.0
        %1681 = vmatprep.subr.mxu0 0.0
        %1682 = vmatpush1.msra.mxu0 0.0
        %1683 = vmatprep.subr.mxu0 0.0
        %1684 = vmatpush1.msra.mxu0 0.0
        %1685 = vmatprep.subr.mxu0 0.0
        %1686 = vmatpush1.msra.mxu0 0.0
        %1687 = vmatprep.subr.mxu0 0.0
        %1688 = vmatpush1.msra.mxu0 0.0
        %1689 = vmatprep.subr.mxu0 0.0
        %1690 = vmatpush1.msra.mxu0 0.0
        %1691 = vmatprep.subr.mxu0 0.0
        %1692 = vmatpush1.msra.mxu0 0.0
        %1693 = vmatprep.subr.mxu0 0.0
        %1694 = vmatpush1.msra.mxu0 0.0
        %1695 = vmatprep.subr.mxu0 0.0
        %1696 = vmatpush1.msra.mxu0 0.0
        %1697 = vmatprep.subr.mxu0 0.0
        %1698 = vmatpush1.msra.mxu0 0.0
        %1699 = vmatprep.subr.mxu0 0.0
        %1700 = vmatpush1.msra.mxu0 0.0
        %1701 = vmatprep.subr.mxu0 0.0
        %1702 = vmatpush1.msra.mxu0 0.0
        %1703 = vmatprep.subr.mxu0 0.0
        %1704 = vmatpush1.msra.mxu0 0.0
        %1705 = vmatprep.subr.mxu0 0.0
        %1706 = vmatpush1.msra.mxu0 0.0
        %1707 = vmatprep.subr.mxu0 0.0
        %1708 = vmatpush1.msra.mxu0 0.0
        %1709 = vmatprep.subr.mxu0 0.0
        %1710 = vmatpush1.msra.mxu0 0.0
        %1711 = vmatprep.subr.mxu0 0.0
        %1712 = vmatpush1.msra.mxu0 0.0
        %1713 = vmatprep.subr.mxu0 0.0
        %1714 = vmatpush1.msra.mxu0 0.0
        %1715 = vmatprep.mubr.f32.mxu0 0.0
        %1716 = vmatmul.mubr.f32.gmra.mrb[0].mxu0 %v1552
        %v1717 = vpop.f32.mrb[0].mxu0
        %v1718 = vadd.f32 0.0, %v1717
        %v1719 = vpop.f32.mrb[0].mxu0
        %1720 = vmatprep.mubr.f32.mxu0 0.0
        %1721 = vmatmul.mubr.f32.gmra.mrb[0].mxu0 %v1555
        %v1722 = vpop.f32.mrb[0].mxu0
        %v1723 = vadd.f32 0.0, %v1722
        %v1724 = vpop.f32.mrb[0].mxu0
        %1725 = vmatprep.mubr.f32.mxu0 0.0
        %1726 = vmatmul.mubr.f32.gmra.mrb[0].mxu0 %v1558
        %v1727 = vpop.f32.mrb[0].mxu0
        %v1728 = vadd.f32 0.0, %v1727
        %v1729 = vpop.f32.mrb[0].mxu0
        %1730 = vmatprep.mubr.f32.mxu0 0.0
        %1731 = vmatmul.mubr.f32.gmra.mrb[0].mxu0 %v1561
        %v1732 = vpop.f32.mrb[0].mxu0
        %v1733 = vadd.f32 0.0, %v1732
        %v1734 = vpop.f32.mrb[0].mxu0
        %1735 = vmatprep.mubr.f32.mxu0 0.0
        %1736 = vmatmul.mubr.f32.gmra.mrb[0].mxu0 %v1564
        %v1737 = vpop.f32.mrb[0].mxu0
        %v1738 = vadd.f32 0.0, %v1737
        %v1739 = vpop.f32.mrb[0].mxu0
        %1740 = vmatprep.mubr.f32.mxu0 0.0
        %1741 = vmatmul.mubr.f32.gmra.mrb[0].mxu0 %v1567
        %v1742 = vpop.f32.mrb[0].mxu0
        %v1743 = vadd.f32 0.0, %v1742
        %v1744 = vpop.f32.mrb[0].mxu0
        %1745 = vmatprep.mubr.f32.mxu0 0.0
        %1746 = vmatmul.mubr.f32.gmra.mrb[0].mxu0 %v1570
        %v1747 = vpop.f32.mrb[0].mxu0
        %v1748 = vadd.f32 0.0, %v1747
        %v1749 = vpop.f32.mrb[0].mxu0
        %1750 = vmatprep.mubr.f32.mxu0 0.0
        %1751 = vmatmul.mubr.f32.gmra.mrb[0].mxu0 %v1573
        %v1752 = vpop.f32.mrb[0].mxu0
        %v1753 = vadd.f32 0.0, %v1752
        %v1754 = vpop.f32.mrb[0].mxu0
        %1755 = vmatprep.mubr.f32.mxu0 0.0
        %1756 = vmatmul.mubr.f32.gmra.mrb[0].mxu0 %v1576
        %v1757 = vpop.f32.mrb[0].mxu0
        %v1758 = vadd.f32 0.0, %v1757
        %v1759 = vpop.f32.mrb[0].mxu0
        %1760 = vmatprep.mubr.f32.mxu0 0.0
        %1761 = vmatmul.mubr.f32.gmra.mrb[0].mxu0 %v1579
        %v1762 = vpop.f32.mrb[0].mxu0
        %v1763 = vadd.f32 0.0, %v1762
        %v1764 = vpop.f32.mrb[0].mxu0
        %1765 = vmatprep.mubr.f32.mxu0 0.0
        %1766 = vmatmul.mubr.f32.gmra.mrb[0].mxu0 %v1582
        %v1767 = vpop.f32.mrb[0].mxu0
        %v1768 = vadd.f32 0.0, %v1767
        %v1769 = vpop.f32.mrb[0].mxu0
        %1770 = vmatprep.mubr.f32.mxu0 0.0
        %1771 = vmatmul.mubr.f32.gmra.mrb[0].mxu0 %v1585
        %v1772 = vpop.f32.mrb[0].mxu0
        %v1773 = vadd.f32 0.0, %v1772
        %v1774 = vpop.f32.mrb[0].mxu0
        %1775 = vmatprep.mubr.f32.mxu0 0.0
        %1776 = vmatmul.mubr.f32.gmra.mrb[0].mxu0 %v1588
        %v1777 = vpop.f32.mrb[0].mxu0
        %v1778 = vadd.f32 0.0, %v1777
        %v1779 = vpop.f32.mrb[0].mxu0
        %1780 = vmatprep.mubr.f32.mxu0 0.0
        %1781 = vmatmul.mubr.f32.gmra.mrb[0].mxu0 %v1591
        %v1782 = vpop.f32.mrb[0].mxu0
        %v1783 = vadd.f32 0.0, %v1782
        %v1784 = vpop.f32.mrb[0].mxu0
        %1785 = vmatprep.mubr.f32.mxu0 0.0
        %1786 = vmatmul.mubr.f32.gmra.mrb[0].mxu0 %v1594
        %v1787 = vpop.f32.mrb[0].mxu0
        %v1788 = vadd.f32 0.0, %v1787
        %v1789 = vpop.f32.mrb[0].mxu0
        %1790 = vmatprep.mubr.f32.mxu0 0.0
        %1791 = vmatmul.mubr.f32.gmra.mrb[0].mxu0 %v1597
        %v1792 = vpop.f32.mrb[0].mxu0
        %v1793 = vadd.f32 0.0, %v1792
        %v1794 = vpop.f32.mrb[0].mxu0
        %1795 = vmatprep.mubr.f32.mxu0 0.0
        %1796 = vmatmul.mubr.f32.gmra.mrb[0].mxu0 %v1600
        %v1797 = vpop.f32.mrb[0].mxu0
        %v1798 = vadd.f32 0.0, %v1797
        %v1799 = vpop.f32.mrb[0].mxu0
        %1800 = vmatprep.mubr.f32.mxu0 0.0
        %1801 = vmatmul.mubr.f32.gmra.mrb[0].mxu0 %v1603
        %v1802 = vpop.f32.mrb[0].mxu0
        %v1803 = vadd.f32 0.0, %v1802
        %v1804 = vpop.f32.mrb[0].mxu0
        %1805 = vmatprep.mubr.f32.mxu0 0.0
        %1806 = vmatmul.mubr.f32.gmra.mrb[0].mxu0 %v1606
        %v1807 = vpop.f32.mrb[0].mxu0
        %v1808 = vadd.f32 0.0, %v1807
        %v1809 = vpop.f32.mrb[0].mxu0
        %1810 = vmatprep.mubr.f32.mxu0 0.0
        %1811 = vmatmul.mubr.f32.gmra.mrb[0].mxu0 %v1609
        %v1812 = vpop.f32.mrb[0].mxu0
        %v1813 = vadd.f32 0.0, %v1812
        %v1814 = vpop.f32.mrb[0].mxu0
        %1815 = vmatprep.mubr.f32.mxu0 0.0
        %1816 = vmatmul.mubr.f32.gmra.mrb[0].mxu0 %v1612
        %v1817 = vpop.f32.mrb[0].mxu0
        %v1818 = vadd.f32 0.0, %v1817
        %v1819 = vpop.f32.mrb[0].mxu0
        %1820 = vmatprep.mubr.f32.mxu0 0.0
        %1821 = vmatmul.mubr.f32.gmra.mrb[0].mxu0 %v1615
        %v1822 = vpop.f32.mrb[0].mxu0
        %v1823 = vadd.f32 0.0, %v1822
        %v1824 = vpop.f32.mrb[0].mxu0
        %1825 = vmatprep.mubr.f32.mxu0 0.0
        %1826 = vmatmul.mubr.f32.gmra.mrb[0].mxu0 %v1618
        %v1827 = vpop.f32.mrb[0].mxu0
        %v1828 = vadd.f32 0.0, %v1827
        %v1829 = vpop.f32.mrb[0].mxu0
        %1830 = vmatprep.mubr.f32.mxu0 0.0
        %1831 = vmatmul.mubr.f32.gmra.mrb[0].mxu0 %v1621
        %v1832 = vpop.f32.mrb[0].mxu0
        %v1833 = vadd.f32 0.0, %v1832
        %v1834 = vpop.f32.mrb[0].mxu0
        %1835 = vmatprep.mubr.f32.mxu0 0.0
        %1836 = vmatmul.mubr.f32.gmra.mrb[0].mxu0 %v1624
        %v1837 = vpop.f32.mrb[0].mxu0
        %v1838 = vadd.f32 0.0, %v1837
        %v1839 = vpop.f32.mrb[0].mxu0
        %1840 = vmatprep.mubr.f32.mxu0 0.0
        %1841 = vmatmul.mubr.f32.gmra.mrb[0].mxu0 %v1627
        %v1842 = vpop.f32.mrb[0].mxu0
        %v1843 = vadd.f32 0.0, %v1842
        %v1844 = vpop.f32.mrb[0].mxu0
        %1845 = vmatprep.mubr.f32.mxu0 0.0
        %1846 = vmatmul.mubr.f32.gmra.mrb[0].mxu0 %v1630
        %v1847 = vpop.f32.mrb[0].mxu0
        %v1848 = vadd.f32 0.0, %v1847
        %v1849 = vpop.f32.mrb[0].mxu0
        %1850 = vmatprep.mubr.f32.mxu0 0.0
        %1851 = vmatmul.mubr.f32.gmra.mrb[0].mxu0 %v1633
        %v1852 = vpop.f32.mrb[0].mxu0
        %v1853 = vadd.f32 0.0, %v1852
        %v1854 = vpop.f32.mrb[0].mxu0
        %1855 = vmatprep.mubr.f32.mxu0 0.0
        %1856 = vmatmul.mubr.f32.gmra.mrb[0].mxu0 %v1636
        %v1857 = vpop.f32.mrb[0].mxu0
        %v1858 = vadd.f32 0.0, %v1857
        %v1859 = vpop.f32.mrb[0].mxu0
        %1860 = vmatprep.mubr.f32.mxu0 0.0
        %1861 = vmatmul.mubr.f32.gmra.mrb[0].mxu0 %v1639
        %v1862 = vpop.f32.mrb[0].mxu0
        %v1863 = vadd.f32 0.0, %v1862
        %v1864 = vpop.f32.mrb[0].mxu0
        %1865 = vmatprep.mubr.f32.mxu0 0.0
        %1866 = vmatmul.mubr.f32.gmra.mrb[0].mxu0 %v1642
        %v1867 = vpop.f32.mrb[0].mxu0
        %v1868 = vadd.f32 0.0, %v1867
        %v1869 = vpop.f32.mrb[0].mxu0
        %1870 = vmatprep.mubr.f32.mxu0 0.0
        %1871 = vmatmul.mubr.f32.gmra.mrb[0].mxu0 %v1645
        %v1872 = vpop.f32.mrb[0].mxu0
        %v1873 = vadd.f32 0.0, %v1872
        %v1874 = vpop.f32.mrb[0].mxu0
        %1875 = vdwg.mxu0
        %v1876 = vsel %vm1314, %v1718, 0.0
        %v1877 = vsel %vm1314, %v1723, 0.0
        %v1878 = vadd.f32 %v1876, %v1877
        %v1879 = vsel %vm1314, %v1728, 0.0
        %v1880 = vadd.f32 %v1878, %v1879
        %v1881 = vsel %vm1314, %v1733, 0.0
        %v1882 = vadd.f32 %v1880, %v1881
        %v1883 = vsel %vm1314, %v1738, 0.0
        %v1884 = vadd.f32 %v1882, %v1883
        %v1885 = vsel %vm1314, %v1743, 0.0
        %v1886 = vadd.f32 %v1884, %v1885
        %v1887 = vsel %vm1314, %v1748, 0.0
        %v1888 = vadd.f32 %v1886, %v1887
        %v1889 = vsel %vm1314, %v1753, 0.0
        %v1890 = vadd.f32 %v1888, %v1889
        %v1891 = vsel %vm1314, %v1758, 0.0
        %v1892 = vadd.f32 %v1890, %v1891
        %v1893 = vsel %vm1314, %v1763, 0.0
        %v1894 = vadd.f32 %v1892, %v1893
        %v1895 = vsel %vm1314, %v1768, 0.0
        %v1896 = vadd.f32 %v1894, %v1895
        %v1897 = vsel %vm1314, %v1773, 0.0
        %v1898 = vadd.f32 %v1896, %v1897
        %v1899 = vsel %vm1314, %v1778, 0.0
        %v1900 = vadd.f32 %v1898, %v1899
        %v1901 = vsel %vm1314, %v1783, 0.0
        %v1902 = vadd.f32 %v1900, %v1901
        %v1903 = vsel %vm1314, %v1788, 0.0
        %v1904 = vadd.f32 %v1902, %v1903
        %v1905 = vsel %vm1314, %v1793, 0.0
        %v1906 = vadd.f32 %v1904, %v1905
        %v1907 = vsel %vm1314, %v1798, 0.0
        %v1908 = vadd.f32 %v1906, %v1907
        %v1909 = vsel %vm1314, %v1803, 0.0
        %v1910 = vadd.f32 %v1908, %v1909
        %v1911 = vsel %vm1314, %v1808, 0.0
        %v1912 = vadd.f32 %v1910, %v1911
        %v1913 = vsel %vm1314, %v1813, 0.0
        %v1914 = vadd.f32 %v1912, %v1913
        %v1915 = vsel %vm1314, %v1818, 0.0
        %v1916 = vadd.f32 %v1914, %v1915
        %v1917 = vsel %vm1314, %v1823, 0.0
        %v1918 = vadd.f32 %v1916, %v1917
        %v1919 = vsel %vm1314, %v1828, 0.0
        %v1920 = vadd.f32 %v1918, %v1919
        %v1921 = vsel %vm1314, %v1833, 0.0
        %v1922 = vadd.f32 %v1920, %v1921
        %v1923 = vsel %vm1314, %v1838, 0.0
        %v1924 = vadd.f32 %v1922, %v1923
        %v1925 = vsel %vm1314, %v1843, 0.0
        %v1926 = vadd.f32 %v1924, %v1925
        %v1927 = vsel %vm1314, %v1848, 0.0
        %v1928 = vadd.f32 %v1926, %v1927
        %v1929 = vsel %vm1314, %v1853, 0.0
        %v1930 = vadd.f32 %v1928, %v1929
        %v1931 = vsel %vm1314, %v1858, 0.0
        %v1932 = vadd.f32 %v1930, %v1931
        %v1933 = vsel %vm1314, %v1863, 0.0
        %v1934 = vadd.f32 %v1932, %v1933
        %v1935 = vsel %vm1314, %v1868, 0.0
        %v1936 = vadd.f32 %v1934, %v1935
        %v1937 = vsel %vm1314, %v1873, 0.0
        %v1938 = vadd.f32 %v1936, %v1937
        %v1939 = vrot.slane %v1938, 4
        %v1940 = vadd.f32 %v1938, %v1939
        %v1941 = vrot.slane %v1940, 2
        %v1942 = vadd.f32 %v1940, %v1941
        %v1943 = vrot.slane %v1942, 1
        %v1944 = vadd.f32 %v1942, %v1943
        %v1945 = vmul.f32 %v1718, %v1718
        %v1946 = vmul.f32 %v1723, %v1723
        %v1947 = vmul.f32 %v1728, %v1728
        %v1948 = vmul.f32 %v1733, %v1733
        %v1949 = vmul.f32 %v1738, %v1738
        %v1950 = vmul.f32 %v1743, %v1743
        %v1951 = vmul.f32 %v1748, %v1748
        %v1952 = vmul.f32 %v1753, %v1753
        %v1953 = vmul.f32 %v1758, %v1758
        %v1954 = vmul.f32 %v1763, %v1763
        %v1955 = vmul.f32 %v1768, %v1768
        %v1956 = vmul.f32 %v1773, %v1773
        %v1957 = vmul.f32 %v1778, %v1778
        %v1958 = vmul.f32 %v1783, %v1783
        %v1959 = vmul.f32 %v1788, %v1788
        %v1960 = vmul.f32 %v1793, %v1793
        %v1961 = vmul.f32 %v1798, %v1798
        %v1962 = vmul.f32 %v1803, %v1803
        %v1963 = vmul.f32 %v1808, %v1808
        %v1964 = vmul.f32 %v1813, %v1813
        %v1965 = vmul.f32 %v1818, %v1818
        %v1966 = vmul.f32 %v1823, %v1823
        %v1967 = vmul.f32 %v1828, %v1828
        %v1968 = vmul.f32 %v1833, %v1833
        %v1969 = vmul.f32 %v1838, %v1838
        %v1970 = vmul.f32 %v1843, %v1843
        %v1971 = vmul.f32 %v1848, %v1848
        %v1972 = vmul.f32 %v1853, %v1853
        %v1973 = vmul.f32 %v1858, %v1858
        %v1974 = vmul.f32 %v1863, %v1863
        %v1975 = vmul.f32 %v1868, %v1868
        %v1976 = vmul.f32 %v1873, %v1873
        %v1977 = vsel %vm1314, %v1945, 0.0
        %v1978 = vsel %vm1314, %v1946, 0.0
        %v1979 = vadd.f32 %v1977, %v1978
        %v1980 = vsel %vm1314, %v1947, 0.0
        %v1981 = vadd.f32 %v1979, %v1980
        %v1982 = vsel %vm1314, %v1948, 0.0
        %v1983 = vadd.f32 %v1981, %v1982
        %v1984 = vsel %vm1314, %v1949, 0.0
        %v1985 = vadd.f32 %v1983, %v1984
        %v1986 = vsel %vm1314, %v1950, 0.0
        %v1987 = vadd.f32 %v1985, %v1986
        %v1988 = vsel %vm1314, %v1951, 0.0
        %v1989 = vadd.f32 %v1987, %v1988
        %v1990 = vsel %vm1314, %v1952, 0.0
        %v1991 = vadd.f32 %v1989, %v1990
        %v1992 = vsel %vm1314, %v1953, 0.0
        %v1993 = vadd.f32 %v1991, %v1992
        %v1994 = vsel %vm1314, %v1954, 0.0
        %v1995 = vadd.f32 %v1993, %v1994
        %v1996 = vsel %vm1314, %v1955, 0.0
        %v1997 = vadd.f32 %v1995, %v1996
        %v1998 = vsel %vm1314, %v1956, 0.0
        %v1999 = vadd.f32 %v1997, %v1998
        %v2000 = vsel %vm1314, %v1957, 0.0
        %v2001 = vadd.f32 %v1999, %v2000
        %v2002 = vsel %vm1314, %v1958, 0.0
        %v2003 = vadd.f32 %v2001, %v2002
        %v2004 = vsel %vm1314, %v1959, 0.0
        %v2005 = vadd.f32 %v2003, %v2004
        %v2006 = vsel %vm1314, %v1960, 0.0
        %v2007 = vadd.f32 %v2005, %v2006
        %v2008 = vsel %vm1314, %v1961, 0.0
        %v2009 = vadd.f32 %v2007, %v2008
        %v2010 = vsel %vm1314, %v1962, 0.0
        %v2011 = vadd.f32 %v2009, %v2010
        %v2012 = vsel %vm1314, %v1963, 0.0
        %v2013 = vadd.f32 %v2011, %v2012
        %v2014 = vsel %vm1314, %v1964, 0.0
        %v2015 = vadd.f32 %v2013, %v2014
        %v2016 = vsel %vm1314, %v1965, 0.0
        %v2017 = vadd.f32 %v2015, %v2016
        %v2018 = vsel %vm1314, %v1966, 0.0
        %v2019 = vadd.f32 %v2017, %v2018
        %v2020 = vsel %vm1314, %v1967, 0.0
        %v2021 = vadd.f32 %v2019, %v2020
        %v2022 = vsel %vm1314, %v1968, 0.0
        %v2023 = vadd.f32 %v2021, %v2022
        %v2024 = vsel %vm1314, %v1969, 0.0
        %v2025 = vadd.f32 %v2023, %v2024
        %v2026 = vsel %vm1314, %v1970, 0.0
        %v2027 = vadd.f32 %v2025, %v2026
        %v2028 = vsel %vm1314, %v1971, 0.0
        %v2029 = vadd.f32 %v2027, %v2028
        %v2030 = vsel %vm1314, %v1972, 0.0
        %v2031 = vadd.f32 %v2029, %v2030
        %v2032 = vsel %vm1314, %v1973, 0.0
        %v2033 = vadd.f32 %v2031, %v2032
        %v2034 = vsel %vm1314, %v1974, 0.0
        %v2035 = vadd.f32 %v2033, %v2034
        %v2036 = vsel %vm1314, %v1975, 0.0
        %v2037 = vadd.f32 %v2035, %v2036
        %v2038 = vsel %vm1314, %v1976, 0.0
        %v2039 = vadd.f32 %v2037, %v2038
        %v2040 = vrot.slane %v2039, 4
        %v2041 = vadd.f32 %v2039, %v2040
        %v2042 = vrot.slane %v2041, 2
        %v2043 = vadd.f32 %v2041, %v2042
        %v2044 = vrot.slane %v2043, 1
        %v2045 = vadd.f32 %v2043, %v2044
        %v2046 = vmul.f32 %v1944, 0.00390625
        %v2047 = vmul.f32 %v2045, 0.00390625
        %v2048 = vmul.f32 %v2046, %v2046
        %v2049 = vsub.f32 %v2047, %v2048
        %v2050 = vmax.f32 %v2049, 0.0
        %v2051 = vsub.f32 %v1718, %v2046
        %v2052 = vsub.f32 %v1723, %v2046
        %v2053 = vsub.f32 %v1728, %v2046
        %v2054 = vsub.f32 %v1733, %v2046
        %v2055 = vsub.f32 %v1738, %v2046
        %v2056 = vsub.f32 %v1743, %v2046
        %v2057 = vsub.f32 %v1748, %v2046
        %v2058 = vsub.f32 %v1753, %v2046
        %v2059 = vsub.f32 %v1758, %v2046
        %v2060 = vsub.f32 %v1763, %v2046
        %v2061 = vsub.f32 %v1768, %v2046
        %v2062 = vsub.f32 %v1773, %v2046
        %v2063 = vsub.f32 %v1778, %v2046
        %v2064 = vsub.f32 %v1783, %v2046
        %v2065 = vsub.f32 %v1788, %v2046
        %v2066 = vsub.f32 %v1793, %v2046
        %v2067 = vsub.f32 %v1798, %v2046
        %v2068 = vsub.f32 %v1803, %v2046
        %v2069 = vsub.f32 %v1808, %v2046
        %v2070 = vsub.f32 %v1813, %v2046
        %v2071 = vsub.f32 %v1818, %v2046
        %v2072 = vsub.f32 %v1823, %v2046
        %v2073 = vsub.f32 %v1828, %v2046
        %v2074 = vsub.f32 %v1833, %v2046
        %v2075 = vsub.f32 %v1838, %v2046
        %v2076 = vsub.f32 %v1843, %v2046
        %v2077 = vsub.f32 %v1848, %v2046
        %v2078 = vsub.f32 %v1853, %v2046
        %v2079 = vsub.f32 %v1858, %v2046
        %v2080 = vsub.f32 %v1863, %v2046
        %v2081 = vsub.f32 %v1868, %v2046
        %v2082 = vsub.f32 %v1873, %v2046
        %v2083 = vadd.f32 %v2050, 1e-05
        %v2084 = vrsqrt.pop %v2083
        %v2085 = vmul.f32 %v2051, %v2084
        %v2086 = vmul.f32 %v2052, %v2084
        %v2087 = vmul.f32 %v2053, %v2084
        %v2088 = vmul.f32 %v2054, %v2084
        %v2089 = vmul.f32 %v2055, %v2084
        %v2090 = vmul.f32 %v2056, %v2084
        %v2091 = vmul.f32 %v2057, %v2084
        %v2092 = vmul.f32 %v2058, %v2084
        %v2093 = vmul.f32 %v2059, %v2084
        %v2094 = vmul.f32 %v2060, %v2084
        %v2095 = vmul.f32 %v2061, %v2084
        %v2096 = vmul.f32 %v2062, %v2084
        %v2097 = vmul.f32 %v2063, %v2084
        %v2098 = vmul.f32 %v2064, %v2084
        %v2099 = vmul.f32 %v2065, %v2084
        %v2100 = vmul.f32 %v2066, %v2084
        %v2101 = vmul.f32 %v2067, %v2084
        %v2102 = vmul.f32 %v2068, %v2084
        %v2103 = vmul.f32 %v2069, %v2084
        %v2104 = vmul.f32 %v2070, %v2084
        %v2105 = vmul.f32 %v2071, %v2084
        %v2106 = vmul.f32 %v2072, %v2084
        %v2107 = vmul.f32 %v2073, %v2084
        %v2108 = vmul.f32 %v2074, %v2084
        %v2109 = vmul.f32 %v2075, %v2084
        %v2110 = vmul.f32 %v2076, %v2084
        %v2111 = vmul.f32 %v2077, %v2084
        %v2112 = vmul.f32 %v2078, %v2084
        %v2113 = vmul.f32 %v2079, %v2084
        %v2114 = vmul.f32 %v2080, %v2084
        %v2115 = vmul.f32 %v2081, %v2084
        %v2116 = vmul.f32 %v2082, %v2084
        %v2117 = vmax.f32 %v2085, 0.0
        %v2118 = vmax.f32 %v2086, 0.0
        %v2119 = vmax.f32 %v2087, 0.0
        %v2120 = vmax.f32 %v2088, 0.0
        %v2121 = vmax.f32 %v2089, 0.0
        %v2122 = vmax.f32 %v2090, 0.0
        %v2123 = vmax.f32 %v2091, 0.0
        %v2124 = vmax.f32 %v2092, 0.0
        %v2125 = vmax.f32 %v2093, 0.0
        %v2126 = vmax.f32 %v2094, 0.0
        %v2127 = vmax.f32 %v2095, 0.0
        %v2128 = vmax.f32 %v2096, 0.0
        %v2129 = vmax.f32 %v2097, 0.0
        %v2130 = vmax.f32 %v2098, 0.0
        %v2131 = vmax.f32 %v2099, 0.0
        %v2132 = vmax.f32 %v2100, 0.0
        %v2133 = vmax.f32 %v2101, 0.0
        %v2134 = vmax.f32 %v2102, 0.0
        %v2135 = vmax.f32 %v2103, 0.0
        %v2136 = vmax.f32 %v2104, 0.0
        %v2137 = vmax.f32 %v2105, 0.0
        %v2138 = vmax.f32 %v2106, 0.0
        %v2139 = vmax.f32 %v2107, 0.0
        %v2140 = vmax.f32 %v2108, 0.0
        %v2141 = vmax.f32 %v2109, 0.0
        %v2142 = vmax.f32 %v2110, 0.0
        %v2143 = vmax.f32 %v2111, 0.0
        %v2144 = vmax.f32 %v2112, 0.0
        %v2145 = vmax.f32 %v2113, 0.0
        %v2146 = vmax.f32 %v2114, 0.0
        %v2147 = vmax.f32 %v2115, 0.0
        %v2148 = vmax.f32 %v2116, 0.0
        %2149 = vst.msk [vmem:[#allocation2] sm:$0xff] %vm1314, 0.0
        %2150 = vst.msk [vmem:[#allocation2 + $0x8] sm:$0xff] %vm1314, 0.0
        %vm2151 = vcmask 58368
        %2152 = vst.msk [vmem:[#allocation2 + $0x10] sm:$0x3] %vm2151, 0.0
        %s2153 = scalar_lea.vmem [#allocation2], 408
        %2154 = vst.msk [vmem:[%s2153] sm:$0xff] %vm1314, 0.0
        %2155 = vst.msk [vmem:[%s2153 + $0x8] sm:$0xff] %vm1314, 0.0
        %2156 = vst.msk [vmem:[%s2153 + $0x10] sm:$0x3] %vm2151, 0.0
        %s2157 = scalar_lea.vmem [#allocation2], 24
        %vm2158 = vcmask 57344
        %2159 = vst.msk [vmem:[%s2157] sm:$0x1] %vm2158, 0.0
        %2160 = vst.msk [vmem:[%s2157 + $0x18] sm:$0x1] %vm2158, 0.0
        %2161 = vst.msk [vmem:[%s2157 + $0x30] sm:$0x1] %vm2158, 0.0
        %2162 = vst.msk [vmem:[%s2157 + $0x48] sm:$0x1] %vm2158, 0.0
        %2163 = vst.msk [vmem:[%s2157 + $0x60] sm:$0x1] %vm2158, 0.0
        %2164 = vst.msk [vmem:[%s2157 + $0x78] sm:$0x1] %vm2158, 0.0
        %2165 = vst.msk [vmem:[%s2157 + $0x90] sm:$0x1] %vm2158, 0.0
        %2166 = vst.msk [vmem:[%s2157 + $0xa8] sm:$0x1] %vm2158, 0.0
        %2167 = vst.msk [vmem:[%s2157 + $0xc0] sm:$0x1] %vm2158, 0.0
        %2168 = vst.msk [vmem:[%s2157 + $0xd8] sm:$0x1] %vm2158, 0.0
        %2169 = vst.msk [vmem:[%s2157 + $0xf0] sm:$0x1] %vm2158, 0.0
        %2170 = vst.msk [vmem:[%s2157 + $0x108] sm:$0x1] %vm2158, 0.0
        %2171 = vst.msk [vmem:[%s2157 + $0x120] sm:$0x1] %vm2158, 0.0
        %2172 = vst.msk [vmem:[%s2157 + $0x138] sm:$0x1] %vm2158, 0.0
        %2173 = vst.msk [vmem:[%s2157 + $0x150] sm:$0x1] %vm2158, 0.0
        %2174 = vst.msk [vmem:[%s2157 + $0x168] sm:$0x1] %vm2158, 0.0
        %2175 = vst.msk [vmem:[%s2157 + $0x11] sm:$0x1] %vm2158, 0.0
        %2176 = vst.msk [vmem:[%s2157 + $0x29] sm:$0x1] %vm2158, 0.0
        %2177 = vst.msk [vmem:[%s2157 + $0x41] sm:$0x1] %vm2158, 0.0
        %2178 = vst.msk [vmem:[%s2157 + $0x59] sm:$0x1] %vm2158, 0.0
        %2179 = vst.msk [vmem:[%s2157 + $0x71] sm:$0x1] %vm2158, 0.0
        %2180 = vst.msk [vmem:[%s2157 + $0x89] sm:$0x1] %vm2158, 0.0
        %2181 = vst.msk [vmem:[%s2157 + $0xa1] sm:$0x1] %vm2158, 0.0
        %2182 = vst.msk [vmem:[%s2157 + $0xb9] sm:$0x1] %vm2158, 0.0
        %2183 = vst.msk [vmem:[%s2157 + $0xd1] sm:$0x1] %vm2158, 0.0
        %2184 = vst.msk [vmem:[%s2157 + $0xe9] sm:$0x1] %vm2158, 0.0
        %2185 = vst.msk [vmem:[%s2157 + $0x101] sm:$0x1] %vm2158, 0.0
        %2186 = vst.msk [vmem:[%s2157 + $0x119] sm:$0x1] %vm2158, 0.0
        %2187 = vst.msk [vmem:[%s2157 + $0x131] sm:$0x1] %vm2158, 0.0
        %2188 = vst.msk [vmem:[%s2157 + $0x149] sm:$0x1] %vm2158, 0.0
        %2189 = vst.msk [vmem:[%s2157 + $0x161] sm:$0x1] %vm2158, 0.0
        %2190 = vst.msk [vmem:[%s2157 + $0x179] sm:$0x1] %vm2158, 0.0
        %2191 = vst.msk [vmem:[%s2157 + $0x1] sm:$0xff] %vm1314, %v2117
        %2192 = vst.msk [vmem:[%s2157 + $0x9] sm:$0xff] %vm1314, %v2118
        %2193 = vst.msk [vmem:[%s2157 + $0x19] sm:$0xff] %vm1314, %v2119
        %2194 = vst.msk [vmem:[%s2157 + $0x21] sm:$0xff] %vm1314, %v2120
        %2195 = vst.msk [vmem:[%s2157 + $0x31] sm:$0xff] %vm1314, %v2121
        %2196 = vst.msk [vmem:[%s2157 + $0x39] sm:$0xff] %vm1314, %v2122
        %2197 = vst.msk [vmem:[%s2157 + $0x49] sm:$0xff] %vm1314, %v2123
        %2198 = vst.msk [vmem:[%s2157 + $0x51] sm:$0xff] %vm1314, %v2124
        %2199 = vst.msk [vmem:[%s2157 + $0x61] sm:$0xff] %vm1314, %v2125
        %2200 = vst.msk [vmem:[%s2157 + $0x69] sm:$0xff] %vm1314, %v2126
        %2201 = vst.msk [vmem:[%s2157 + $0x79] sm:$0xff] %vm1314, %v2127
        %2202 = vst.msk [vmem:[%s2157 + $0x81] sm:$0xff] %vm1314, %v2128
        %2203 = vst.msk [vmem:[%s2157 + $0x91] sm:$0xff] %vm1314, %v2129
        %2204 = vst.msk [vmem:[%s2157 + $0x99] sm:$0xff] %vm1314, %v2130
        %2205 = vst.msk [vmem:[%s2157 + $0xa9] sm:$0xff] %vm1314, %v2131
        %2206 = vst.msk [vmem:[%s2157 + $0xb1] sm:$0xff] %vm1314, %v2132
        %2207 = vst.msk [vmem:[%s2157 + $0xc1] sm:$0xff] %vm1314, %v2133
        %2208 = vst.msk [vmem:[%s2157 + $0xc9] sm:$0xff] %vm1314, %v2134
        %2209 = vst.msk [vmem:[%s2157 + $0xd9] sm:$0xff] %vm1314, %v2135
        %2210 = vst.msk [vmem:[%s2157 + $0xe1] sm:$0xff] %vm1314, %v2136
        %2211 = vst.msk [vmem:[%s2157 + $0xf1] sm:$0xff] %vm1314, %v2137
        %2212 = vst.msk [vmem:[%s2157 + $0xf9] sm:$0xff] %vm1314, %v2138
        %2213 = vst.msk [vmem:[%s2157 + $0x109] sm:$0xff] %vm1314, %v2139
        %2214 = vst.msk [vmem:[%s2157 + $0x111] sm:$0xff] %vm1314, %v2140
        %2215 = vst.msk [vmem:[%s2157 + $0x121] sm:$0xff] %vm1314, %v2141
        %2216 = vst.msk [vmem:[%s2157 + $0x129] sm:$0xff] %vm1314, %v2142
        %2217 = vst.msk [vmem:[%s2157 + $0x139] sm:$0xff] %vm1314, %v2143
        %2218 = vst.msk [vmem:[%s2157 + $0x141] sm:$0xff] %vm1314, %v2144
        %2219 = vst.msk [vmem:[%s2157 + $0x151] sm:$0xff] %vm1314, %v2145
        %2220 = vst.msk [vmem:[%s2157 + $0x159] sm:$0xff] %vm1314, %v2146
        %2221 = vst.msk [vmem:[%s2157 + $0x169] sm:$0xff] %vm1314, %v2147
        %2222 = vst.msk [vmem:[%s2157 + $0x171] sm:$0xff] %vm1314, %v2148
        %v2223 = vld [vmem:[#allocation2] sm:$0xff]
        %v2224 = vld [vmem:[#allocation2 + $0x8] sm:$0xff]
        %v2225 = vld [vmem:[#allocation2 + $0x10] sm:$0x3]
        %v2226 = vld [vmem:[#allocation2 + $0x18] sm:$0xff]
        %v2227 = vld [vmem:[#allocation2 + $0x20] sm:$0xff]
        %v2228 = vld [vmem:[#allocation2 + $0x28] sm:$0x3]
        %v2229 = vld [vmem:[#allocation2 + $0x30] sm:$0xff]
        %v2230 = vld [vmem:[#allocation2 + $0x38] sm:$0xff]
        %v2231 = vld [vmem:[#allocation2 + $0x40] sm:$0x3]
        %v2232 = vld [vmem:[#allocation2 + $0x48] sm:$0xff]
        %v2233 = vld [vmem:[#allocation2 + $0x50] sm:$0xff]
        %v2234 = vld [vmem:[#allocation2 + $0x58] sm:$0x3]
        %v2235 = vld [vmem:[#allocation2 + $0x60] sm:$0xff]
        %v2236 = vld [vmem:[#allocation2 + $0x68] sm:$0xff]
        %v2237 = vld [vmem:[#allocation2 + $0x70] sm:$0x3]
        %v2238 = vld [vmem:[#allocation2 + $0x78] sm:$0xff]
        %v2239 = vld [vmem:[#allocation2 + $0x80] sm:$0xff]
        %v2240 = vld [vmem:[#allocation2 + $0x88] sm:$0x3]
        %v2241 = vld [vmem:[#allocation2 + $0x90] sm:$0xff]
        %v2242 = vld [vmem:[#allocation2 + $0x98] sm:$0xff]
        %v2243 = vld [vmem:[#allocation2 + $0xa0] sm:$0x3]
        %v2244 = vld [vmem:[#allocation2 + $0xa8] sm:$0xff]
        %v2245 = vld [vmem:[#allocation2 + $0xb0] sm:$0xff]
        %v2246 = vld [vmem:[#allocation2 + $0xb8] sm:$0x3]
        %v2247 = vld [vmem:[#allocation2 + $0xc0] sm:$0xff]
        %v2248 = vld [vmem:[#allocation2 + $0xc8] sm:$0xff]
        %v2249 = vld [vmem:[#allocation2 + $0xd0] sm:$0x3]
        %v2250 = vld [vmem:[#allocation2 + $0xd8] sm:$0xff]
        %v2251 = vld [vmem:[#allocation2 + $0xe0] sm:$0xff]
        %v2252 = vld [vmem:[#allocation2 + $0xe8] sm:$0x3]
        %v2253 = vld [vmem:[#allocation2 + $0xf0] sm:$0xff]
        %v2254 = vld [vmem:[#allocation2 + $0xf8] sm:$0xff]
        %v2255 = vld [vmem:[#allocation2 + $0x100] sm:$0x3]
        %v2256 = vld [vmem:[#allocation2 + $0x108] sm:$0xff]
        %v2257 = vld [vmem:[#allocation2 + $0x110] sm:$0xff]
        %v2258 = vld [vmem:[#allocation2 + $0x118] sm:$0x3]
        %v2259 = vld [vmem:[#allocation2 + $0x120] sm:$0xff]
        %v2260 = vld [vmem:[#allocation2 + $0x128] sm:$0xff]
        %v2261 = vld [vmem:[#allocation2 + $0x130] sm:$0x3]
        %v2262 = vld [vmem:[#allocation2 + $0x138] sm:$0xff]
        %v2263 = vld [vmem:[#allocation2 + $0x140] sm:$0xff]
        %v2264 = vld [vmem:[#allocation2 + $0x148] sm:$0x3]
        %v2265 = vld [vmem:[#allocation2 + $0x150] sm:$0xff]
        %v2266 = vld [vmem:[#allocation2 + $0x158] sm:$0xff]
        %v2267 = vld [vmem:[#allocation2 + $0x160] sm:$0x3]
        %v2268 = vld [vmem:[#allocation2 + $0x168] sm:$0xff]
        %v2269 = vld [vmem:[#allocation2 + $0x170] sm:$0xff]
        %v2270 = vld [vmem:[#allocation2 + $0x178] sm:$0x3]
        %v2271 = vld [vmem:[#allocation2 + $0x180] sm:$0xff]
        %v2272 = vld [vmem:[#allocation2 + $0x188] sm:$0xff]
        %v2273 = vld [vmem:[#allocation2 + $0x190] sm:$0x3]
        %v2274 = vld [vmem:[#allocation2 + $0x198] sm:$0xff]
        %v2275 = vld [vmem:[#allocation2 + $0x1a0] sm:$0xff]
        %v2276 = vld [vmem:[#allocation2 + $0x1a8] sm:$0x3]
        %v2325 = vrot.slane %v2223, 1
        %v2326 = vrot.slane %v2224, 1
        %v2327 = vsel %vm325, %v2325, %v2326
        %v2328 = vrot.slane %v2225, 1
        %v2329 = vsel %vm325, %v2326, %v2328
        %v2330 = vrot.slane %v2226, 1
        %v2331 = vrot.slane %v2227, 1
        %v2332 = vsel %vm325, %v2330, %v2331
        %v2333 = vrot.slane %v2228, 1
        %v2334 = vsel %vm325, %v2331, %v2333
        %v2335 = vrot.slane %v2229, 1
        %v2336 = vrot.slane %v2230, 1
        %v2337 = vsel %vm325, %v2335, %v2336
        %v2338 = vrot.slane %v2231, 1
        %v2339 = vsel %vm325, %v2336, %v2338
        %v2340 = vrot.slane %v2232, 1
        %v2341 = vrot.slane %v2233, 1
        %v2342 = vsel %vm325, %v2340, %v2341
        %v2343 = vrot.slane %v2234, 1
        %v2344 = vsel %vm325, %v2341, %v2343
        %v2345 = vrot.slane %v2235, 1
        %v2346 = vrot.slane %v2236, 1
        %v2347 = vsel %vm325, %v2345, %v2346
        %v2348 = vrot.slane %v2237, 1
        %v2349 = vsel %vm325, %v2346, %v2348
        %v2350 = vrot.slane %v2238, 1
        %v2351 = vrot.slane %v2239, 1
        %v2352 = vsel %vm325, %v2350, %v2351
        %v2353 = vrot.slane %v2240, 1
        %v2354 = vsel %vm325, %v2351, %v2353
        %v2355 = vrot.slane %v2241, 1
        %v2356 = vrot.slane %v2242, 1
        %v2357 = vsel %vm325, %v2355, %v2356
        %v2358 = vrot.slane %v2243, 1
        %v2359 = vsel %vm325, %v2356, %v2358
        %v2360 = vrot.slane %v2244, 1
        %v2361 = vrot.slane %v2245, 1
        %v2362 = vsel %vm325, %v2360, %v2361
        %v2363 = vrot.slane %v2246, 1
        %v2364 = vsel %vm325, %v2361, %v2363
        %v2365 = vrot.slane %v2247, 1
        %v2366 = vrot.slane %v2248, 1
        %v2367 = vsel %vm325, %v2365, %v2366
        %v2368 = vrot.slane %v2249, 1
        %v2369 = vsel %vm325, %v2366, %v2368
        %v2370 = vrot.slane %v2250, 1
        %v2371 = vrot.slane %v2251, 1
        %v2372 = vsel %vm325, %v2370, %v2371
        %v2373 = vrot.slane %v2252, 1
        %v2374 = vsel %vm325, %v2371, %v2373
        %v2375 = vrot.slane %v2253, 1
        %v2376 = vrot.slane %v2254, 1
        %v2377 = vsel %vm325, %v2375, %v2376
        %v2378 = vrot.slane %v2255, 1
        %v2379 = vsel %vm325, %v2376, %v2378
        %v2380 = vrot.slane %v2256, 1
        %v2381 = vrot.slane %v2257, 1
        %v2382 = vsel %vm325, %v2380, %v2381
        %v2383 = vrot.slane %v2258, 1
        %v2384 = vsel %vm325, %v2381, %v2383
        %v2385 = vrot.slane %v2259, 1
        %v2386 = vrot.slane %v2260, 1
        %v2387 = vsel %vm325, %v2385, %v2386
        %v2388 = vrot.slane %v2261, 1
        %v2389 = vsel %vm325, %v2386, %v2388
        %v2390 = vrot.slane %v2262, 1
        %v2391 = vrot.slane %v2263, 1
        %v2392 = vsel %vm325, %v2390, %v2391
        %v2393 = vrot.slane %v2264, 1
        %v2394 = vsel %vm325, %v2391, %v2393
        %v2395 = vrot.slane %v2265, 1
        %v2396 = vrot.slane %v2266, 1
        %v2397 = vsel %vm325, %v2395, %v2396
        %v2398 = vrot.slane %v2267, 1
        %v2399 = vsel %vm325, %v2396, %v2398
        %v2400 = vrot.slane %v2268, 1
        %v2401 = vrot.slane %v2269, 1
        %v2402 = vsel %vm325, %v2400, %v2401
        %v2403 = vrot.slane %v2270, 1
        %v2404 = vsel %vm325, %v2401, %v2403
        %v2405 = vrot.slane %v2223, 2
        %v2406 = vrot.slane %v2224, 2
        %v2407 = vsel %vm406, %v2405, %v2406
        %v2408 = vrot.slane %v2225, 2
        %v2409 = vsel %vm406, %v2406, %v2408
        %v2410 = vrot.slane %v2226, 2
        %v2411 = vrot.slane %v2227, 2
        %v2412 = vsel %vm406, %v2410, %v2411
        %v2413 = vrot.slane %v2228, 2
        %v2414 = vsel %vm406, %v2411, %v2413
        %v2415 = vrot.slane %v2229, 2
        %v2416 = vrot.slane %v2230, 2
        %v2417 = vsel %vm406, %v2415, %v2416
        %v2418 = vrot.slane %v2231, 2
        %v2419 = vsel %vm406, %v2416, %v2418
        %v2420 = vrot.slane %v2232, 2
        %v2421 = vrot.slane %v2233, 2
        %v2422 = vsel %vm406, %v2420, %v2421
        %v2423 = vrot.slane %v2234, 2
        %v2424 = vsel %vm406, %v2421, %v2423
        %v2425 = vrot.slane %v2235, 2
        %v2426 = vrot.slane %v2236, 2
        %v2427 = vsel %vm406, %v2425, %v2426
        %v2428 = vrot.slane %v2237, 2
        %v2429 = vsel %vm406, %v2426, %v2428
        %v2430 = vrot.slane %v2238, 2
        %v2431 = vrot.slane %v2239, 2
        %v2432 = vsel %vm406, %v2430, %v2431
        %v2433 = vrot.slane %v2240, 2
        %v2434 = vsel %vm406, %v2431, %v2433
        %v2435 = vrot.slane %v2241, 2
        %v2436 = vrot.slane %v2242, 2
        %v2437 = vsel %vm406, %v2435, %v2436
        %v2438 = vrot.slane %v2243, 2
        %v2439 = vsel %vm406, %v2436, %v2438
        %v2440 = vrot.slane %v2244, 2
        %v2441 = vrot.slane %v2245, 2
        %v2442 = vsel %vm406, %v2440, %v2441
        %v2443 = vrot.slane %v2246, 2
        %v2444 = vsel %vm406, %v2441, %v2443
        %v2445 = vrot.slane %v2247, 2
        %v2446 = vrot.slane %v2248, 2
        %v2447 = vsel %vm406, %v2445, %v2446
        %v2448 = vrot.slane %v2249, 2
        %v2449 = vsel %vm406, %v2446, %v2448
        %v2450 = vrot.slane %v2250, 2
        %v2451 = vrot.slane %v2251, 2
        %v2452 = vsel %vm406, %v2450, %v2451
        %v2453 = vrot.slane %v2252, 2
        %v2454 = vsel %vm406, %v2451, %v2453
        %v2455 = vrot.slane %v2253, 2
        %v2456 = vrot.slane %v2254, 2
        %v2457 = vsel %vm406, %v2455, %v2456
        %v2458 = vrot.slane %v2255, 2
        %v2459 = vsel %vm406, %v2456, %v2458
        %v2460 = vrot.slane %v2256, 2
        %v2461 = vrot.slane %v2257, 2
        %v2462 = vsel %vm406, %v2460, %v2461
        %v2463 = vrot.slane %v2258, 2
        %v2464 = vsel %vm406, %v2461, %v2463
        %v2465 = vrot.slane %v2259, 2
        %v2466 = vrot.slane %v2260, 2
        %v2467 = vsel %vm406, %v2465, %v2466
        %v2468 = vrot.slane %v2261, 2
        %v2469 = vsel %vm406, %v2466, %v2468
        %v2470 = vrot.slane %v2262, 2
        %v2471 = vrot.slane %v2263, 2
        %v2472 = vsel %vm406, %v2470, %v2471
        %v2473 = vrot.slane %v2264, 2
        %v2474 = vsel %vm406, %v2471, %v2473
        %v2475 = vrot.slane %v2265, 2
        %v2476 = vrot.slane %v2266, 2
        %v2477 = vsel %vm406, %v2475, %v2476
        %v2478 = vrot.slane %v2267, 2
        %v2479 = vsel %vm406, %v2476, %v2478
        %v2480 = vrot.slane %v2268, 2
        %v2481 = vrot.slane %v2269, 2
        %v2482 = vsel %vm406, %v2480, %v2481
        %v2483 = vrot.slane %v2270, 2
        %v2484 = vsel %vm406, %v2481, %v2483
        %v2488 = vrot.slane %v2271, 1
        %v2489 = vrot.slane %v2272, 1
        %v2490 = vsel %vm325, %v2488, %v2489
        %v2491 = vrot.slane %v2273, 1
        %v2492 = vsel %vm325, %v2489, %v2491
        %v2493 = vrot.slane %v2271, 2
        %v2494 = vrot.slane %v2272, 2
        %v2495 = vsel %vm406, %v2493, %v2494
        %v2496 = vrot.slane %v2273, 2
        %v2497 = vsel %vm406, %v2494, %v2496
        %v2501 = vrot.slane %v2274, 1
        %v2502 = vrot.slane %v2275, 1
        %v2503 = vsel %vm325, %v2501, %v2502
        %v2504 = vrot.slane %v2276, 1
        %v2505 = vsel %vm325, %v2502, %v2504
        %v2506 = vrot.slane %v2274, 2
        %v2507 = vrot.slane %v2275, 2
        %v2508 = vsel %vm406, %v2506, %v2507
        %v2509 = vrot.slane %v2276, 2
        %v2510 = vsel %vm406, %v2507, %v2509
        %2511 = vrot.lane.b32.xlu0 %v2327, 8
        %v2512 = vpop.permute.xlu0 %2511
        %2513 = vrot.lane.b32.xlu0 %v2329, 8
        %v2514 = vpop.permute.xlu0 %2513
        %2515 = vrot.lane.b32.xlu0 %v2332, 8
        %v2516 = vpop.permute.xlu0 %2515
        %2517 = vrot.lane.b32.xlu0 %v2334, 8
        %v2518 = vpop.permute.xlu0 %2517
        %2519 = vrot.lane.b32.xlu0 %v2337, 8
        %v2520 = vpop.permute.xlu0 %2519
        %2521 = vrot.lane.b32.xlu0 %v2339, 8
        %v2522 = vpop.permute.xlu0 %2521
        %2523 = vrot.lane.b32.xlu0 %v2342, 8
        %v2524 = vpop.permute.xlu0 %2523
        %2525 = vrot.lane.b32.xlu0 %v2344, 8
        %v2526 = vpop.permute.xlu0 %2525
        %2527 = vrot.lane.b32.xlu0 %v2347, 8
        %v2528 = vpop.permute.xlu0 %2527
        %2529 = vrot.lane.b32.xlu0 %v2349, 8
        %v2530 = vpop.permute.xlu0 %2529
        %2531 = vrot.lane.b32.xlu0 %v2352, 8
        %v2532 = vpop.permute.xlu0 %2531
        %2533 = vrot.lane.b32.xlu0 %v2354, 8
        %v2534 = vpop.permute.xlu0 %2533
        %2535 = vrot.lane.b32.xlu0 %v2357, 8
        %v2536 = vpop.permute.xlu0 %2535
        %2537 = vrot.lane.b32.xlu0 %v2359, 8
        %v2538 = vpop.permute.xlu0 %2537
        %2539 = vrot.lane.b32.xlu0 %v2362, 8
        %v2540 = vpop.permute.xlu0 %2539
        %2541 = vrot.lane.b32.xlu0 %v2364, 8
        %v2542 = vpop.permute.xlu0 %2541
        %2543 = vrot.lane.b32.xlu0 %v2367, 8
        %v2544 = vpop.permute.xlu0 %2543
        %2545 = vrot.lane.b32.xlu0 %v2369, 8
        %v2546 = vpop.permute.xlu0 %2545
        %2547 = vrot.lane.b32.xlu0 %v2372, 8
        %v2548 = vpop.permute.xlu0 %2547
        %2549 = vrot.lane.b32.xlu0 %v2374, 8
        %v2550 = vpop.permute.xlu0 %2549
        %2551 = vrot.lane.b32.xlu0 %v2377, 8
        %v2552 = vpop.permute.xlu0 %2551
        %2553 = vrot.lane.b32.xlu0 %v2379, 8
        %v2554 = vpop.permute.xlu0 %2553
        %2555 = vrot.lane.b32.xlu0 %v2382, 8
        %v2556 = vpop.permute.xlu0 %2555
        %2557 = vrot.lane.b32.xlu0 %v2384, 8
        %v2558 = vpop.permute.xlu0 %2557
        %2559 = vrot.lane.b32.xlu0 %v2387, 8
        %v2560 = vpop.permute.xlu0 %2559
        %2561 = vrot.lane.b32.xlu0 %v2389, 8
        %v2562 = vpop.permute.xlu0 %2561
        %2563 = vrot.lane.b32.xlu0 %v2392, 8
        %v2564 = vpop.permute.xlu0 %2563
        %2565 = vrot.lane.b32.xlu0 %v2394, 8
        %v2566 = vpop.permute.xlu0 %2565
        %2567 = vrot.lane.b32.xlu0 %v2397, 8
        %v2568 = vpop.permute.xlu0 %2567
        %2569 = vrot.lane.b32.xlu0 %v2399, 8
        %v2570 = vpop.permute.xlu0 %2569
        %2571 = vrot.lane.b32.xlu0 %v2402, 8
        %v2572 = vpop.permute.xlu0 %2571
        %2573 = vrot.lane.b32.xlu0 %v2404, 8
        %v2574 = vpop.permute.xlu0 %2573
        %2607 = vrot.lane.b32.xlu0 %v2407, 16
        %v2608 = vpop.permute.xlu0 %2607
        %2609 = vrot.lane.b32.xlu0 %v2409, 16
        %v2610 = vpop.permute.xlu0 %2609
        %2611 = vrot.lane.b32.xlu0 %v2412, 16
        %v2612 = vpop.permute.xlu0 %2611
        %2613 = vrot.lane.b32.xlu0 %v2414, 16
        %v2614 = vpop.permute.xlu0 %2613
        %2615 = vrot.lane.b32.xlu0 %v2417, 16
        %v2616 = vpop.permute.xlu0 %2615
        %2617 = vrot.lane.b32.xlu0 %v2419, 16
        %v2618 = vpop.permute.xlu0 %2617
        %2619 = vrot.lane.b32.xlu0 %v2422, 16
        %v2620 = vpop.permute.xlu0 %2619
        %2621 = vrot.lane.b32.xlu0 %v2424, 16
        %v2622 = vpop.permute.xlu0 %2621
        %2623 = vrot.lane.b32.xlu0 %v2427, 16
        %v2624 = vpop.permute.xlu0 %2623
        %2625 = vrot.lane.b32.xlu0 %v2429, 16
        %v2626 = vpop.permute.xlu0 %2625
        %2627 = vrot.lane.b32.xlu0 %v2432, 16
        %v2628 = vpop.permute.xlu0 %2627
        %2629 = vrot.lane.b32.xlu0 %v2434, 16
        %v2630 = vpop.permute.xlu0 %2629
        %2631 = vrot.lane.b32.xlu0 %v2437, 16
        %v2632 = vpop.permute.xlu0 %2631
        %2633 = vrot.lane.b32.xlu0 %v2439, 16
        %v2634 = vpop.permute.xlu0 %2633
        %2635 = vrot.lane.b32.xlu0 %v2442, 16
        %v2636 = vpop.permute.xlu0 %2635
        %2637 = vrot.lane.b32.xlu0 %v2444, 16
        %v2638 = vpop.permute.xlu0 %2637
        %2639 = vrot.lane.b32.xlu0 %v2447, 16
        %v2640 = vpop.permute.xlu0 %2639
        %2641 = vrot.lane.b32.xlu0 %v2449, 16
        %v2642 = vpop.permute.xlu0 %2641
        %2643 = vrot.lane.b32.xlu0 %v2452, 16
        %v2644 = vpop.permute.xlu0 %2643
        %2645 = vrot.lane.b32.xlu0 %v2454, 16
        %v2646 = vpop.permute.xlu0 %2645
        %2647 = vrot.lane.b32.xlu0 %v2457, 16
        %v2648 = vpop.permute.xlu0 %2647
        %2649 = vrot.lane.b32.xlu0 %v2459, 16
        %v2650 = vpop.permute.xlu0 %2649
        %2651 = vrot.lane.b32.xlu0 %v2462, 16
        %v2652 = vpop.permute.xlu0 %2651
        %2653 = vrot.lane.b32.xlu0 %v2464, 16
        %v2654 = vpop.permute.xlu0 %2653
        %2655 = vrot.lane.b32.xlu0 %v2467, 16
        %v2656 = vpop.permute.xlu0 %2655
        %2657 = vrot.lane.b32.xlu0 %v2469, 16
        %v2658 = vpop.permute.xlu0 %2657
        %2659 = vrot.lane.b32.xlu0 %v2472, 16
        %v2660 = vpop.permute.xlu0 %2659
        %2661 = vrot.lane.b32.xlu0 %v2474, 16
        %v2662 = vpop.permute.xlu0 %2661
        %2663 = vrot.lane.b32.xlu0 %v2477, 16
        %v2664 = vpop.permute.xlu0 %2663
        %2665 = vrot.lane.b32.xlu0 %v2479, 16
        %v2666 = vpop.permute.xlu0 %2665
        %2667 = vrot.lane.b32.xlu0 %v2482, 16
        %v2668 = vpop.permute.xlu0 %2667
        %2669 = vrot.lane.b32.xlu0 %v2484, 16
        %v2670 = vpop.permute.xlu0 %2669
        %2703 = vrot.lane.b32.xlu0 %v2226, 24
        %v2704 = vpop.permute.xlu0 %2703
        %2705 = vrot.lane.b32.xlu0 %v2227, 24
        %v2706 = vpop.permute.xlu0 %2705
        %2707 = vrot.lane.b32.xlu0 %v2229, 24
        %v2708 = vpop.permute.xlu0 %2707
        %2709 = vrot.lane.b32.xlu0 %v2230, 24
        %v2710 = vpop.permute.xlu0 %2709
        %2711 = vrot.lane.b32.xlu0 %v2232, 24
        %v2712 = vpop.permute.xlu0 %2711
        %2713 = vrot.lane.b32.xlu0 %v2233, 24
        %v2714 = vpop.permute.xlu0 %2713
        %2715 = vrot.lane.b32.xlu0 %v2235, 24
        %v2716 = vpop.permute.xlu0 %2715
        %2717 = vrot.lane.b32.xlu0 %v2236, 24
        %v2718 = vpop.permute.xlu0 %2717
        %2719 = vrot.lane.b32.xlu0 %v2238, 24
        %v2720 = vpop.permute.xlu0 %2719
        %2721 = vrot.lane.b32.xlu0 %v2239, 24
        %v2722 = vpop.permute.xlu0 %2721
        %2723 = vrot.lane.b32.xlu0 %v2241, 24
        %v2724 = vpop.permute.xlu0 %2723
        %2725 = vrot.lane.b32.xlu0 %v2242, 24
        %v2726 = vpop.permute.xlu0 %2725
        %2727 = vrot.lane.b32.xlu0 %v2244, 24
        %v2728 = vpop.permute.xlu0 %2727
        %2729 = vrot.lane.b32.xlu0 %v2245, 24
        %v2730 = vpop.permute.xlu0 %2729
        %2731 = vrot.lane.b32.xlu0 %v2247, 24
        %v2732 = vpop.permute.xlu0 %2731
        %2733 = vrot.lane.b32.xlu0 %v2248, 24
        %v2734 = vpop.permute.xlu0 %2733
        %2735 = vrot.lane.b32.xlu0 %v2250, 24
        %v2736 = vpop.permute.xlu0 %2735
        %2737 = vrot.lane.b32.xlu0 %v2251, 24
        %v2738 = vpop.permute.xlu0 %2737
        %2739 = vrot.lane.b32.xlu0 %v2253, 24
        %v2740 = vpop.permute.xlu0 %2739
        %2741 = vrot.lane.b32.xlu0 %v2254, 24
        %v2742 = vpop.permute.xlu0 %2741
        %2743 = vrot.lane.b32.xlu0 %v2256, 24
        %v2744 = vpop.permute.xlu0 %2743
        %2745 = vrot.lane.b32.xlu0 %v2257, 24
        %v2746 = vpop.permute.xlu0 %2745
        %2747 = vrot.lane.b32.xlu0 %v2259, 24
        %v2748 = vpop.permute.xlu0 %2747
        %2749 = vrot.lane.b32.xlu0 %v2260, 24
        %v2750 = vpop.permute.xlu0 %2749
        %2751 = vrot.lane.b32.xlu0 %v2262, 24
        %v2752 = vpop.permute.xlu0 %2751
        %2753 = vrot.lane.b32.xlu0 %v2263, 24
        %v2754 = vpop.permute.xlu0 %2753
        %2755 = vrot.lane.b32.xlu0 %v2265, 24
        %v2756 = vpop.permute.xlu0 %2755
        %2757 = vrot.lane.b32.xlu0 %v2266, 24
        %v2758 = vpop.permute.xlu0 %2757
        %2759 = vrot.lane.b32.xlu0 %v2268, 24
        %v2760 = vpop.permute.xlu0 %2759
        %2761 = vrot.lane.b32.xlu0 %v2269, 24
        %v2762 = vpop.permute.xlu0 %2761
        %2763 = vrot.lane.b32.xlu0 %v2271, 24
        %v2764 = vpop.permute.xlu0 %2763
        %2765 = vrot.lane.b32.xlu0 %v2272, 24
        %v2766 = vpop.permute.xlu0 %2765
        %2799 = vrot.lane.b32.xlu0 %v2332, 32
        %v2800 = vpop.permute.xlu0 %2799
        %2801 = vrot.lane.b32.xlu0 %v2334, 32
        %v2802 = vpop.permute.xlu0 %2801
        %2803 = vrot.lane.b32.xlu0 %v2337, 32
        %v2804 = vpop.permute.xlu0 %2803
        %2805 = vrot.lane.b32.xlu0 %v2339, 32
        %v2806 = vpop.permute.xlu0 %2805
        %2807 = vrot.lane.b32.xlu0 %v2342, 32
        %v2808 = vpop.permute.xlu0 %2807
        %2809 = vrot.lane.b32.xlu0 %v2344, 32
        %v2810 = vpop.permute.xlu0 %2809
        %2811 = vrot.lane.b32.xlu0 %v2347, 32
        %v2812 = vpop.permute.xlu0 %2811
        %2813 = vrot.lane.b32.xlu0 %v2349, 32
        %v2814 = vpop.permute.xlu0 %2813
        %2815 = vrot.lane.b32.xlu0 %v2352, 32
        %v2816 = vpop.permute.xlu0 %2815
        %2817 = vrot.lane.b32.xlu0 %v2354, 32
        %v2818 = vpop.permute.xlu0 %2817
        %2819 = vrot.lane.b32.xlu0 %v2357, 32
        %v2820 = vpop.permute.xlu0 %2819
        %2821 = vrot.lane.b32.xlu0 %v2359, 32
        %v2822 = vpop.permute.xlu0 %2821
        %2823 = vrot.lane.b32.xlu0 %v2362, 32
        %v2824 = vpop.permute.xlu0 %2823
        %2825 = vrot.lane.b32.xlu0 %v2364, 32
        %v2826 = vpop.permute.xlu0 %2825
        %2827 = vrot.lane.b32.xlu0 %v2367, 32
        %v2828 = vpop.permute.xlu0 %2827
        %2829 = vrot.lane.b32.xlu0 %v2369, 32
        %v2830 = vpop.permute.xlu0 %2829
        %2831 = vrot.lane.b32.xlu0 %v2372, 32
        %v2832 = vpop.permute.xlu0 %2831
        %2833 = vrot.lane.b32.xlu0 %v2374, 32
        %v2834 = vpop.permute.xlu0 %2833
        %2835 = vrot.lane.b32.xlu0 %v2377, 32
        %v2836 = vpop.permute.xlu0 %2835
        %2837 = vrot.lane.b32.xlu0 %v2379, 32
        %v2838 = vpop.permute.xlu0 %2837
        %2839 = vrot.lane.b32.xlu0 %v2382, 32
        %v2840 = vpop.permute.xlu0 %2839
        %2841 = vrot.lane.b32.xlu0 %v2384, 32
        %v2842 = vpop.permute.xlu0 %2841
        %2843 = vrot.lane.b32.xlu0 %v2387, 32
        %v2844 = vpop.permute.xlu0 %2843
        %2845 = vrot.lane.b32.xlu0 %v2389, 32
        %v2846 = vpop.permute.xlu0 %2845
        %2847 = vrot.lane.b32.xlu0 %v2392, 32
        %v2848 = vpop.permute.xlu0 %2847
        %2849 = vrot.lane.b32.xlu0 %v2394, 32
        %v2850 = vpop.permute.xlu0 %2849
        %2851 = vrot.lane.b32.xlu0 %v2397, 32
        %v2852 = vpop.permute.xlu0 %2851
        %2853 = vrot.lane.b32.xlu0 %v2399, 32
        %v2854 = vpop.permute.xlu0 %2853
        %2855 = vrot.lane.b32.xlu0 %v2402, 32
        %v2856 = vpop.permute.xlu0 %2855
        %2857 = vrot.lane.b32.xlu0 %v2404, 32
        %v2858 = vpop.permute.xlu0 %2857
        %2859 = vrot.lane.b32.xlu0 %v2490, 32
        %v2860 = vpop.permute.xlu0 %2859
        %2861 = vrot.lane.b32.xlu0 %v2492, 32
        %v2862 = vpop.permute.xlu0 %2861
        %2895 = vrot.lane.b32.xlu0 %v2412, 40
        %v2896 = vpop.permute.xlu0 %2895
        %2897 = vrot.lane.b32.xlu0 %v2414, 40
        %v2898 = vpop.permute.xlu0 %2897
        %2899 = vrot.lane.b32.xlu0 %v2417, 40
        %v2900 = vpop.permute.xlu0 %2899
        %2901 = vrot.lane.b32.xlu0 %v2419, 40
        %v2902 = vpop.permute.xlu0 %2901
        %2903 = vrot.lane.b32.xlu0 %v2422, 40
        %v2904 = vpop.permute.xlu0 %2903
        %2905 = vrot.lane.b32.xlu0 %v2424, 40
        %v2906 = vpop.permute.xlu0 %2905
        %2907 = vrot.lane.b32.xlu0 %v2427, 40
        %v2908 = vpop.permute.xlu0 %2907
        %2909 = vrot.lane.b32.xlu0 %v2429, 40
        %v2910 = vpop.permute.xlu0 %2909
        %2911 = vrot.lane.b32.xlu0 %v2432, 40
        %v2912 = vpop.permute.xlu0 %2911
        %2913 = vrot.lane.b32.xlu0 %v2434, 40
        %v2914 = vpop.permute.xlu0 %2913
        %2915 = vrot.lane.b32.xlu0 %v2437, 40
        %v2916 = vpop.permute.xlu0 %2915
        %2917 = vrot.lane.b32.xlu0 %v2439, 40
        %v2918 = vpop.permute.xlu0 %2917
        %2919 = vrot.lane.b32.xlu0 %v2442, 40
        %v2920 = vpop.permute.xlu0 %2919
        %2921 = vrot.lane.b32.xlu0 %v2444, 40
        %v2922 = vpop.permute.xlu0 %2921
        %2923 = vrot.lane.b32.xlu0 %v2447, 40
        %v2924 = vpop.permute.xlu0 %2923
        %2925 = vrot.lane.b32.xlu0 %v2449, 40
        %v2926 = vpop.permute.xlu0 %2925
        %2927 = vrot.lane.b32.xlu0 %v2452, 40
        %v2928 = vpop.permute.xlu0 %2927
        %2929 = vrot.lane.b32.xlu0 %v2454, 40
        %v2930 = vpop.permute.xlu0 %2929
        %2931 = vrot.lane.b32.xlu0 %v2457, 40
        %v2932 = vpop.permute.xlu0 %2931
        %2933 = vrot.lane.b32.xlu0 %v2459, 40
        %v2934 = vpop.permute.xlu0 %2933
        %2935 = vrot.lane.b32.xlu0 %v2462, 40
        %v2936 = vpop.permute.xlu0 %2935
        %2937 = vrot.lane.b32.xlu0 %v2464, 40
        %v2938 = vpop.permute.xlu0 %2937
        %2939 = vrot.lane.b32.xlu0 %v2467, 40
        %v2940 = vpop.permute.xlu0 %2939
        %2941 = vrot.lane.b32.xlu0 %v2469, 40
        %v2942 = vpop.permute.xlu0 %2941
        %2943 = vrot.lane.b32.xlu0 %v2472, 40
        %v2944 = vpop.permute.xlu0 %2943
        %2945 = vrot.lane.b32.xlu0 %v2474, 40
        %v2946 = vpop.permute.xlu0 %2945
        %2947 = vrot.lane.b32.xlu0 %v2477, 40
        %v2948 = vpop.permute.xlu0 %2947
        %2949 = vrot.lane.b32.xlu0 %v2479, 40
        %v2950 = vpop.permute.xlu0 %2949
        %2951 = vrot.lane.b32.xlu0 %v2482, 40
        %v2952 = vpop.permute.xlu0 %2951
        %2953 = vrot.lane.b32.xlu0 %v2484, 40
        %v2954 = vpop.permute.xlu0 %2953
        %2955 = vrot.lane.b32.xlu0 %v2495, 40
        %v2956 = vpop.permute.xlu0 %2955
        %2957 = vrot.lane.b32.xlu0 %v2497, 40
        %v2958 = vpop.permute.xlu0 %2957
        %2991 = vrot.lane.b32.xlu0 %v2229, 48
        %v2992 = vpop.permute.xlu0 %2991
        %2993 = vrot.lane.b32.xlu0 %v2230, 48
        %v2994 = vpop.permute.xlu0 %2993
        %2995 = vrot.lane.b32.xlu0 %v2232, 48
        %v2996 = vpop.permute.xlu0 %2995
        %2997 = vrot.lane.b32.xlu0 %v2233, 48
        %v2998 = vpop.permute.xlu0 %2997
        %2999 = vrot.lane.b32.xlu0 %v2235, 48
        %v3000 = vpop.permute.xlu0 %2999
        %3001 = vrot.lane.b32.xlu0 %v2236, 48
        %v3002 = vpop.permute.xlu0 %3001
        %3003 = vrot.lane.b32.xlu0 %v2238, 48
        %v3004 = vpop.permute.xlu0 %3003
        %3005 = vrot.lane.b32.xlu0 %v2239, 48
        %v3006 = vpop.permute.xlu0 %3005
        %3007 = vrot.lane.b32.xlu0 %v2241, 48
        %v3008 = vpop.permute.xlu0 %3007
        %3009 = vrot.lane.b32.xlu0 %v2242, 48
        %v3010 = vpop.permute.xlu0 %3009
        %3011 = vrot.lane.b32.xlu0 %v2244, 48
        %v3012 = vpop.permute.xlu0 %3011
        %3013 = vrot.lane.b32.xlu0 %v2245, 48
        %v3014 = vpop.permute.xlu0 %3013
        %3015 = vrot.lane.b32.xlu0 %v2247, 48
        %v3016 = vpop.permute.xlu0 %3015
        %3017 = vrot.lane.b32.xlu0 %v2248, 48
        %v3018 = vpop.permute.xlu0 %3017
        %3019 = vrot.lane.b32.xlu0 %v2250, 48
        %v3020 = vpop.permute.xlu0 %3019
        %3021 = vrot.lane.b32.xlu0 %v2251, 48
        %v3022 = vpop.permute.xlu0 %3021
        %3023 = vrot.lane.b32.xlu0 %v2253, 48
        %v3024 = vpop.permute.xlu0 %3023
        %3025 = vrot.lane.b32.xlu0 %v2254, 48
        %v3026 = vpop.permute.xlu0 %3025
        %3027 = vrot.lane.b32.xlu0 %v2256, 48
        %v3028 = vpop.permute.xlu0 %3027
        %3029 = vrot.lane.b32.xlu0 %v2257, 48
        %v3030 = vpop.permute.xlu0 %3029
        %3031 = vrot.lane.b32.xlu0 %v2259, 48
        %v3032 = vpop.permute.xlu0 %3031
        %3033 = vrot.lane.b32.xlu0 %v2260, 48
        %v3034 = vpop.permute.xlu0 %3033
        %3035 = vrot.lane.b32.xlu0 %v2262, 48
        %v3036 = vpop.permute.xlu0 %3035
        %3037 = vrot.lane.b32.xlu0 %v2263, 48
        %v3038 = vpop.permute.xlu0 %3037
        %3039 = vrot.lane.b32.xlu0 %v2265, 48
        %v3040 = vpop.permute.xlu0 %3039
        %3041 = vrot.lane.b32.xlu0 %v2266, 48
        %v3042 = vpop.permute.xlu0 %3041
        %3043 = vrot.lane.b32.xlu0 %v2268, 48
        %v3044 = vpop.permute.xlu0 %3043
        %3045 = vrot.lane.b32.xlu0 %v2269, 48
        %v3046 = vpop.permute.xlu0 %3045
        %3047 = vrot.lane.b32.xlu0 %v2271, 48
        %v3048 = vpop.permute.xlu0 %3047
        %3049 = vrot.lane.b32.xlu0 %v2272, 48
        %v3050 = vpop.permute.xlu0 %3049
        %3051 = vrot.lane.b32.xlu0 %v2274, 48
        %v3052 = vpop.permute.xlu0 %3051
        %3053 = vrot.lane.b32.xlu0 %v2275, 48
        %v3054 = vpop.permute.xlu0 %3053
        %3087 = vrot.lane.b32.xlu0 %v2337, 56
        %v3088 = vpop.permute.xlu0 %3087
        %3089 = vrot.lane.b32.xlu0 %v2339, 56
        %v3090 = vpop.permute.xlu0 %3089
        %3091 = vrot.lane.b32.xlu0 %v2342, 56
        %v3092 = vpop.permute.xlu0 %3091
        %3093 = vrot.lane.b32.xlu0 %v2344, 56
        %v3094 = vpop.permute.xlu0 %3093
        %3095 = vrot.lane.b32.xlu0 %v2347, 56
        %v3096 = vpop.permute.xlu0 %3095
        %3097 = vrot.lane.b32.xlu0 %v2349, 56
        %v3098 = vpop.permute.xlu0 %3097
        %3099 = vrot.lane.b32.xlu0 %v2352, 56
        %v3100 = vpop.permute.xlu0 %3099
        %3101 = vrot.lane.b32.xlu0 %v2354, 56
        %v3102 = vpop.permute.xlu0 %3101
        %3103 = vrot.lane.b32.xlu0 %v2357, 56
        %v3104 = vpop.permute.xlu0 %3103
        %3105 = vrot.lane.b32.xlu0 %v2359, 56
        %v3106 = vpop.permute.xlu0 %3105
        %3107 = vrot.lane.b32.xlu0 %v2362, 56
        %v3108 = vpop.permute.xlu0 %3107
        %3109 = vrot.lane.b32.xlu0 %v2364, 56
        %v3110 = vpop.permute.xlu0 %3109
        %3111 = vrot.lane.b32.xlu0 %v2367, 56
        %v3112 = vpop.permute.xlu0 %3111
        %3113 = vrot.lane.b32.xlu0 %v2369, 56
        %v3114 = vpop.permute.xlu0 %3113
        %3115 = vrot.lane.b32.xlu0 %v2372, 56
        %v3116 = vpop.permute.xlu0 %3115
        %3117 = vrot.lane.b32.xlu0 %v2374, 56
        %v3118 = vpop.permute.xlu0 %3117
        %3119 = vrot.lane.b32.xlu0 %v2377, 56
        %v3120 = vpop.permute.xlu0 %3119
        %3121 = vrot.lane.b32.xlu0 %v2379, 56
        %v3122 = vpop.permute.xlu0 %3121
        %3123 = vrot.lane.b32.xlu0 %v2382, 56
        %v3124 = vpop.permute.xlu0 %3123
        %3125 = vrot.lane.b32.xlu0 %v2384, 56
        %v3126 = vpop.permute.xlu0 %3125
        %3127 = vrot.lane.b32.xlu0 %v2387, 56
        %v3128 = vpop.permute.xlu0 %3127
        %3129 = vrot.lane.b32.xlu0 %v2389, 56
        %v3130 = vpop.permute.xlu0 %3129
        %3131 = vrot.lane.b32.xlu0 %v2392, 56
        %v3132 = vpop.permute.xlu0 %3131
        %3133 = vrot.lane.b32.xlu0 %v2394, 56
        %v3134 = vpop.permute.xlu0 %3133
        %3135 = vrot.lane.b32.xlu0 %v2397, 56
        %v3136 = vpop.permute.xlu0 %3135
        %3137 = vrot.lane.b32.xlu0 %v2399, 56
        %v3138 = vpop.permute.xlu0 %3137
        %3139 = vrot.lane.b32.xlu0 %v2402, 56
        %v3140 = vpop.permute.xlu0 %3139
        %3141 = vrot.lane.b32.xlu0 %v2404, 56
        %v3142 = vpop.permute.xlu0 %3141
        %3143 = vrot.lane.b32.xlu0 %v2490, 56
        %v3144 = vpop.permute.xlu0 %3143
        %3145 = vrot.lane.b32.xlu0 %v2492, 56
        %v3146 = vpop.permute.xlu0 %3145
        %3147 = vrot.lane.b32.xlu0 %v2503, 56
        %v3148 = vpop.permute.xlu0 %3147
        %3149 = vrot.lane.b32.xlu0 %v2505, 56
        %v3150 = vpop.permute.xlu0 %3149
        %3183 = vrot.lane.b32.xlu0 %v2417, 64
        %v3184 = vpop.permute.xlu0 %3183
        %3185 = vrot.lane.b32.xlu0 %v2419, 64
        %v3186 = vpop.permute.xlu0 %3185
        %3187 = vrot.lane.b32.xlu0 %v2422, 64
        %v3188 = vpop.permute.xlu0 %3187
        %3189 = vrot.lane.b32.xlu0 %v2424, 64
        %v3190 = vpop.permute.xlu0 %3189
        %3191 = vrot.lane.b32.xlu0 %v2427, 64
        %v3192 = vpop.permute.xlu0 %3191
        %3193 = vrot.lane.b32.xlu0 %v2429, 64
        %v3194 = vpop.permute.xlu0 %3193
        %3195 = vrot.lane.b32.xlu0 %v2432, 64
        %v3196 = vpop.permute.xlu0 %3195
        %3197 = vrot.lane.b32.xlu0 %v2434, 64
        %v3198 = vpop.permute.xlu0 %3197
        %3199 = vrot.lane.b32.xlu0 %v2437, 64
        %v3200 = vpop.permute.xlu0 %3199
        %3201 = vrot.lane.b32.xlu0 %v2439, 64
        %v3202 = vpop.permute.xlu0 %3201
        %3203 = vrot.lane.b32.xlu0 %v2442, 64
        %v3204 = vpop.permute.xlu0 %3203
        %3205 = vrot.lane.b32.xlu0 %v2444, 64
        %v3206 = vpop.permute.xlu0 %3205
        %3207 = vrot.lane.b32.xlu0 %v2447, 64
        %v3208 = vpop.permute.xlu0 %3207
        %3209 = vrot.lane.b32.xlu0 %v2449, 64
        %v3210 = vpop.permute.xlu0 %3209
        %3211 = vrot.lane.b32.xlu0 %v2452, 64
        %v3212 = vpop.permute.xlu0 %3211
        %3213 = vrot.lane.b32.xlu0 %v2454, 64
        %v3214 = vpop.permute.xlu0 %3213
        %3215 = vrot.lane.b32.xlu0 %v2457, 64
        %v3216 = vpop.permute.xlu0 %3215
        %3217 = vrot.lane.b32.xlu0 %v2459, 64
        %v3218 = vpop.permute.xlu0 %3217
        %3219 = vrot.lane.b32.xlu0 %v2462, 64
        %v3220 = vpop.permute.xlu0 %3219
        %3221 = vrot.lane.b32.xlu0 %v2464, 64
        %v3222 = vpop.permute.xlu0 %3221
        %3223 = vrot.lane.b32.xlu0 %v2467, 64
        %v3224 = vpop.permute.xlu0 %3223
        %3225 = vrot.lane.b32.xlu0 %v2469, 64
        %v3226 = vpop.permute.xlu0 %3225
        %3227 = vrot.lane.b32.xlu0 %v2472, 64
        %v3228 = vpop.permute.xlu0 %3227
        %3229 = vrot.lane.b32.xlu0 %v2474, 64
        %v3230 = vpop.permute.xlu0 %3229
        %3231 = vrot.lane.b32.xlu0 %v2477, 64
        %v3232 = vpop.permute.xlu0 %3231
        %3233 = vrot.lane.b32.xlu0 %v2479, 64
        %v3234 = vpop.permute.xlu0 %3233
        %3235 = vrot.lane.b32.xlu0 %v2482, 64
        %v3236 = vpop.permute.xlu0 %3235
        %3237 = vrot.lane.b32.xlu0 %v2484, 64
        %v3238 = vpop.permute.xlu0 %3237
        %3239 = vrot.lane.b32.xlu0 %v2495, 64
        %v3240 = vpop.permute.xlu0 %3239
        %3241 = vrot.lane.b32.xlu0 %v2497, 64
        %v3242 = vpop.permute.xlu0 %3241
        %3243 = vrot.lane.b32.xlu0 %v2508, 64
        %v3244 = vpop.permute.xlu0 %3243
        %3245 = vrot.lane.b32.xlu0 %v2510, 64
        %v3246 = vpop.permute.xlu0 %3245
        %v3279 = vsel %vm1314, %v2223, %v2512
        %v3280 = vsel %vm1314, %v2224, %v2514
        %v3281 = vsel %vm1314, %v2226, %v2516
        %v3282 = vsel %vm1314, %v2227, %v2518
        %v3283 = vsel %vm1314, %v2229, %v2520
        %v3284 = vsel %vm1314, %v2230, %v2522
        %v3285 = vsel %vm1314, %v2232, %v2524
        %v3286 = vsel %vm1314, %v2233, %v2526
        %v3287 = vsel %vm1314, %v2235, %v2528
        %v3288 = vsel %vm1314, %v2236, %v2530
        %v3289 = vsel %vm1314, %v2238, %v2532
        %v3290 = vsel %vm1314, %v2239, %v2534
        %v3291 = vsel %vm1314, %v2241, %v2536
        %v3292 = vsel %vm1314, %v2242, %v2538
        %v3293 = vsel %vm1314, %v2244, %v2540
        %v3294 = vsel %vm1314, %v2245, %v2542
        %v3295 = vsel %vm1314, %v2247, %v2544
        %v3296 = vsel %vm1314, %v2248, %v2546
        %v3297 = vsel %vm1314, %v2250, %v2548
        %v3298 = vsel %vm1314, %v2251, %v2550
        %v3299 = vsel %vm1314, %v2253, %v2552
        %v3300 = vsel %vm1314, %v2254, %v2554
        %v3301 = vsel %vm1314, %v2256, %v2556
        %v3302 = vsel %vm1314, %v2257, %v2558
        %v3303 = vsel %vm1314, %v2259, %v2560
        %v3304 = vsel %vm1314, %v2260, %v2562
        %v3305 = vsel %vm1314, %v2262, %v2564
        %v3306 = vsel %vm1314, %v2263, %v2566
        %v3307 = vsel %vm1314, %v2265, %v2568
        %v3308 = vsel %vm1314, %v2266, %v2570
        %v3309 = vsel %vm1314, %v2268, %v2572
        %v3310 = vsel %vm1314, %v2269, %v2574
        %v3311 = vsel %vm1380, %v3279, %v2608
        %v3312 = vsel %vm1380, %v3280, %v2610
        %v3313 = vsel %vm1380, %v3281, %v2612
        %v3314 = vsel %vm1380, %v3282, %v2614
        %v3315 = vsel %vm1380, %v3283, %v2616
        %v3316 = vsel %vm1380, %v3284, %v2618
        %v3317 = vsel %vm1380, %v3285, %v2620
        %v3318 = vsel %vm1380, %v3286, %v2622
        %v3319 = vsel %vm1380, %v3287, %v2624
        %v3320 = vsel %vm1380, %v3288, %v2626
        %v3321 = vsel %vm1380, %v3289, %v2628
        %v3322 = vsel %vm1380, %v3290, %v2630
        %v3323 = vsel %vm1380, %v3291, %v2632
        %v3324 = vsel %vm1380, %v3292, %v2634
        %v3325 = vsel %vm1380, %v3293, %v2636
        %v3326 = vsel %vm1380, %v3294, %v2638
        %v3327 = vsel %vm1380, %v3295, %v2640
        %v3328 = vsel %vm1380, %v3296, %v2642
        %v3329 = vsel %vm1380, %v3297, %v2644
        %v3330 = vsel %vm1380, %v3298, %v2646
        %v3331 = vsel %vm1380, %v3299, %v2648
        %v3332 = vsel %vm1380, %v3300, %v2650
        %v3333 = vsel %vm1380, %v3301, %v2652
        %v3334 = vsel %vm1380, %v3302, %v2654
        %v3335 = vsel %vm1380, %v3303, %v2656
        %v3336 = vsel %vm1380, %v3304, %v2658
        %v3337 = vsel %vm1380, %v3305, %v2660
        %v3338 = vsel %vm1380, %v3306, %v2662
        %v3339 = vsel %vm1380, %v3307, %v2664
        %v3340 = vsel %vm1380, %v3308, %v2666
        %v3341 = vsel %vm1380, %v3309, %v2668
        %v3342 = vsel %vm1380, %v3310, %v2670
        %v3343 = vsel %vm1446, %v3311, %v2704
        %v3344 = vsel %vm1446, %v3312, %v2706
        %v3345 = vsel %vm1446, %v3313, %v2708
        %v3346 = vsel %vm1446, %v3314, %v2710
        %v3347 = vsel %vm1446, %v3315, %v2712
        %v3348 = vsel %vm1446, %v3316, %v2714
        %v3349 = vsel %vm1446, %v3317, %v2716
        %v3350 = vsel %vm1446, %v3318, %v2718
        %v3351 = vsel %vm1446, %v3319, %v2720
        %v3352 = vsel %vm1446, %v3320, %v2722
        %v3353 = vsel %vm1446, %v3321, %v2724
        %v3354 = vsel %vm1446, %v3322, %v2726
        %v3355 = vsel %vm1446, %v3323, %v2728
        %v3356 = vsel %vm1446, %v3324, %v2730
        %v3357 = vsel %vm1446, %v3325, %v2732
        %v3358 = vsel %vm1446, %v3326, %v2734
        %v3359 = vsel %vm1446, %v3327, %v2736
        %v3360 = vsel %vm1446, %v3328, %v2738
        %v3361 = vsel %vm1446, %v3329, %v2740
        %v3362 = vsel %vm1446, %v3330, %v2742
        %v3363 = vsel %vm1446, %v3331, %v2744
        %v3364 = vsel %vm1446, %v3332, %v2746
        %v3365 = vsel %vm1446, %v3333, %v2748
        %v3366 = vsel %vm1446, %v3334, %v2750
        %v3367 = vsel %vm1446, %v3335, %v2752
        %v3368 = vsel %vm1446, %v3336, %v2754
        %v3369 = vsel %vm1446, %v3337, %v2756
        %v3370 = vsel %vm1446, %v3338, %v2758
        %v3371 = vsel %vm1446, %v3339, %v2760
        %v3372 = vsel %vm1446, %v3340, %v2762
        %v3373 = vsel %vm1446, %v3341, %v2764
        %v3374 = vsel %vm1446, %v3342, %v2766
        %v3375 = vsel %vm1512, %v3343, %v2800
        %v3376 = vsel %vm1512, %v3344, %v2802
        %v3377 = vsel %vm1512, %v3345, %v2804
        %v3378 = vsel %vm1512, %v3346, %v2806
        %v3379 = vsel %vm1512, %v3347, %v2808
        %v3380 = vsel %vm1512, %v3348, %v2810
        %v3381 = vsel %vm1512, %v3349, %v2812
        %v3382 = vsel %vm1512, %v3350, %v2814
        %v3383 = vsel %vm1512, %v3351, %v2816
        %v3384 = vsel %vm1512, %v3352, %v2818
        %v3385 = vsel %vm1512, %v3353, %v2820
        %v3386 = vsel %vm1512, %v3354, %v2822
        %v3387 = vsel %vm1512, %v3355, %v2824
        %v3388 = vsel %vm1512, %v3356, %v2826
        %v3389 = vsel %vm1512, %v3357, %v2828
        %v3390 = vsel %vm1512, %v3358, %v2830
        %v3391 = vsel %vm1512, %v3359, %v2832
        %v3392 = vsel %vm1512, %v3360, %v2834
        %v3393 = vsel %vm1512, %v3361, %v2836
        %v3394 = vsel %vm1512, %v3362, %v2838
        %v3395 = vsel %vm1512, %v3363, %v2840
        %v3396 = vsel %vm1512, %v3364, %v2842
        %v3397 = vsel %vm1512, %v3365, %v2844
        %v3398 = vsel %vm1512, %v3366, %v2846
        %v3399 = vsel %vm1512, %v3367, %v2848
        %v3400 = vsel %vm1512, %v3368, %v2850
        %v3401 = vsel %vm1512, %v3369, %v2852
        %v3402 = vsel %vm1512, %v3370, %v2854
        %v3403 = vsel %vm1512, %v3371, %v2856
        %v3404 = vsel %vm1512, %v3372, %v2858
        %v3405 = vsel %vm1512, %v3373, %v2860
        %v3406 = vsel %vm1512, %v3374, %v2862
        %vm3407 = vcmask 326656
        %v3408 = vsel %vm3407, %v3375, %v2896
        %v3409 = vsel %vm3407, %v3376, %v2898
        %v3410 = vsel %vm3407, %v3377, %v2900
        %v3411 = vsel %vm3407, %v3378, %v2902
        %v3412 = vsel %vm3407, %v3379, %v2904
        %v3413 = vsel %vm3407, %v3380, %v2906
        %v3414 = vsel %vm3407, %v3381, %v2908
        %v3415 = vsel %vm3407, %v3382, %v2910
        %v3416 = vsel %vm3407, %v3383, %v2912
        %v3417 = vsel %vm3407, %v3384, %v2914
        %v3418 = vsel %vm3407, %v3385, %v2916
        %v3419 = vsel %vm3407, %v3386, %v2918
        %v3420 = vsel %vm3407, %v3387, %v2920
        %v3421 = vsel %vm3407, %v3388, %v2922
        %v3422 = vsel %vm3407, %v3389, %v2924
        %v3423 = vsel %vm3407, %v3390, %v2926
        %v3424 = vsel %vm3407, %v3391, %v2928
        %v3425 = vsel %vm3407, %v3392, %v2930
        %v3426 = vsel %vm3407, %v3393, %v2932
        %v3427 = vsel %vm3407, %v3394, %v2934
        %v3428 = vsel %vm3407, %v3395, %v2936
        %v3429 = vsel %vm3407, %v3396, %v2938
        %v3430 = vsel %vm3407, %v3397, %v2940
        %v3431 = vsel %vm3407, %v3398, %v2942
        %v3432 = vsel %vm3407, %v3399, %v2944
        %v3433 = vsel %vm3407, %v3400, %v2946
        %v3434 = vsel %vm3407, %v3401, %v2948
        %v3435 = vsel %vm3407, %v3402, %v2950
        %v3436 = vsel %vm3407, %v3403, %v2952
        %v3437 = vsel %vm3407, %v3404, %v2954
        %v3438 = vsel %vm3407, %v3405, %v2956
        %v3439 = vsel %vm3407, %v3406, %v2958
        %vm3440 = vcmask 392192
        %v3441 = vsel %vm3440, %v3408, %v2992
        %v3442 = vsel %vm3440, %v3409, %v2994
        %v3443 = vsel %vm3440, %v3410, %v2996
        %v3444 = vsel %vm3440, %v3411, %v2998
        %v3445 = vsel %vm3440, %v3412, %v3000
        %v3446 = vsel %vm3440, %v3413, %v3002
        %v3447 = vsel %vm3440, %v3414, %v3004
        %v3448 = vsel %vm3440, %v3415, %v3006
        %v3449 = vsel %vm3440, %v3416, %v3008
        %v3450 = vsel %vm3440, %v3417, %v3010
        %v3451 = vsel %vm3440, %v3418, %v3012
        %v3452 = vsel %vm3440, %v3419, %v3014
        %v3453 = vsel %vm3440, %v3420, %v3016
        %v3454 = vsel %vm3440, %v3421, %v3018
        %v3455 = vsel %vm3440, %v3422, %v3020
        %v3456 = vsel %vm3440, %v3423, %v3022
        %v3457 = vsel %vm3440, %v3424, %v3024
        %v3458 = vsel %vm3440, %v3425, %v3026
        %v3459 = vsel %vm3440, %v3426, %v3028
        %v3460 = vsel %vm3440, %v3427, %v3030
        %v3461 = vsel %vm3440, %v3428, %v3032
        %v3462 = vsel %vm3440, %v3429, %v3034
        %v3463 = vsel %vm3440, %v3430, %v3036
        %v3464 = vsel %vm3440, %v3431, %v3038
        %v3465 = vsel %vm3440, %v3432, %v3040
        %v3466 = vsel %vm3440, %v3433, %v3042
        %v3467 = vsel %vm3440, %v3434, %v3044
        %v3468 = vsel %vm3440, %v3435, %v3046
        %v3469 = vsel %vm3440, %v3436, %v3048
        %v3470 = vsel %vm3440, %v3437, %v3050
        %v3471 = vsel %vm3440, %v3438, %v3052
        %v3472 = vsel %vm3440, %v3439, %v3054
        %vm3473 = vcmask 457728
        %v3474 = vsel %vm3473, %v3441, %v3088
        %v3475 = vsel %vm3473, %v3442, %v3090
        %v3476 = vsel %vm3473, %v3443, %v3092
        %v3477 = vsel %vm3473, %v3444, %v3094
        %v3478 = vsel %vm3473, %v3445, %v3096
        %v3479 = vsel %vm3473, %v3446, %v3098
        %v3480 = vsel %vm3473, %v3447, %v3100
        %v3481 = vsel %vm3473, %v3448, %v3102
        %v3482 = vsel %vm3473, %v3449, %v3104
        %v3483 = vsel %vm3473, %v3450, %v3106
        %v3484 = vsel %vm3473, %v3451, %v3108
        %v3485 = vsel %vm3473, %v3452, %v3110
        %v3486 = vsel %vm3473, %v3453, %v3112
        %v3487 = vsel %vm3473, %v3454, %v3114
        %v3488 = vsel %vm3473, %v3455, %v3116
        %v3489 = vsel %vm3473, %v3456, %v3118
        %v3490 = vsel %vm3473, %v3457, %v3120
        %v3491 = vsel %vm3473, %v3458, %v3122
        %v3492 = vsel %vm3473, %v3459, %v3124
        %v3493 = vsel %vm3473, %v3460, %v3126
        %v3494 = vsel %vm3473, %v3461, %v3128
        %v3495 = vsel %vm3473, %v3462, %v3130
        %v3496 = vsel %vm3473, %v3463, %v3132
        %v3497 = vsel %vm3473, %v3464, %v3134
        %v3498 = vsel %vm3473, %v3465, %v3136
        %v3499 = vsel %vm3473, %v3466, %v3138
        %v3500 = vsel %vm3473, %v3467, %v3140
        %v3501 = vsel %vm3473, %v3468, %v3142
        %v3502 = vsel %vm3473, %v3469, %v3144
        %v3503 = vsel %vm3473, %v3470, %v3146
        %v3504 = vsel %vm3473, %v3471, %v3148
        %v3505 = vsel %vm3473, %v3472, %v3150
        %vm3506 = vcmask 523264
        %v3507 = vsel %vm3506, %v3474, %v3184
        %v3508 = vsel %vm3506, %v3475, %v3186
        %v3509 = vsel %vm3506, %v3476, %v3188
        %v3510 = vsel %vm3506, %v3477, %v3190
        %v3511 = vsel %vm3506, %v3478, %v3192
        %v3512 = vsel %vm3506, %v3479, %v3194
        %v3513 = vsel %vm3506, %v3480, %v3196
        %v3514 = vsel %vm3506, %v3481, %v3198
        %v3515 = vsel %vm3506, %v3482, %v3200
        %v3516 = vsel %vm3506, %v3483, %v3202
        %v3517 = vsel %vm3506, %v3484, %v3204
        %v3518 = vsel %vm3506, %v3485, %v3206
        %v3519 = vsel %vm3506, %v3486, %v3208
        %v3520 = vsel %vm3506, %v3487, %v3210
        %v3521 = vsel %vm3506, %v3488, %v3212
        %v3522 = vsel %vm3506, %v3489, %v3214
        %v3523 = vsel %vm3506, %v3490, %v3216
        %v3524 = vsel %vm3506, %v3491, %v3218
        %v3525 = vsel %vm3506, %v3492, %v3220
        %v3526 = vsel %vm3506, %v3493, %v3222
        %v3527 = vsel %vm3506, %v3494, %v3224
        %v3528 = vsel %vm3506, %v3495, %v3226
        %v3529 = vsel %vm3506, %v3496, %v3228
        %v3530 = vsel %vm3506, %v3497, %v3230
        %v3531 = vsel %vm3506, %v3498, %v3232
        %v3532 = vsel %vm3506, %v3499, %v3234
        %v3533 = vsel %vm3506, %v3500, %v3236
        %v3534 = vsel %vm3506, %v3501, %v3238
        %v3535 = vsel %vm3506, %v3502, %v3240
        %v3536 = vsel %vm3506, %v3503, %v3242
        %v3537 = vsel %vm3506, %v3504, %v3244
        %v3538 = vsel %vm3506, %v3505, %v3246
        %v3539 = vld [vmem:[%s2] sm:$0xff]
        %vm3540 = vcmask 588800
        %v3542 = vsel %vm3540, %v3539, 0
        %v3545 = vsel %vm3540, %v3507, 0
        %v3548 = vsel %vm3540, %v3508, 0
        %v3551 = vsel %vm3540, %v3509, 0
        %v3554 = vsel %vm3540, %v3510, 0
        %v3557 = vsel %vm3540, %v3511, 0
        %v3560 = vsel %vm3540, %v3512, 0
        %v3563 = vsel %vm3540, %v3513, 0
        %v3566 = vsel %vm3540, %v3514, 0
        %v3569 = vsel %vm3540, %v3515, 0
        %v3572 = vsel %vm3540, %v3516, 0
        %v3575 = vsel %vm3540, %v3517, 0
        %v3578 = vsel %vm3540, %v3518, 0
        %v3581 = vsel %vm3540, %v3519, 0
        %v3584 = vsel %vm3540, %v3520, 0
        %v3587 = vsel %vm3540, %v3521, 0
        %v3590 = vsel %vm3540, %v3522, 0
        %v3593 = vsel %vm3540, %v3523, 0
        %v3596 = vsel %vm3540, %v3524, 0
        %v3599 = vsel %vm3540, %v3525, 0
        %v3602 = vsel %vm3540, %v3526, 0
        %v3605 = vsel %vm3540, %v3527, 0
        %v3608 = vsel %vm3540, %v3528, 0
        %v3611 = vsel %vm3540, %v3529, 0
        %v3614 = vsel %vm3540, %v3530, 0
        %v3617 = vsel %vm3540, %v3531, 0
        %v3620 = vsel %vm3540, %v3532, 0
        %v3623 = vsel %vm3540, %v3533, 0
        %v3626 = vsel %vm3540, %v3534, 0
        %v3629 = vsel %vm3540, %v3535, 0
        %v3632 = vsel %vm3540, %v3536, 0
        %v3635 = vsel %vm3540, %v3537, 0
        %v3638 = vsel %vm3540, %v3538, 0
        %3640 = vmatprep.subr.mxu0 0.0
        %3641 = vmatpush1.xpose.msra.mxu0 %v3545
        %3642 = vmatprep.subr.mxu0 0.0
        %3643 = vmatpush1.xpose.msra.mxu0 %v3548
        %3644 = vmatprep.subr.mxu0 0.0
        %3645 = vmatpush1.xpose.msra.mxu0 %v3551
        %3646 = vmatprep.subr.mxu0 0.0
        %3647 = vmatpush1.xpose.msra.mxu0 %v3554
        %3648 = vmatprep.subr.mxu0 0.0
        %3649 = vmatpush1.xpose.msra.mxu0 %v3557
        %3650 = vmatprep.subr.mxu0 0.0
        %3651 = vmatpush1.xpose.msra.mxu0 %v3560
        %3652 = vmatprep.subr.mxu0 0.0
        %3653 = vmatpush1.xpose.msra.mxu0 %v3563
        %3654 = vmatprep.subr.mxu0 0.0
        %3655 = vmatpush1.xpose.msra.mxu0 %v3566
        %3656 = vmatprep.subr.mxu0 0.0
        %3657 = vmatpush1.xpose.msra.mxu0 %v3569
        %3658 = vmatprep.subr.mxu0 0.0
        %3659 = vmatpush1.xpose.msra.mxu0 %v3572
        %3660 = vmatprep.subr.mxu0 0.0
        %3661 = vmatpush1.xpose.msra.mxu0 %v3575
        %3662 = vmatprep.subr.mxu0 0.0
        %3663 = vmatpush1.xpose.msra.mxu0 %v3578
        %3664 = vmatprep.subr.mxu0 0.0
        %3665 = vmatpush1.xpose.msra.mxu0 %v3581
        %3666 = vmatprep.subr.mxu0 0.0
        %3667 = vmatpush1.xpose.msra.mxu0 %v3584
        %3668 = vmatprep.subr.mxu0 0.0
        %3669 = vmatpush1.xpose.msra.mxu0 %v3587
        %3670 = vmatprep.subr.mxu0 0.0
        %3671 = vmatpush1.xpose.msra.mxu0 %v3590
        %3672 = vmatprep.subr.mxu0 0.0
        %3673 = vmatpush1.xpose.msra.mxu0 %v3593
        %3674 = vmatprep.subr.mxu0 0.0
        %3675 = vmatpush1.xpose.msra.mxu0 %v3596
        %3676 = vmatprep.subr.mxu0 0.0
        %3677 = vmatpush1.xpose.msra.mxu0 %v3599
        %3678 = vmatprep.subr.mxu0 0.0
        %3679 = vmatpush1.xpose.msra.mxu0 %v3602
        %3680 = vmatprep.subr.mxu0 0.0
        %3681 = vmatpush1.xpose.msra.mxu0 %v3605
        %3682 = vmatprep.subr.mxu0 0.0
        %3683 = vmatpush1.xpose.msra.mxu0 %v3608
        %3684 = vmatprep.subr.mxu0 0.0
        %3685 = vmatpush1.xpose.msra.mxu0 %v3611
        %3686 = vmatprep.subr.mxu0 0.0
        %3687 = vmatpush1.xpose.msra.mxu0 %v3614
        %3688 = vmatprep.subr.mxu0 0.0
        %3689 = vmatpush1.xpose.msra.mxu0 %v3617
        %3690 = vmatprep.subr.mxu0 0.0
        %3691 = vmatpush1.xpose.msra.mxu0 %v3620
        %3692 = vmatprep.subr.mxu0 0.0
        %3693 = vmatpush1.xpose.msra.mxu0 %v3623
        %3694 = vmatprep.subr.mxu0 0.0
        %3695 = vmatpush1.xpose.msra.mxu0 %v3626
        %3696 = vmatprep.subr.mxu0 0.0
        %3697 = vmatpush1.xpose.msra.mxu0 %v3629
        %3698 = vmatprep.subr.mxu0 0.0
        %3699 = vmatpush1.xpose.msra.mxu0 %v3632
        %3700 = vmatprep.subr.mxu0 0.0
        %3701 = vmatpush1.xpose.msra.mxu0 %v3635
        %3702 = vmatprep.subr.mxu0 0.0
        %3703 = vmatpush1.xpose.msra.mxu0 %v3638
        %3704 = vmatprep.mubr.f32.mxu0 0.0
        %3705 = vmatmul.mubr.f32.gmra.mrb[0].mxu0 %v3542
        %v3706 = vpop.f32.mrb[0].mxu0
        %v3707 = vadd.f32 0.0, %v3706
        %v3708 = vpop.f32.mrb[0].mxu0
        %v3709 = vadd.f32 0.0, %v3708
        %3710 = vdwg.mxu0
        %v3711 = vadd.f32 %v3707, %v3709
        %3712 = vadd.xlane.f32.xlu0 %v3711
        %v3713 = vpop.xlane.xlu0 %3712
        %v3714 = vmul.f32 %v3707, %v3707
        %v3715 = vmul.f32 %v3709, %v3709
        %v3716 = vadd.f32 %v3714, %v3715
        %3717 = vadd.xlane.f32.xlu0 %v3716
        %v3718 = vpop.xlane.xlu0 %3717
        %v3719 = vmul.f32 %v3713, 0.00390625
        %v3720 = vmul.f32 %v3718, 0.00390625
        %v3721 = vmul.f32 %v3719, %v3719
        %v3722 = vsub.f32 %v3720, %v3721
        %v3723 = vmax.f32 %v3722, 0.0
        %v3724 = vsub.f32 %v3707, %v3719
        %v3725 = vsub.f32 %v3709, %v3719
        %v3726 = vadd.f32 %v3723, 1e-05
        %v3727 = vrsqrt.pop %v3726
        %v3728 = vmul.f32 %v3724, %v3727
        %v3729 = vmul.f32 %v3725, %v3727
        %v3730 = vmax.f32 %v3728, 0.0
        %v3731 = vmax.f32 %v3729, 0.0
        %v3732 = vld [vmem:[%s3] sm:$0xff]
        %v3733 = vld [vmem:[%s4] sm:$0xff]
        %3735 = vset.pattern.permute.xlu0 0
        %3736 = vperm.xlu0 %3735, %v3733
        %v3737 = vpop.permute.xlu0 %3736
        %v3740 = vsel %vm1281, %v3732, 0
        %v3742 = vsel %vm1281, %v333, 0
        %v3744 = vsel %vm1281, %v335, 0
        %v3746 = vsel %vm1281, %v338, 0
        %v3748 = vsel %vm1281, %v340, 0
        %v3750 = vsel %vm1281, %v343, 0
        %v3752 = vsel %vm1281, %v345, 0
        %v3754 = vsel %vm1281, %v348, 0
        %v3756 = vsel %vm1281, %v350, 0
        %v3758 = vsel %vm1281, %v353, 0
        %v3760 = vsel %vm1281, %v355, 0
        %v3762 = vsel %vm1281, %v358, 0
        %v3764 = vsel %vm1281, %v360, 0
        %v3766 = vsel %vm1281, %v363, 0
        %v3768 = vsel %vm1281, %v365, 0
        %v3770 = vsel %vm1281, %v368, 0
        %v3772 = vsel %vm1281, %v370, 0
        %v3774 = vsel %vm1281, %v373, 0
        %v3776 = vsel %vm1281, %v375, 0
        %v3778 = vsel %vm1281, %v378, 0
        %v3780 = vsel %vm1281, %v380, 0
        %v3782 = vsel %vm1281, %v383, 0
        %v3784 = vsel %vm1281, %v385, 0
        %v3786 = vsel %vm1281, %v388, 0
        %v3788 = vsel %vm1281, %v390, 0
        %v3790 = vsel %vm1281, %v393, 0
        %v3792 = vsel %vm1281, %v395, 0
        %v3794 = vsel %vm1281, %v398, 0
        %v3796 = vsel %vm1281, %v400, 0
        %v3798 = vsel %vm1281, %v403, 0
        %v3800 = vsel %vm1281, %v405, 0
        %v3802 = vsel %vm1281, %v492, 0
        %v3804 = vsel %vm1281, %v494, 0
        %3806 = vmatprep.subr.mxu0 0.0
        %3807 = vmatpush1.xpose.msra.mxu0 %v3742
        %3808 = vmatprep.subr.mxu0 0.0
        %3809 = vmatpush1.xpose.msra.mxu0 %v3744
        %3810 = vmatprep.subr.mxu0 0.0
        %3811 = vmatpush1.xpose.msra.mxu0 %v3746
        %3812 = vmatprep.subr.mxu0 0.0
        %3813 = vmatpush1.xpose.msra.mxu0 %v3748
        %3814 = vmatprep.subr.mxu0 0.0
        %3815 = vmatpush1.xpose.msra.mxu0 %v3750
        %3816 = vmatprep.subr.mxu0 0.0
        %3817 = vmatpush1.xpose.msra.mxu0 %v3752
        %3818 = vmatprep.subr.mxu0 0.0
        %3819 = vmatpush1.xpose.msra.mxu0 %v3754
        %3820 = vmatprep.subr.mxu0 0.0
        %3821 = vmatpush1.xpose.msra.mxu0 %v3756
        %3822 = vmatprep.subr.mxu0 0.0
        %3823 = vmatpush1.xpose.msra.mxu0 %v3758
        %3824 = vmatprep.subr.mxu0 0.0
        %3825 = vmatpush1.xpose.msra.mxu0 %v3760
        %3826 = vmatprep.subr.mxu0 0.0
        %3827 = vmatpush1.xpose.msra.mxu0 %v3762
        %3828 = vmatprep.subr.mxu0 0.0
        %3829 = vmatpush1.xpose.msra.mxu0 %v3764
        %3830 = vmatprep.subr.mxu0 0.0
        %3831 = vmatpush1.xpose.msra.mxu0 %v3766
        %3832 = vmatprep.subr.mxu0 0.0
        %3833 = vmatpush1.xpose.msra.mxu0 %v3768
        %3834 = vmatprep.subr.mxu0 0.0
        %3835 = vmatpush1.xpose.msra.mxu0 %v3770
        %3836 = vmatprep.subr.mxu0 0.0
        %3837 = vmatpush1.xpose.msra.mxu0 %v3772
        %3838 = vmatprep.subr.mxu0 0.0
        %3839 = vmatpush1.xpose.msra.mxu0 %v3774
        %3840 = vmatprep.subr.mxu0 0.0
        %3841 = vmatpush1.xpose.msra.mxu0 %v3776
        %3842 = vmatprep.subr.mxu0 0.0
        %3843 = vmatpush1.xpose.msra.mxu0 %v3778
        %3844 = vmatprep.subr.mxu0 0.0
        %3845 = vmatpush1.xpose.msra.mxu0 %v3780
        %3846 = vmatprep.subr.mxu0 0.0
        %3847 = vmatpush1.xpose.msra.mxu0 %v3782
        %3848 = vmatprep.subr.mxu0 0.0
        %3849 = vmatpush1.xpose.msra.mxu0 %v3784
        %3850 = vmatprep.subr.mxu0 0.0
        %3851 = vmatpush1.xpose.msra.mxu0 %v3786
        %3852 = vmatprep.subr.mxu0 0.0
        %3853 = vmatpush1.xpose.msra.mxu0 %v3788
        %3854 = vmatprep.subr.mxu0 0.0
        %3855 = vmatpush1.xpose.msra.mxu0 %v3790
        %3856 = vmatprep.subr.mxu0 0.0
        %3857 = vmatpush1.xpose.msra.mxu0 %v3792
        %3858 = vmatprep.subr.mxu0 0.0
        %3859 = vmatpush1.xpose.msra.mxu0 %v3794
        %3860 = vmatprep.subr.mxu0 0.0
        %3861 = vmatpush1.xpose.msra.mxu0 %v3796
        %3862 = vmatprep.subr.mxu0 0.0
        %3863 = vmatpush1.xpose.msra.mxu0 %v3798
        %3864 = vmatprep.subr.mxu0 0.0
        %3865 = vmatpush1.xpose.msra.mxu0 %v3800
        %3866 = vmatprep.subr.mxu0 0.0
        %3867 = vmatpush1.xpose.msra.mxu0 %v3802
        %3868 = vmatprep.subr.mxu0 0.0
        %3869 = vmatpush1.xpose.msra.mxu0 %v3804
        %3870 = vmatprep.mubr.f32.mxu0 0.0
        %3871 = vmatmul.mubr.f32.gmra.mrb[0].mxu0 %v3740
        %v3872 = vpop.f32.mrb[0].mxu0
        %v3873 = vadd.f32 %v3737, %v3872
        %v3874 = vpop.f32.mrb[0].mxu0
        %v3875 = vadd.f32 %v3737, %v3874
        %3876 = vdwg.mxu0
        %v3877 = vadd.f32 %v3730, %v3873
        %v3878 = vadd.f32 %v3731, %v3875
        %3879 = vst [vmem:[%s217] sm:$0xff] %v3877
        %3880 = vst [vmem:[%s217 + $0x8] sm:$0xff] %v3878
        %s3881 = sand.u32 %s137, 1
        %s3882 = scalar_lea.sflag [#allocation4], %s3881
        %s3883 = sand.u32 %s137, 1
        %s3884 = smul.addr %s3883, 16
        %s3885 = scalar_lea.vmem [#allocation3], %s3884
        // Predicated region
        $region41: #{tpu_custom_call.1} parent=39 // pred_check
          %p3886 = pneg %p147
        $region42: #{tpu_custom_call.1} parent=39 // pred_check_branch
          %3888 = sbr.rel (%p3886) target = $region44
        $region43: #{tpu_custom_call.1} parent=39 // pred_region
          %s3890 = ssub.s32 256, 256
          %3891 = vsyncadd %s3882, %s3890
          %s3892 = smul.addr %s19, 2
          %s3893 = smul.addr %s3892, 128
          %s3894 = scalar_lea.hbm %s5, %s3893
          %s3896 = sshll.u32 %s3885, 4
          %s3897 = int_to_ptr.vmem [resolvable:$true] %s3896
          %3899 = dma.vmem_to_hbm [thread:$0]  %s3897, 256, %s3894, %s3882
        $region44: #{tpu_custom_call.1} parent=39 // pred_fallthru
          _
      $region40: #{tpu_custom_call.1} parent=5 // pred_fallthru
        _
      %p3900 = scmp.le.s32.totalorder 2, %s14
      // Predicated region
      $region45: #{tpu_custom_call.1} parent=5 // pred_check
        %p3901 = pneg %p3900
      $region46: #{tpu_custom_call.1} parent=5 // pred_check_branch
        %3903 = sbr.rel (%p3901) target = $region48
      $region47: #{tpu_custom_call.1} parent=5 // pred_region
        %s3904 = ssub.s32 %s14, 2
        // Predicated region
        $region49: #{tpu_custom_call.1} parent=47 // pred_check
          %p3905 = pneg %p153
        $region50: #{tpu_custom_call.1} parent=47 // pred_check_branch
          %3907 = sbr.rel (%p3905) target = $region52
        $region51: #{tpu_custom_call.1} parent=47 // pred_region
          %s3908 = sand.u32 %s138, 1
          %s3909 = scalar_lea.sflag [#allocation4], %s3908
          %s3910 = sand.u32 %s138, 1
          %s3911 = smul.addr %s3910, 16
          %s3912 = scalar_lea.vmem [#allocation3], %s3911
          %3913 = dma.done %s3909, 256
        $region52: #{tpu_custom_call.1} parent=47 // pred_fallthru
          _
      $region48: #{tpu_custom_call.1} parent=5 // pred_fallthru
        _
    $region6: #{tpu_custom_call.1} parent=1 // loop_footer
      %s18 = sadd.s32 1, %s14
    $region7: #{tpu_custom_call.1} parent=1 // loop_footer_branch
      %13 = sbr.rel target = $region3
    $region8: #{tpu_custom_call.1} parent=1 // loop_exit
      _
    %3914 = vsyncpa [#allocation4], 1
    %s3915 = scalar_lea.sflag [#allocation4], 1
    %3916 = vsyncpa %s3915, 1

</llo_original>
